<compile_context>
chip_gen: v7x
topology: tpu7x:2x2x1
jax: 0.10.0
libtpu: 0.0.40
codegen_flags: <defaults>
</compile_context>

<pallas_src>
import math
from functools import partial

import numpy as np

import jax
import jax.numpy as jnp
from jax.experimental import pallas as pl
from jax.experimental.pallas import tpu as pltpu


# --------------------------- fused AttnBlock kernel ---------------------------
def _attn_block_kernel(x_ref, ln_g_ref, ln_b_ref, dw_ref, inv_ref,
                       wq_ref, bq_ref, wkT_ref, bkT_ref, wvT_ref, bvT_ref,
                       attn_ref, vT_ref, pad_ref, kvp_ref,
                       *, H, W, Hq, Wq, Hk, Wk, stride_q, stride_kv,
                       num_heads, head_dim, n_pad, eps):
    C = x_ref.shape[-1]
    f32 = jnp.float32
    bf16 = jnp.bfloat16

    # ---------------- LayerNorm (fused, per token over C) ----------------
    x = x_ref[0]                                            # [T, C]
    mu = jnp.mean(x, axis=-1, keepdims=True)
    xc = x - mu
    var = jnp.mean(xc * xc, axis=-1, keepdims=True)         # biased var (PyTorch LN)
    xn = xc * jax.lax.rsqrt(var + eps) * ln_g_ref[...] + ln_b_ref[...]

    # ------------ write normalized rows into the padded scratch ----------
    pad_ref[...] = jnp.zeros(pad_ref.shape, f32)            # zero halo / overhang
    for h in range(H):                                      # interior: rows 1..H, cols 1..W
        pad_ref[h + 1, pl.ds(1, W), :] = xn[h * W:(h + 1) * W, :]

    # one-hot stride-2 column-downsample matrices (built from iota, MXU applies them)
    wm_q = stride_q * (Wq - 1) + 1
    col = jax.lax.broadcasted_iota(jnp.int32, (Wq, wm_q), 1)
    row = jax.lax.broadcasted_iota(jnp.int32, (Wq, wm_q), 0)
    d_q = (col == stride_q * row).astype(f32)               # [Wq, wm_q]

    wm_k = stride_kv * (Wk - 1) + 3
    col = jax.lax.broadcasted_iota(jnp.int32, (Wk, wm_k), 1)
    row = jax.lax.broadcasted_iota(jnp.int32, (Wk, wm_k), 0)
    dd = col - stride_kv * row
    d_k = ((dd >= 0) & (dd < 3)).astype(f32)                # [Wk, wm_k] 3-tap box + stride-2

    # ---------- q path: depthwise 3x3 stride-2 conv (BN scale folded) -----
    q_rows = []
    for i in range(Hq):
        mid = jnp.zeros((wm_q, C), f32)
        for kh in range(3):
            r = stride_q * i + kh
            for kw in range(3):
                mid = mid + pad_ref[r, pl.ds(kw, wm_q), :] * dw_ref[pl.ds(3 * kh + kw, 1), :]
        q_rows.append(jnp.dot(d_q, mid, preferred_element_type=f32))       # [Wq, C]
    q_conv = jnp.concatenate(q_rows, axis=0)                # [Tq, C]

    # -------- k/v path: 3x3 stride-2 avg pool (divisors folded in inv) ----
    kvp_ref[...] = jnp.zeros(kvp_ref.shape, f32)
    for i in range(Hk):
        mid = jnp.zeros((wm_k, C), f32)
        for kh in range(3):
            mid = mid + pad_ref[stride_kv * i + kh, pl.ds(0, wm_k), :]
        kvp_ref[pl.ds(i * Wk, Wk), :] = jnp.dot(d_k, mid, preferred_element_type=f32)
    kv_pool = kvp_ref[...] * inv_ref[...]                   # [n_pad, C]; rows >= Tkv are 0

    # ---------- projections: bf16 MXU operands, f32 accumulation ----------
    q = jnp.dot(q_conv.astype(bf16), wq_ref[...],
                preferred_element_type=f32) + bq_ref[...]                   # [Tq, C]
    kv_b = kv_pool.astype(bf16)
    tdims = (((1,), (1,)), ((), ()))                        # contract last dims (A @ B^T)
    kT = jax.lax.dot_general(wkT_ref[...], kv_b, tdims,
                             preferred_element_type=f32) + bkT_ref[...]     # [C, n_pad]
    vT = jax.lax.dot_general(wvT_ref[...], kv_b, tdims,
                             preferred_element_type=f32) + bvT_ref[...]     # [C, n_pad]
    vT_ref[0] = vT                                          # lane-dense store

    # ------- attention scores: all heads in ONE lane-dense MXU push -------
    cidx = jax.lax.broadcasted_iota(jnp.int32, (C, 1), 0)
    kT_b = kT.astype(bf16)
    k_blk = jnp.concatenate(
        [jnp.where((cidx >= h * head_dim) & (cidx < (h + 1) * head_dim),
                   kT_b, jnp.zeros_like(kT_b))
         for h in range(num_heads)], axis=1)                # [C, num_heads * n_pad]
    attn_ref[0] = jnp.dot(q.astype(bf16), k_blk, preferred_element_type=f32)


# ------------------------------ JAX glue ------------------------------------
def _conv_out_size(n, kernel, stride, pad):
    return (n + 2 * pad - kernel) // stride + 1


def _pool_out_size(n, kernel, stride, pad):
    out = math.ceil((n + 2 * pad - kernel) / stride) + 1    # ceil_mode=True
    if (out - 1) * stride >= n + pad:
        out -= 1
    return out


def _pool_div(n, kernel, stride, pad, out):
    idx = np.arange(out)
    start = idx * stride - pad
    end = np.minimum(start + kernel, n + pad)               # count_include_pad=True
    return (end - start).astype(np.float32)


def init_params(key, embed_dim):
    C = embed_dim
    ks = jax.random.split(key, 11)
    bound = 1.0 / math.sqrt(C)
    u = lambda k, shape, lo, hi: jax.random.uniform(k, shape, jnp.float32, lo, hi)

    bn_gamma = u(ks[0], (C,), 0.5, 1.5)
    bn_beta = 0.1 * jax.random.normal(ks[1], (C,), jnp.float32)
    running_mean = jnp.zeros((C,), jnp.float32)
    running_var = jnp.ones((C,), jnp.float32)
    bn_scale = bn_gamma / jnp.sqrt(running_var + 1e-5)
    bn_bias = bn_beta - running_mean * bn_scale

    dw = 0.3 * jax.random.normal(ks[2], (3, 3, C), jnp.float32)   # [kh, kw, C]

    return dict(
        ln_g=u(ks[3], (C,), 0.5, 1.5),
        ln_b=0.1 * jax.random.normal(ks[4], (C,), jnp.float32),
        dw_w=dw.reshape(9, C),
        bn_scale=bn_scale.reshape(1, C),
        bn_bias=bn_bias.reshape(1, C),
        wq=u(ks[5], (C, C), -bound, bound),
        bq=u(ks[6], (1, C), -bound, bound),
        wk=u(ks[7], (C, C), -bound, bound),
        bk=u(ks[8], (1, C), -bound, bound),
        wv=u(ks[9], (C, C), -bound, bound),
        bv=u(ks[10], (1, C), -bound, bound),
    )


def attn_block_forward(x_nchw, params, num_heads, stride_q=2, stride_kv=2):
    B, C, H, W = x_nchw.shape
    hd = C // num_heads
    x_flat = jnp.transpose(x_nchw, (0, 2, 3, 1)).reshape(B, H * W, C).astype(jnp.float32)
    res = x_flat                                            # 'b c h w -> b (h w) c'

    Hq, Wq = _conv_out_size(H, 3, stride_q, 1), _conv_out_size(W, 3, stride_q, 1)
    Hk, Wk = _pool_out_size(H, 3, stride_kv, 1), _pool_out_size(W, 3, stride_kv, 1)
    Tq, Tkv = Hq * Wq, Hk * Wk
    n_pad = ((Tkv + 127) // 128) * 128                      # lane-dense kv / score padding

    HP = max(max(stride_q * (Hq - 1), stride_kv * (Hk - 1)) + 3, H + 2)
    WP = max(max(stride_q * (Wq - 1), stride_kv * (Wk - 1)) + 3, W + 2)

    # avg-pool divisors (ceil_mode=True, count_include_pad=True), pre-broadcast to [n_pad, C]
    div = np.outer(_pool_div(H, 3, stride_kv, 1, Hk),
                   _pool_div(W, 3, stride_kv, 1, Wk)).reshape(-1)
    inv = np.zeros((n_pad, 1), np.float32)
    inv[:Tkv, 0] = 1.0 / div
    inv_full = jnp.asarray(np.broadcast_to(inv, (n_pad, C)).copy())

    # fold BatchNorm (inference), attention scale and biases into the weights
    scale = float(C) ** -0.5                                # dim_out ** -0.5 (matches module)
    dw_eff = params["dw_w"] * params["bn_scale"]            # [9, C]
    wq_eff = (params["wq"] * scale).astype(jnp.bfloat16)
    bq_eff = (params["bn_bias"] @ params["wq"] + params["bq"]) * scale      # [1, C]
    wkT = jnp.transpose(params["wk"]).astype(jnp.bfloat16)
    wvT = jnp.transpose(params["wv"]).astype(jnp.bfloat16)
    bkT = params["bk"].reshape(C, 1)
    bvT = params["bv"].reshape(C, 1)

    kernel = partial(_attn_block_kernel, H=H, W=W, Hq=Hq, Wq=Wq, Hk=Hk, Wk=Wk,
                     stride_q=stride_q, stride_kv=stride_kv, num_heads=num_heads,
                     head_dim=hd, n_pad=n_pad, eps=1e-5)

    bcast = lambda shape: pl.BlockSpec(shape, lambda b, s=len(shape): (0,) * s)
    attn_slab, vT = pl.pallas_call(
        kernel,
        out_shape=(jax.ShapeDtypeStruct((B, Tq, num_heads * n_pad), jnp.float32),
                   jax.ShapeDtypeStruct((B, C, n_pad), jnp.float32)),
        grid=(B,),
        in_specs=[
            pl.BlockSpec((1, H * W, C), lambda b: (b, 0, 0)),   # x (LN done in kernel)
            bcast((1, C)), bcast((1, C)),                       # LN gamma / beta
            bcast((9, C)),                                      # depthwise weights (BN-scaled)
            bcast((n_pad, C)),                                  # pool 1/divisor slab
            bcast((C, C)), bcast((1, C)),                       # wq (scale folded), bq (folded)
            bcast((C, C)), bcast((C, 1)),                       # wk^T, bk^T
            bcast((C, C)), bcast((C, 1)),                       # wv^T, bv^T
        ],
        out_specs=(pl.BlockSpec((1, Tq, num_heads * n_pad), lambda b: (b, 0, 0)),
                   pl.BlockSpec((1, C, n_pad), lambda b: (b, 0, 0))),
        scratch_shapes=[pltpu.VMEM((HP, WP, C), jnp.float32),   # zero-padded normalized slab
                        pltpu.VMEM((n_pad, C), jnp.float32)],   # pooled k/v tokens (padded)
        compiler_params=pltpu.CompilerParams(
            dimension_semantics=("parallel",),
            vmem_limit_bytes=32 * 1024 * 1024),
    )(x_flat, params["ln_g"].reshape(1, C), params["ln_b"].reshape(1, C),
      dw_eff, inv_full, wq_eff, bq_eff, wkT, bkT, wvT, bvT)

    # wrapper-side layout plumbing only: unpack heads, drop the lane padding
    attn = attn_slab.reshape(B, Tq, num_heads, n_pad).transpose(0, 2, 1, 3)[..., :Tkv]
    v = vT[:, :, :Tkv].transpose(0, 2, 1)                   # [B, Tkv, C]
    v = v.reshape(B, Tkv, num_heads, hd).transpose(0, 2, 1, 3)   # b h t d
    return attn, [v, res, H, W]


if __name__ == "__main__":
    B, C, H, W = 2, 32, 16, 16
    num_heads = 4

    key = jax.random.PRNGKey(0)
    kx, kp = jax.random.split(key)
    x = jax.random.normal(kx, (B, C, H, W), jnp.float32)
    params = init_params(kp, C)

    attn_score, (v, res, h, w) = attn_block_forward(x, params, num_heads)
    jax.block_until_ready((attn_score, v, res))

    Tq = _conv_out_size(H, 3, 2, 1) * _conv_out_size(W, 3, 2, 1)      # 64
    Tkv = _pool_out_size(H, 3, 2, 1) * _pool_out_size(W, 3, 2, 1)     # 81
    assert attn_score.shape == (B, num_heads, Tq, Tkv)
    assert v.shape == (B, num_heads, Tkv, C // num_heads)
    assert res.shape == (B, H * W, C)
    assert (h, w) == (H, W)
    assert bool(jnp.all(jnp.isfinite(attn_score)))
    assert bool(jnp.all(jnp.isfinite(v)))
    print("KERNEL_OK")
</pallas_src>

<mosaic_0001>
module attributes {stable_mosaic.version = 11 : i64} {
  func.func @_attn_block_kernel(%arg0: i32, %arg1: memref<1x256x32xf32, #tpu.memory_space<vmem>>, %arg2: memref<1x32xf32, #tpu.memory_space<vmem>>, %arg3: memref<1x32xf32, #tpu.memory_space<vmem>>, %arg4: memref<9x32xf32, #tpu.memory_space<vmem>>, %arg5: memref<128x32xf32, #tpu.memory_space<vmem>>, %arg6: memref<32x32xbf16, #tpu.memory_space<vmem>>, %arg7: memref<1x32xf32, #tpu.memory_space<vmem>>, %arg8: memref<32x32xbf16, #tpu.memory_space<vmem>>, %arg9: memref<32x1xf32, #tpu.memory_space<vmem>>, %arg10: memref<32x32xbf16, #tpu.memory_space<vmem>>, %arg11: memref<32x1xf32, #tpu.memory_space<vmem>>, %arg12: memref<1x64x512xf32, #tpu.memory_space<vmem>>, %arg13: memref<1x32x128xf32, #tpu.memory_space<vmem>>, %arg14: memref<19x19x32xf32, #tpu.memory_space<vmem>>, %arg15: memref<128x32xf32, #tpu.memory_space<vmem>>) attributes {dimension_semantics = [#tpu.dimension_semantics<parallel>], iteration_bounds = array<i64: 2>, scalar_prefetch = 0 : i64, scratch_operands = 2 : i64, tpu.core_type = #tpu.core_type<tc>, window_params = [{transform_indices = @transform_0, window_bounds = array<i64: 1, 256, 32>}, {pipeline_mode = #tpu.pipeline_mode<synchronous>, transform_indices = @transform_1, window_bounds = array<i64: 1, 32>}, {pipeline_mode = #tpu.pipeline_mode<synchronous>, transform_indices = @transform_2, window_bounds = array<i64: 1, 32>}, {pipeline_mode = #tpu.pipeline_mode<synchronous>, transform_indices = @transform_3, window_bounds = array<i64: 9, 32>}, {pipeline_mode = #tpu.pipeline_mode<synchronous>, transform_indices = @transform_4, window_bounds = array<i64: 128, 32>}, {pipeline_mode = #tpu.pipeline_mode<synchronous>, transform_indices = @transform_5, window_bounds = array<i64: 32, 32>}, {pipeline_mode = #tpu.pipeline_mode<synchronous>, transform_indices = @transform_6, window_bounds = array<i64: 1, 32>}, {pipeline_mode = #tpu.pipeline_mode<synchronous>, transform_indices = @transform_7, window_bounds = array<i64: 32, 32>}, {pipeline_mode = #tpu.pipeline_mode<synchronous>, transform_indices = @transform_8, window_bounds = array<i64: 32, 1>}, {pipeline_mode = #tpu.pipeline_mode<synchronous>, transform_indices = @transform_9, window_bounds = array<i64: 32, 32>}, {pipeline_mode = #tpu.pipeline_mode<synchronous>, transform_indices = @transform_10, window_bounds = array<i64: 32, 1>}, {transform_indices = @transform_11, window_bounds = array<i64: 1, 64, 512>}, {transform_indices = @transform_12, window_bounds = array<i64: 1, 32, 128>}]} {
    %c0 = arith.constant 0 : index
    %c0_0 = arith.constant 0 : index
    %c0_1 = arith.constant 0 : index
    %0 = vector.load %arg1[%c0, %c0_0, %c0_1] : memref<1x256x32xf32, #tpu.memory_space<vmem>>, vector<1x256x32xf32>
    %1 = vector.shape_cast %0 : vector<1x256x32xf32> to vector<256x32xf32>
    %cst = arith.constant dense<0.000000e+00> : vector<256xf32>
    %2 = vector.multi_reduction <add>, %1, %cst [1] : vector<256x32xf32> to vector<256xf32>
    %3 = vector.shape_cast %2 : vector<256xf32> to vector<256x1xf32>
    %cst_2 = arith.constant 3.200000e+01 : f32
    %4 = vector.broadcast %cst_2 : f32 to vector<256x1xf32>
    %5 = arith.divf %3, %4 : vector<256x1xf32>
    %6 = vector.broadcast %5 : vector<256x1xf32> to vector<256x32xf32>
    %7 = arith.subf %1, %6 : vector<256x32xf32>
    %8 = arith.mulf %7, %7 : vector<256x32xf32>
    %cst_3 = arith.constant dense<0.000000e+00> : vector<256xf32>
    %9 = vector.multi_reduction <add>, %8, %cst_3 [1] : vector<256x32xf32> to vector<256xf32>
    %10 = vector.shape_cast %9 : vector<256xf32> to vector<256x1xf32>
    %cst_4 = arith.constant 3.200000e+01 : f32
    %11 = vector.broadcast %cst_4 : f32 to vector<256x1xf32>
    %12 = arith.divf %10, %11 : vector<256x1xf32>
    %cst_5 = arith.constant 9.99999974E-6 : f32
    %13 = vector.broadcast %cst_5 : f32 to vector<256x1xf32>
    %14 = arith.addf %12, %13 : vector<256x1xf32>
    %15 = math.rsqrt %14 : vector<256x1xf32>
    %16 = vector.broadcast %15 : vector<256x1xf32> to vector<256x32xf32>
    %17 = arith.mulf %7, %16 : vector<256x32xf32>
    %c0_6 = arith.constant 0 : index
    %c0_7 = arith.constant 0 : index
    %18 = vector.load %arg2[%c0_6, %c0_7] : memref<1x32xf32, #tpu.memory_space<vmem>>, vector<1x32xf32>
    %19 = vector.broadcast %18 : vector<1x32xf32> to vector<256x32xf32>
    %20 = arith.mulf %17, %19 : vector<256x32xf32>
    %c0_8 = arith.constant 0 : index
    %c0_9 = arith.constant 0 : index
    %21 = vector.load %arg3[%c0_8, %c0_9] : memref<1x32xf32, #tpu.memory_space<vmem>>, vector<1x32xf32>
    %22 = vector.broadcast %21 : vector<1x32xf32> to vector<256x32xf32>
    %23 = arith.addf %20, %22 : vector<256x32xf32>
    %cst_10 = arith.constant 0.000000e+00 : f32
    %24 = vector.broadcast %cst_10 : f32 to vector<19x19x32xf32>
    %c0_11 = arith.constant 0 : index
    %c0_12 = arith.constant 0 : index
    %c0_13 = arith.constant 0 : index
    %25 = vector.load %arg14[%c0_11, %c0_12, %c0_13] : memref<19x19x32xf32, #tpu.memory_space<vmem>>, vector<19x19x32xf32>
    tpu.vector_store %arg14[%c0_11, %c0_12, %c0_13], %24 {strides = array<i32>} : memref<19x19x32xf32, #tpu.memory_space<vmem>>, vector<19x19x32xf32>,
    %26 = vector.extract_strided_slice %23 {offsets = [0, 0], sizes = [16, 32], strides = [1, 1]} : vector<256x32xf32> to vector<16x32xf32>
    %c1 = arith.constant 1 : index
    %c1_14 = arith.constant 1 : index
    %c0_15 = arith.constant 0 : index
    %27 = vector.load %arg14[%c1, %c1_14, %c0_15] : memref<19x19x32xf32, #tpu.memory_space<vmem>>, vector<1x16x32xf32>
    %28 = vector.shape_cast %27 : vector<1x16x32xf32> to vector<16x32xf32>
    %29 = vector.shape_cast %26 : vector<16x32xf32> to vector<1x16x32xf32>
    tpu.vector_store %arg14[%c1, %c1_14, %c0_15], %29 {strides = array<i32>} : memref<19x19x32xf32, #tpu.memory_space<vmem>>, vector<1x16x32xf32>,
    %30 = vector.extract_strided_slice %23 {offsets = [16, 0], sizes = [16, 32], strides = [1, 1]} : vector<256x32xf32> to vector<16x32xf32>
    %c2 = arith.constant 2 : index
    %c1_16 = arith.constant 1 : index
    %c0_17 = arith.constant 0 : index
    %31 = vector.load %arg14[%c2, %c1_16, %c0_17] : memref<19x19x32xf32, #tpu.memory_space<vmem>>, vector<1x16x32xf32>
    %32 = vector.shape_cast %31 : vector<1x16x32xf32> to vector<16x32xf32>
    %33 = vector.shape_cast %30 : vector<16x32xf32> to vector<1x16x32xf32>
    tpu.vector_store %arg14[%c2, %c1_16, %c0_17], %33 {strides = array<i32>} : memref<19x19x32xf32, #tpu.memory_space<vmem>>, vector<1x16x32xf32>,
    %34 = vector.extract_strided_slice %23 {offsets = [32, 0], sizes = [16, 32], strides = [1, 1]} : vector<256x32xf32> to vector<16x32xf32>
    %c3 = arith.constant 3 : index
    %c1_18 = arith.constant 1 : index
    %c0_19 = arith.constant 0 : index
    %35 = vector.load %arg14[%c3, %c1_18, %c0_19] : memref<19x19x32xf32, #tpu.memory_space<vmem>>, vector<1x16x32xf32>
    %36 = vector.shape_cast %35 : vector<1x16x32xf32> to vector<16x32xf32>
    %37 = vector.shape_cast %34 : vector<16x32xf32> to vector<1x16x32xf32>
    tpu.vector_store %arg14[%c3, %c1_18, %c0_19], %37 {strides = array<i32>} : memref<19x19x32xf32, #tpu.memory_space<vmem>>, vector<1x16x32xf32>,
    %38 = vector.extract_strided_slice %23 {offsets = [48, 0], sizes = [16, 32], strides = [1, 1]} : vector<256x32xf32> to vector<16x32xf32>
    %c4 = arith.constant 4 : index
    %c1_20 = arith.constant 1 : index
    %c0_21 = arith.constant 0 : index
    %39 = vector.load %arg14[%c4, %c1_20, %c0_21] : memref<19x19x32xf32, #tpu.memory_space<vmem>>, vector<1x16x32xf32>
    %40 = vector.shape_cast %39 : vector<1x16x32xf32> to vector<16x32xf32>
    %41 = vector.shape_cast %38 : vector<16x32xf32> to vector<1x16x32xf32>
    tpu.vector_store %arg14[%c4, %c1_20, %c0_21], %41 {strides = array<i32>} : memref<19x19x32xf32, #tpu.memory_space<vmem>>, vector<1x16x32xf32>,
    %42 = vector.extract_strided_slice %23 {offsets = [64, 0], sizes = [16, 32], strides = [1, 1]} : vector<256x32xf32> to vector<16x32xf32>
    %c5 = arith.constant 5 : index
    %c1_22 = arith.constant 1 : index
    %c0_23 = arith.constant 0 : index
    %43 = vector.load %arg14[%c5, %c1_22, %c0_23] : memref<19x19x32xf32, #tpu.memory_space<vmem>>, vector<1x16x32xf32>
    %44 = vector.shape_cast %43 : vector<1x16x32xf32> to vector<16x32xf32>
    %45 = vector.shape_cast %42 : vector<16x32xf32> to vector<1x16x32xf32>
    tpu.vector_store %arg14[%c5, %c1_22, %c0_23], %45 {strides = array<i32>} : memref<19x19x32xf32, #tpu.memory_space<vmem>>, vector<1x16x32xf32>,
    %46 = vector.extract_strided_slice %23 {offsets = [80, 0], sizes = [16, 32], strides = [1, 1]} : vector<256x32xf32> to vector<16x32xf32>
    %c6 = arith.constant 6 : index
    %c1_24 = arith.constant 1 : index
    %c0_25 = arith.constant 0 : index
    %47 = vector.load %arg14[%c6, %c1_24, %c0_25] : memref<19x19x32xf32, #tpu.memory_space<vmem>>, vector<1x16x32xf32>
    %48 = vector.shape_cast %47 : vector<1x16x32xf32> to vector<16x32xf32>
    %49 = vector.shape_cast %46 : vector<16x32xf32> to vector<1x16x32xf32>
    tpu.vector_store %arg14[%c6, %c1_24, %c0_25], %49 {strides = array<i32>} : memref<19x19x32xf32, #tpu.memory_space<vmem>>, vector<1x16x32xf32>,
    %50 = vector.extract_strided_slice %23 {offsets = [96, 0], sizes = [16, 32], strides = [1, 1]} : vector<256x32xf32> to vector<16x32xf32>
    %c7 = arith.constant 7 : index
    %c1_26 = arith.constant 1 : index
    %c0_27 = arith.constant 0 : index
    %51 = vector.load %arg14[%c7, %c1_26, %c0_27] : memref<19x19x32xf32, #tpu.memory_space<vmem>>, vector<1x16x32xf32>
    %52 = vector.shape_cast %51 : vector<1x16x32xf32> to vector<16x32xf32>
    %53 = vector.shape_cast %50 : vector<16x32xf32> to vector<1x16x32xf32>
    tpu.vector_store %arg14[%c7, %c1_26, %c0_27], %53 {strides = array<i32>} : memref<19x19x32xf32, #tpu.memory_space<vmem>>, vector<1x16x32xf32>,
    %54 = vector.extract_strided_slice %23 {offsets = [112, 0], sizes = [16, 32], strides = [1, 1]} : vector<256x32xf32> to vector<16x32xf32>
    %c8 = arith.constant 8 : index
    %c1_28 = arith.constant 1 : index
    %c0_29 = arith.constant 0 : index
    %55 = vector.load %arg14[%c8, %c1_28, %c0_29] : memref<19x19x32xf32, #tpu.memory_space<vmem>>, vector<1x16x32xf32>
    %56 = vector.shape_cast %55 : vector<1x16x32xf32> to vector<16x32xf32>
    %57 = vector.shape_cast %54 : vector<16x32xf32> to vector<1x16x32xf32>
    tpu.vector_store %arg14[%c8, %c1_28, %c0_29], %57 {strides = array<i32>} : memref<19x19x32xf32, #tpu.memory_space<vmem>>, vector<1x16x32xf32>,
    %58 = vector.extract_strided_slice %23 {offsets = [128, 0], sizes = [16, 32], strides = [1, 1]} : vector<256x32xf32> to vector<16x32xf32>
    %c9 = arith.constant 9 : index
    %c1_30 = arith.constant 1 : index
    %c0_31 = arith.constant 0 : index
    %59 = vector.load %arg14[%c9, %c1_30, %c0_31] : memref<19x19x32xf32, #tpu.memory_space<vmem>>, vector<1x16x32xf32>
    %60 = vector.shape_cast %59 : vector<1x16x32xf32> to vector<16x32xf32>
    %61 = vector.shape_cast %58 : vector<16x32xf32> to vector<1x16x32xf32>
    tpu.vector_store %arg14[%c9, %c1_30, %c0_31], %61 {strides = array<i32>} : memref<19x19x32xf32, #tpu.memory_space<vmem>>, vector<1x16x32xf32>,
    %62 = vector.extract_strided_slice %23 {offsets = [144, 0], sizes = [16, 32], strides = [1, 1]} : vector<256x32xf32> to vector<16x32xf32>
    %c10 = arith.constant 10 : index
    %c1_32 = arith.constant 1 : index
    %c0_33 = arith.constant 0 : index
    %63 = vector.load %arg14[%c10, %c1_32, %c0_33] : memref<19x19x32xf32, #tpu.memory_space<vmem>>, vector<1x16x32xf32>
    %64 = vector.shape_cast %63 : vector<1x16x32xf32> to vector<16x32xf32>
    %65 = vector.shape_cast %62 : vector<16x32xf32> to vector<1x16x32xf32>
    tpu.vector_store %arg14[%c10, %c1_32, %c0_33], %65 {strides = array<i32>} : memref<19x19x32xf32, #tpu.memory_space<vmem>>, vector<1x16x32xf32>,
    %66 = vector.extract_strided_slice %23 {offsets = [160, 0], sizes = [16, 32], strides = [1, 1]} : vector<256x32xf32> to vector<16x32xf32>
    %c11 = arith.constant 11 : index
    %c1_34 = arith.constant 1 : index
    %c0_35 = arith.constant 0 : index
    %67 = vector.load %arg14[%c11, %c1_34, %c0_35] : memref<19x19x32xf32, #tpu.memory_space<vmem>>, vector<1x16x32xf32>
    %68 = vector.shape_cast %67 : vector<1x16x32xf32> to vector<16x32xf32>
    %69 = vector.shape_cast %66 : vector<16x32xf32> to vector<1x16x32xf32>
    tpu.vector_store %arg14[%c11, %c1_34, %c0_35], %69 {strides = array<i32>} : memref<19x19x32xf32, #tpu.memory_space<vmem>>, vector<1x16x32xf32>,
    %70 = vector.extract_strided_slice %23 {offsets = [176, 0], sizes = [16, 32], strides = [1, 1]} : vector<256x32xf32> to vector<16x32xf32>
    %c12 = arith.constant 12 : index
    %c1_36 = arith.constant 1 : index
    %c0_37 = arith.constant 0 : index
    %71 = vector.load %arg14[%c12, %c1_36, %c0_37] : memref<19x19x32xf32, #tpu.memory_space<vmem>>, vector<1x16x32xf32>
    %72 = vector.shape_cast %71 : vector<1x16x32xf32> to vector<16x32xf32>
    %73 = vector.shape_cast %70 : vector<16x32xf32> to vector<1x16x32xf32>
    tpu.vector_store %arg14[%c12, %c1_36, %c0_37], %73 {strides = array<i32>} : memref<19x19x32xf32, #tpu.memory_space<vmem>>, vector<1x16x32xf32>,
    %74 = vector.extract_strided_slice %23 {offsets = [192, 0], sizes = [16, 32], strides = [1, 1]} : vector<256x32xf32> to vector<16x32xf32>
    %c13 = arith.constant 13 : index
    %c1_38 = arith.constant 1 : index
    %c0_39 = arith.constant 0 : index
    %75 = vector.load %arg14[%c13, %c1_38, %c0_39] : memref<19x19x32xf32, #tpu.memory_space<vmem>>, vector<1x16x32xf32>
    %76 = vector.shape_cast %75 : vector<1x16x32xf32> to vector<16x32xf32>
    %77 = vector.shape_cast %74 : vector<16x32xf32> to vector<1x16x32xf32>
    tpu.vector_store %arg14[%c13, %c1_38, %c0_39], %77 {strides = array<i32>} : memref<19x19x32xf32, #tpu.memory_space<vmem>>, vector<1x16x32xf32>,
    %78 = vector.extract_strided_slice %23 {offsets = [208, 0], sizes = [16, 32], strides = [1, 1]} : vector<256x32xf32> to vector<16x32xf32>
    %c14 = arith.constant 14 : index
    %c1_40 = arith.constant 1 : index
    %c0_41 = arith.constant 0 : index
    %79 = vector.load %arg14[%c14, %c1_40, %c0_41] : memref<19x19x32xf32, #tpu.memory_space<vmem>>, vector<1x16x32xf32>
    %80 = vector.shape_cast %79 : vector<1x16x32xf32> to vector<16x32xf32>
    %81 = vector.shape_cast %78 : vector<16x32xf32> to vector<1x16x32xf32>
    tpu.vector_store %arg14[%c14, %c1_40, %c0_41], %81 {strides = array<i32>} : memref<19x19x32xf32, #tpu.memory_space<vmem>>, vector<1x16x32xf32>,
    %82 = vector.extract_strided_slice %23 {offsets = [224, 0], sizes = [16, 32], strides = [1, 1]} : vector<256x32xf32> to vector<16x32xf32>
    %c15 = arith.constant 15 : index
    %c1_42 = arith.constant 1 : index
    %c0_43 = arith.constant 0 : index
    %83 = vector.load %arg14[%c15, %c1_42, %c0_43] : memref<19x19x32xf32, #tpu.memory_space<vmem>>, vector<1x16x32xf32>
    %84 = vector.shape_cast %83 : vector<1x16x32xf32> to vector<16x32xf32>
    %85 = vector.shape_cast %82 : vector<16x32xf32> to vector<1x16x32xf32>
    tpu.vector_store %arg14[%c15, %c1_42, %c0_43], %85 {strides = array<i32>} : memref<19x19x32xf32, #tpu.memory_space<vmem>>, vector<1x16x32xf32>,
    %86 = vector.extract_strided_slice %23 {offsets = [240, 0], sizes = [16, 32], strides = [1, 1]} : vector<256x32xf32> to vector<16x32xf32>
    %c16 = arith.constant 16 : index
    %c1_44 = arith.constant 1 : index
    %c0_45 = arith.constant 0 : index
    %87 = vector.load %arg14[%c16, %c1_44, %c0_45] : memref<19x19x32xf32, #tpu.memory_space<vmem>>, vector<1x16x32xf32>
    %88 = vector.shape_cast %87 : vector<1x16x32xf32> to vector<16x32xf32>
    %89 = vector.shape_cast %86 : vector<16x32xf32> to vector<1x16x32xf32>
    tpu.vector_store %arg14[%c16, %c1_44, %c0_45], %89 {strides = array<i32>} : memref<19x19x32xf32, #tpu.memory_space<vmem>>, vector<1x16x32xf32>,
    %90 = tpu.iota {dimensions = array<i32: 1>} : vector<8x15xi32>
    %91 = tpu.iota {dimensions = array<i32: 0>} : vector<8x15xi32>
    %c2_i32 = arith.constant 2 : i32
    %92 = vector.broadcast %c2_i32 : i32 to vector<8x15xi32>
    %93 = arith.muli %92, %91 : vector<8x15xi32>
    %94 = arith.cmpi eq, %90, %93 : vector<8x15xi32>
    %95 = arith.extui %94 : vector<8x15xi1> to vector<8x15xi32>
    %96 = arith.sitofp %95 : vector<8x15xi32> to vector<8x15xf32>
    %97 = tpu.iota {dimensions = array<i32: 1>} : vector<9x19xi32>
    %98 = tpu.iota {dimensions = array<i32: 0>} : vector<9x19xi32>
    %c2_i32_46 = arith.constant 2 : i32
    %99 = vector.broadcast %c2_i32_46 : i32 to vector<9x19xi32>
    %100 = arith.muli %99, %98 : vector<9x19xi32>
    %101 = arith.subi %97, %100 : vector<9x19xi32>
    %c0_i32 = arith.constant 0 : i32
    %102 = vector.broadcast %c0_i32 : i32 to vector<9x19xi32>
    %103 = arith.cmpi sge, %101, %102 : vector<9x19xi32>
    %c3_i32 = arith.constant 3 : i32
    %104 = vector.broadcast %c3_i32 : i32 to vector<9x19xi32>
    %105 = arith.cmpi slt, %101, %104 : vector<9x19xi32>
    %106 = arith.andi %103, %105 : vector<9x19xi1>
    %107 = arith.extui %106 : vector<9x19xi1> to vector<9x19xi32>
    %108 = arith.sitofp %107 : vector<9x19xi32> to vector<9x19xf32>
    %cst_47 = arith.constant 0.000000e+00 : f32
    %109 = vector.broadcast %cst_47 : f32 to vector<15x32xf32>
    %c0_48 = arith.constant 0 : index
    %c0_49 = arith.constant 0 : index
    %c0_50 = arith.constant 0 : index
    %110 = vector.load %arg14[%c0_48, %c0_49, %c0_50] : memref<19x19x32xf32, #tpu.memory_space<vmem>>, vector<1x15x32xf32>
    %111 = vector.shape_cast %110 : vector<1x15x32xf32> to vector<15x32xf32>
    %c0_51 = arith.constant 0 : index
    %c0_52 = arith.constant 0 : index
    %112 = vector.load %arg4[%c0_51, %c0_52] : memref<9x32xf32, #tpu.memory_space<vmem>>, vector<1x32xf32>
    %113 = vector.broadcast %112 : vector<1x32xf32> to vector<15x32xf32>
    %114 = arith.mulf %111, %113 : vector<15x32xf32>
    %115 = arith.addf %109, %114 : vector<15x32xf32>
    %c0_53 = arith.constant 0 : index
    %c1_54 = arith.constant 1 : index
    %c0_55 = arith.constant 0 : index
    %116 = vector.load %arg14[%c0_53, %c1_54, %c0_55] : memref<19x19x32xf32, #tpu.memory_space<vmem>>, vector<1x15x32xf32>
    %117 = vector.shape_cast %116 : vector<1x15x32xf32> to vector<15x32xf32>
    %c1_56 = arith.constant 1 : index
    %c0_57 = arith.constant 0 : index
    %118 = vector.load %arg4[%c1_56, %c0_57] : memref<9x32xf32, #tpu.memory_space<vmem>>, vector<1x32xf32>
    %119 = vector.broadcast %118 : vector<1x32xf32> to vector<15x32xf32>
    %120 = arith.mulf %117, %119 : vector<15x32xf32>
    %121 = arith.addf %115, %120 : vector<15x32xf32>
    %c0_58 = arith.constant 0 : index
    %c2_59 = arith.constant 2 : index
    %c0_60 = arith.constant 0 : index
    %122 = vector.load %arg14[%c0_58, %c2_59, %c0_60] : memref<19x19x32xf32, #tpu.memory_space<vmem>>, vector<1x15x32xf32>
    %123 = vector.shape_cast %122 : vector<1x15x32xf32> to vector<15x32xf32>
    %c2_61 = arith.constant 2 : index
    %c0_62 = arith.constant 0 : index
    %124 = vector.load %arg4[%c2_61, %c0_62] : memref<9x32xf32, #tpu.memory_space<vmem>>, vector<1x32xf32>
    %125 = vector.broadcast %124 : vector<1x32xf32> to vector<15x32xf32>
    %126 = arith.mulf %123, %125 : vector<15x32xf32>
    %127 = arith.addf %121, %126 : vector<15x32xf32>
    %c1_63 = arith.constant 1 : index
    %c0_64 = arith.constant 0 : index
    %c0_65 = arith.constant 0 : index
    %128 = vector.load %arg14[%c1_63, %c0_64, %c0_65] : memref<19x19x32xf32, #tpu.memory_space<vmem>>, vector<1x15x32xf32>
    %129 = vector.shape_cast %128 : vector<1x15x32xf32> to vector<15x32xf32>
    %c3_66 = arith.constant 3 : index
    %c0_67 = arith.constant 0 : index
    %130 = vector.load %arg4[%c3_66, %c0_67] : memref<9x32xf32, #tpu.memory_space<vmem>>, vector<1x32xf32>
    %131 = vector.broadcast %130 : vector<1x32xf32> to vector<15x32xf32>
    %132 = arith.mulf %129, %131 : vector<15x32xf32>
    %133 = arith.addf %127, %132 : vector<15x32xf32>
    %c1_68 = arith.constant 1 : index
    %c1_69 = arith.constant 1 : index
    %c0_70 = arith.constant 0 : index
    %134 = vector.load %arg14[%c1_68, %c1_69, %c0_70] : memref<19x19x32xf32, #tpu.memory_space<vmem>>, vector<1x15x32xf32>
    %135 = vector.shape_cast %134 : vector<1x15x32xf32> to vector<15x32xf32>
    %c4_71 = arith.constant 4 : index
    %c0_72 = arith.constant 0 : index
    %136 = vector.load %arg4[%c4_71, %c0_72] : memref<9x32xf32, #tpu.memory_space<vmem>>, vector<1x32xf32>
    %137 = vector.broadcast %136 : vector<1x32xf32> to vector<15x32xf32>
    %138 = arith.mulf %135, %137 : vector<15x32xf32>
    %139 = arith.addf %133, %138 : vector<15x32xf32>
    %c1_73 = arith.constant 1 : index
    %c2_74 = arith.constant 2 : index
    %c0_75 = arith.constant 0 : index
    %140 = vector.load %arg14[%c1_73, %c2_74, %c0_75] : memref<19x19x32xf32, #tpu.memory_space<vmem>>, vector<1x15x32xf32>
    %141 = vector.shape_cast %140 : vector<1x15x32xf32> to vector<15x32xf32>
    %c5_76 = arith.constant 5 : index
    %c0_77 = arith.constant 0 : index
    %142 = vector.load %arg4[%c5_76, %c0_77] : memref<9x32xf32, #tpu.memory_space<vmem>>, vector<1x32xf32>
    %143 = vector.broadcast %142 : vector<1x32xf32> to vector<15x32xf32>
    %144 = arith.mulf %141, %143 : vector<15x32xf32>
    %145 = arith.addf %139, %144 : vector<15x32xf32>
    %c2_78 = arith.constant 2 : index
    %c0_79 = arith.constant 0 : index
    %c0_80 = arith.constant 0 : index
    %146 = vector.load %arg14[%c2_78, %c0_79, %c0_80] : memref<19x19x32xf32, #tpu.memory_space<vmem>>, vector<1x15x32xf32>
    %147 = vector.shape_cast %146 : vector<1x15x32xf32> to vector<15x32xf32>
    %c6_81 = arith.constant 6 : index
    %c0_82 = arith.constant 0 : index
    %148 = vector.load %arg4[%c6_81, %c0_82] : memref<9x32xf32, #tpu.memory_space<vmem>>, vector<1x32xf32>
    %149 = vector.broadcast %148 : vector<1x32xf32> to vector<15x32xf32>
    %150 = arith.mulf %147, %149 : vector<15x32xf32>
    %151 = arith.addf %145, %150 : vector<15x32xf32>
    %c2_83 = arith.constant 2 : index
    %c1_84 = arith.constant 1 : index
    %c0_85 = arith.constant 0 : index
    %152 = vector.load %arg14[%c2_83, %c1_84, %c0_85] : memref<19x19x32xf32, #tpu.memory_space<vmem>>, vector<1x15x32xf32>
    %153 = vector.shape_cast %152 : vector<1x15x32xf32> to vector<15x32xf32>
    %c7_86 = arith.constant 7 : index
    %c0_87 = arith.constant 0 : index
    %154 = vector.load %arg4[%c7_86, %c0_87] : memref<9x32xf32, #tpu.memory_space<vmem>>, vector<1x32xf32>
    %155 = vector.broadcast %154 : vector<1x32xf32> to vector<15x32xf32>
    %156 = arith.mulf %153, %155 : vector<15x32xf32>
    %157 = arith.addf %151, %156 : vector<15x32xf32>
    %c2_88 = arith.constant 2 : index
    %c2_89 = arith.constant 2 : index
    %c0_90 = arith.constant 0 : index
    %158 = vector.load %arg14[%c2_88, %c2_89, %c0_90] : memref<19x19x32xf32, #tpu.memory_space<vmem>>, vector<1x15x32xf32>
    %159 = vector.shape_cast %158 : vector<1x15x32xf32> to vector<15x32xf32>
    %c8_91 = arith.constant 8 : index
    %c0_92 = arith.constant 0 : index
    %160 = vector.load %arg4[%c8_91, %c0_92] : memref<9x32xf32, #tpu.memory_space<vmem>>, vector<1x32xf32>
    %161 = vector.broadcast %160 : vector<1x32xf32> to vector<15x32xf32>
    %162 = arith.mulf %159, %161 : vector<15x32xf32>
    %163 = arith.addf %157, %162 : vector<15x32xf32>
    %cst_93 = arith.constant dense<0.000000e+00> : vector<8x32xf32>
    %164 = tpu.matmul %96, %163, %cst_93 {dimension_numbers = #tpu.dot_dimension_numbers<[1], [0], [0], [1], [0, 0, 1, 1], [], []>} : vector<8x15xf32>, vector<15x32xf32>, vector<8x32xf32> -> vector<8x32xf32>
    %cst_94 = arith.constant 0.000000e+00 : f32
    %165 = vector.broadcast %cst_94 : f32 to vector<15x32xf32>
    %c2_95 = arith.constant 2 : index
    %c0_96 = arith.constant 0 : index
    %c0_97 = arith.constant 0 : index
    %166 = vector.load %arg14[%c2_95, %c0_96, %c0_97] : memref<19x19x32xf32, #tpu.memory_space<vmem>>, vector<1x15x32xf32>
    %167 = vector.shape_cast %166 : vector<1x15x32xf32> to vector<15x32xf32>
    %c0_98 = arith.constant 0 : index
    %c0_99 = arith.constant 0 : index
    %168 = vector.load %arg4[%c0_98, %c0_99] : memref<9x32xf32, #tpu.memory_space<vmem>>, vector<1x32xf32>
    %169 = vector.broadcast %168 : vector<1x32xf32> to vector<15x32xf32>
    %170 = arith.mulf %167, %169 : vector<15x32xf32>
    %171 = arith.addf %165, %170 : vector<15x32xf32>
    %c2_100 = arith.constant 2 : index
    %c1_101 = arith.constant 1 : index
    %c0_102 = arith.constant 0 : index
    %172 = vector.load %arg14[%c2_100, %c1_101, %c0_102] : memref<19x19x32xf32, #tpu.memory_space<vmem>>, vector<1x15x32xf32>
    %173 = vector.shape_cast %172 : vector<1x15x32xf32> to vector<15x32xf32>
    %c1_103 = arith.constant 1 : index
    %c0_104 = arith.constant 0 : index
    %174 = vector.load %arg4[%c1_103, %c0_104] : memref<9x32xf32, #tpu.memory_space<vmem>>, vector<1x32xf32>
    %175 = vector.broadcast %174 : vector<1x32xf32> to vector<15x32xf32>
    %176 = arith.mulf %173, %175 : vector<15x32xf32>
    %177 = arith.addf %171, %176 : vector<15x32xf32>
    %c2_105 = arith.constant 2 : index
    %c2_106 = arith.constant 2 : index
    %c0_107 = arith.constant 0 : index
    %178 = vector.load %arg14[%c2_105, %c2_106, %c0_107] : memref<19x19x32xf32, #tpu.memory_space<vmem>>, vector<1x15x32xf32>
    %179 = vector.shape_cast %178 : vector<1x15x32xf32> to vector<15x32xf32>
    %c2_108 = arith.constant 2 : index
    %c0_109 = arith.constant 0 : index
    %180 = vector.load %arg4[%c2_108, %c0_109] : memref<9x32xf32, #tpu.memory_space<vmem>>, vector<1x32xf32>
    %181 = vector.broadcast %180 : vector<1x32xf32> to vector<15x32xf32>
    %182 = arith.mulf %179, %181 : vector<15x32xf32>
    %183 = arith.addf %177, %182 : vector<15x32xf32>
    %c3_110 = arith.constant 3 : index
    %c0_111 = arith.constant 0 : index
    %c0_112 = arith.constant 0 : index
    %184 = vector.load %arg14[%c3_110, %c0_111, %c0_112] : memref<19x19x32xf32, #tpu.memory_space<vmem>>, vector<1x15x32xf32>
    %185 = vector.shape_cast %184 : vector<1x15x32xf32> to vector<15x32xf32>
    %c3_113 = arith.constant 3 : index
    %c0_114 = arith.constant 0 : index
    %186 = vector.load %arg4[%c3_113, %c0_114] : memref<9x32xf32, #tpu.memory_space<vmem>>, vector<1x32xf32>
    %187 = vector.broadcast %186 : vector<1x32xf32> to vector<15x32xf32>
    %188 = arith.mulf %185, %187 : vector<15x32xf32>
    %189 = arith.addf %183, %188 : vector<15x32xf32>
    %c3_115 = arith.constant 3 : index
    %c1_116 = arith.constant 1 : index
    %c0_117 = arith.constant 0 : index
    %190 = vector.load %arg14[%c3_115, %c1_116, %c0_117] : memref<19x19x32xf32, #tpu.memory_space<vmem>>, vector<1x15x32xf32>
    %191 = vector.shape_cast %190 : vector<1x15x32xf32> to vector<15x32xf32>
    %c4_118 = arith.constant 4 : index
    %c0_119 = arith.constant 0 : index
    %192 = vector.load %arg4[%c4_118, %c0_119] : memref<9x32xf32, #tpu.memory_space<vmem>>, vector<1x32xf32>
    %193 = vector.broadcast %192 : vector<1x32xf32> to vector<15x32xf32>
    %194 = arith.mulf %191, %193 : vector<15x32xf32>
    %195 = arith.addf %189, %194 : vector<15x32xf32>
    %c3_120 = arith.constant 3 : index
    %c2_121 = arith.constant 2 : index
    %c0_122 = arith.constant 0 : index
    %196 = vector.load %arg14[%c3_120, %c2_121, %c0_122] : memref<19x19x32xf32, #tpu.memory_space<vmem>>, vector<1x15x32xf32>
    %197 = vector.shape_cast %196 : vector<1x15x32xf32> to vector<15x32xf32>
    %c5_123 = arith.constant 5 : index
    %c0_124 = arith.constant 0 : index
    %198 = vector.load %arg4[%c5_123, %c0_124] : memref<9x32xf32, #tpu.memory_space<vmem>>, vector<1x32xf32>
    %199 = vector.broadcast %198 : vector<1x32xf32> to vector<15x32xf32>
    %200 = arith.mulf %197, %199 : vector<15x32xf32>
    %201 = arith.addf %195, %200 : vector<15x32xf32>
    %c4_125 = arith.constant 4 : index
    %c0_126 = arith.constant 0 : index
    %c0_127 = arith.constant 0 : index
    %202 = vector.load %arg14[%c4_125, %c0_126, %c0_127] : memref<19x19x32xf32, #tpu.memory_space<vmem>>, vector<1x15x32xf32>
    %203 = vector.shape_cast %202 : vector<1x15x32xf32> to vector<15x32xf32>
    %c6_128 = arith.constant 6 : index
    %c0_129 = arith.constant 0 : index
    %204 = vector.load %arg4[%c6_128, %c0_129] : memref<9x32xf32, #tpu.memory_space<vmem>>, vector<1x32xf32>
    %205 = vector.broadcast %204 : vector<1x32xf32> to vector<15x32xf32>
    %206 = arith.mulf %203, %205 : vector<15x32xf32>
    %207 = arith.addf %201, %206 : vector<15x32xf32>
    %c4_130 = arith.constant 4 : index
    %c1_131 = arith.constant 1 : index
    %c0_132 = arith.constant 0 : index
    %208 = vector.load %arg14[%c4_130, %c1_131, %c0_132] : memref<19x19x32xf32, #tpu.memory_space<vmem>>, vector<1x15x32xf32>
    %209 = vector.shape_cast %208 : vector<1x15x32xf32> to vector<15x32xf32>
    %c7_133 = arith.constant 7 : index
    %c0_134 = arith.constant 0 : index
    %210 = vector.load %arg4[%c7_133, %c0_134] : memref<9x32xf32, #tpu.memory_space<vmem>>, vector<1x32xf32>
    %211 = vector.broadcast %210 : vector<1x32xf32> to vector<15x32xf32>
    %212 = arith.mulf %209, %211 : vector<15x32xf32>
    %213 = arith.addf %207, %212 : vector<15x32xf32>
    %c4_135 = arith.constant 4 : index
    %c2_136 = arith.constant 2 : index
    %c0_137 = arith.constant 0 : index
    %214 = vector.load %arg14[%c4_135, %c2_136, %c0_137] : memref<19x19x32xf32, #tpu.memory_space<vmem>>, vector<1x15x32xf32>
    %215 = vector.shape_cast %214 : vector<1x15x32xf32> to vector<15x32xf32>
    %c8_138 = arith.constant 8 : index
    %c0_139 = arith.constant 0 : index
    %216 = vector.load %arg4[%c8_138, %c0_139] : memref<9x32xf32, #tpu.memory_space<vmem>>, vector<1x32xf32>
    %217 = vector.broadcast %216 : vector<1x32xf32> to vector<15x32xf32>
    %218 = arith.mulf %215, %217 : vector<15x32xf32>
    %219 = arith.addf %213, %218 : vector<15x32xf32>
    %cst_140 = arith.constant dense<0.000000e+00> : vector<8x32xf32>
    %220 = tpu.matmul %96, %219, %cst_140 {dimension_numbers = #tpu.dot_dimension_numbers<[1], [0], [0], [1], [0, 0, 1, 1], [], []>} : vector<8x15xf32>, vector<15x32xf32>, vector<8x32xf32> -> vector<8x32xf32>
    %cst_141 = arith.constant 0.000000e+00 : f32
    %221 = vector.broadcast %cst_141 : f32 to vector<15x32xf32>
    %c4_142 = arith.constant 4 : index
    %c0_143 = arith.constant 0 : index
    %c0_144 = arith.constant 0 : index
    %222 = vector.load %arg14[%c4_142, %c0_143, %c0_144] : memref<19x19x32xf32, #tpu.memory_space<vmem>>, vector<1x15x32xf32>
    %223 = vector.shape_cast %222 : vector<1x15x32xf32> to vector<15x32xf32>
    %c0_145 = arith.constant 0 : index
    %c0_146 = arith.constant 0 : index
    %224 = vector.load %arg4[%c0_145, %c0_146] : memref<9x32xf32, #tpu.memory_space<vmem>>, vector<1x32xf32>
    %225 = vector.broadcast %224 : vector<1x32xf32> to vector<15x32xf32>
    %226 = arith.mulf %223, %225 : vector<15x32xf32>
    %227 = arith.addf %221, %226 : vector<15x32xf32>
    %c4_147 = arith.constant 4 : index
    %c1_148 = arith.constant 1 : index
    %c0_149 = arith.constant 0 : index
    %228 = vector.load %arg14[%c4_147, %c1_148, %c0_149] : memref<19x19x32xf32, #tpu.memory_space<vmem>>, vector<1x15x32xf32>
    %229 = vector.shape_cast %228 : vector<1x15x32xf32> to vector<15x32xf32>
    %c1_150 = arith.constant 1 : index
    %c0_151 = arith.constant 0 : index
    %230 = vector.load %arg4[%c1_150, %c0_151] : memref<9x32xf32, #tpu.memory_space<vmem>>, vector<1x32xf32>
    %231 = vector.broadcast %230 : vector<1x32xf32> to vector<15x32xf32>
    %232 = arith.mulf %229, %231 : vector<15x32xf32>
    %233 = arith.addf %227, %232 : vector<15x32xf32>
    %c4_152 = arith.constant 4 : index
    %c2_153 = arith.constant 2 : index
    %c0_154 = arith.constant 0 : index
    %234 = vector.load %arg14[%c4_152, %c2_153, %c0_154] : memref<19x19x32xf32, #tpu.memory_space<vmem>>, vector<1x15x32xf32>
    %235 = vector.shape_cast %234 : vector<1x15x32xf32> to vector<15x32xf32>
    %c2_155 = arith.constant 2 : index
    %c0_156 = arith.constant 0 : index
    %236 = vector.load %arg4[%c2_155, %c0_156] : memref<9x32xf32, #tpu.memory_space<vmem>>, vector<1x32xf32>
    %237 = vector.broadcast %236 : vector<1x32xf32> to vector<15x32xf32>
    %238 = arith.mulf %235, %237 : vector<15x32xf32>
    %239 = arith.addf %233, %238 : vector<15x32xf32>
    %c5_157 = arith.constant 5 : index
    %c0_158 = arith.constant 0 : index
    %c0_159 = arith.constant 0 : index
    %240 = vector.load %arg14[%c5_157, %c0_158, %c0_159] : memref<19x19x32xf32, #tpu.memory_space<vmem>>, vector<1x15x32xf32>
    %241 = vector.shape_cast %240 : vector<1x15x32xf32> to vector<15x32xf32>
    %c3_160 = arith.constant 3 : index
    %c0_161 = arith.constant 0 : index
    %242 = vector.load %arg4[%c3_160, %c0_161] : memref<9x32xf32, #tpu.memory_space<vmem>>, vector<1x32xf32>
    %243 = vector.broadcast %242 : vector<1x32xf32> to vector<15x32xf32>
    %244 = arith.mulf %241, %243 : vector<15x32xf32>
    %245 = arith.addf %239, %244 : vector<15x32xf32>
    %c5_162 = arith.constant 5 : index
    %c1_163 = arith.constant 1 : index
    %c0_164 = arith.constant 0 : index
    %246 = vector.load %arg14[%c5_162, %c1_163, %c0_164] : memref<19x19x32xf32, #tpu.memory_space<vmem>>, vector<1x15x32xf32>
    %247 = vector.shape_cast %246 : vector<1x15x32xf32> to vector<15x32xf32>
    %c4_165 = arith.constant 4 : index
    %c0_166 = arith.constant 0 : index
    %248 = vector.load %arg4[%c4_165, %c0_166] : memref<9x32xf32, #tpu.memory_space<vmem>>, vector<1x32xf32>
    %249 = vector.broadcast %248 : vector<1x32xf32> to vector<15x32xf32>
    %250 = arith.mulf %247, %249 : vector<15x32xf32>
    %251 = arith.addf %245, %250 : vector<15x32xf32>
    %c5_167 = arith.constant 5 : index
    %c2_168 = arith.constant 2 : index
    %c0_169 = arith.constant 0 : index
    %252 = vector.load %arg14[%c5_167, %c2_168, %c0_169] : memref<19x19x32xf32, #tpu.memory_space<vmem>>, vector<1x15x32xf32>
    %253 = vector.shape_cast %252 : vector<1x15x32xf32> to vector<15x32xf32>
    %c5_170 = arith.constant 5 : index
    %c0_171 = arith.constant 0 : index
    %254 = vector.load %arg4[%c5_170, %c0_171] : memref<9x32xf32, #tpu.memory_space<vmem>>, vector<1x32xf32>
    %255 = vector.broadcast %254 : vector<1x32xf32> to vector<15x32xf32>
    %256 = arith.mulf %253, %255 : vector<15x32xf32>
    %257 = arith.addf %251, %256 : vector<15x32xf32>
    %c6_172 = arith.constant 6 : index
    %c0_173 = arith.constant 0 : index
    %c0_174 = arith.constant 0 : index
    %258 = vector.load %arg14[%c6_172, %c0_173, %c0_174] : memref<19x19x32xf32, #tpu.memory_space<vmem>>, vector<1x15x32xf32>
    %259 = vector.shape_cast %258 : vector<1x15x32xf32> to vector<15x32xf32>
    %c6_175 = arith.constant 6 : index
    %c0_176 = arith.constant 0 : index
    %260 = vector.load %arg4[%c6_175, %c0_176] : memref<9x32xf32, #tpu.memory_space<vmem>>, vector<1x32xf32>
    %261 = vector.broadcast %260 : vector<1x32xf32> to vector<15x32xf32>
    %262 = arith.mulf %259, %261 : vector<15x32xf32>
    %263 = arith.addf %257, %262 : vector<15x32xf32>
    %c6_177 = arith.constant 6 : index
    %c1_178 = arith.constant 1 : index
    %c0_179 = arith.constant 0 : index
    %264 = vector.load %arg14[%c6_177, %c1_178, %c0_179] : memref<19x19x32xf32, #tpu.memory_space<vmem>>, vector<1x15x32xf32>
    %265 = vector.shape_cast %264 : vector<1x15x32xf32> to vector<15x32xf32>
    %c7_180 = arith.constant 7 : index
    %c0_181 = arith.constant 0 : index
    %266 = vector.load %arg4[%c7_180, %c0_181] : memref<9x32xf32, #tpu.memory_space<vmem>>, vector<1x32xf32>
    %267 = vector.broadcast %266 : vector<1x32xf32> to vector<15x32xf32>
    %268 = arith.mulf %265, %267 : vector<15x32xf32>
    %269 = arith.addf %263, %268 : vector<15x32xf32>
    %c6_182 = arith.constant 6 : index
    %c2_183 = arith.constant 2 : index
    %c0_184 = arith.constant 0 : index
    %270 = vector.load %arg14[%c6_182, %c2_183, %c0_184] : memref<19x19x32xf32, #tpu.memory_space<vmem>>, vector<1x15x32xf32>
    %271 = vector.shape_cast %270 : vector<1x15x32xf32> to vector<15x32xf32>
    %c8_185 = arith.constant 8 : index
    %c0_186 = arith.constant 0 : index
    %272 = vector.load %arg4[%c8_185, %c0_186] : memref<9x32xf32, #tpu.memory_space<vmem>>, vector<1x32xf32>
    %273 = vector.broadcast %272 : vector<1x32xf32> to vector<15x32xf32>
    %274 = arith.mulf %271, %273 : vector<15x32xf32>
    %275 = arith.addf %269, %274 : vector<15x32xf32>
    %cst_187 = arith.constant dense<0.000000e+00> : vector<8x32xf32>
    %276 = tpu.matmul %96, %275, %cst_187 {dimension_numbers = #tpu.dot_dimension_numbers<[1], [0], [0], [1], [0, 0, 1, 1], [], []>} : vector<8x15xf32>, vector<15x32xf32>, vector<8x32xf32> -> vector<8x32xf32>
    %cst_188 = arith.constant 0.000000e+00 : f32
    %277 = vector.broadcast %cst_188 : f32 to vector<15x32xf32>
    %c6_189 = arith.constant 6 : index
    %c0_190 = arith.constant 0 : index
    %c0_191 = arith.constant 0 : index
    %278 = vector.load %arg14[%c6_189, %c0_190, %c0_191] : memref<19x19x32xf32, #tpu.memory_space<vmem>>, vector<1x15x32xf32>
    %279 = vector.shape_cast %278 : vector<1x15x32xf32> to vector<15x32xf32>
    %c0_192 = arith.constant 0 : index
    %c0_193 = arith.constant 0 : index
    %280 = vector.load %arg4[%c0_192, %c0_193] : memref<9x32xf32, #tpu.memory_space<vmem>>, vector<1x32xf32>
    %281 = vector.broadcast %280 : vector<1x32xf32> to vector<15x32xf32>
    %282 = arith.mulf %279, %281 : vector<15x32xf32>
    %283 = arith.addf %277, %282 : vector<15x32xf32>
    %c6_194 = arith.constant 6 : index
    %c1_195 = arith.constant 1 : index
    %c0_196 = arith.constant 0 : index
    %284 = vector.load %arg14[%c6_194, %c1_195, %c0_196] : memref<19x19x32xf32, #tpu.memory_space<vmem>>, vector<1x15x32xf32>
    %285 = vector.shape_cast %284 : vector<1x15x32xf32> to vector<15x32xf32>
    %c1_197 = arith.constant 1 : index
    %c0_198 = arith.constant 0 : index
    %286 = vector.load %arg4[%c1_197, %c0_198] : memref<9x32xf32, #tpu.memory_space<vmem>>, vector<1x32xf32>
    %287 = vector.broadcast %286 : vector<1x32xf32> to vector<15x32xf32>
    %288 = arith.mulf %285, %287 : vector<15x32xf32>
    %289 = arith.addf %283, %288 : vector<15x32xf32>
    %c6_199 = arith.constant 6 : index
    %c2_200 = arith.constant 2 : index
    %c0_201 = arith.constant 0 : index
    %290 = vector.load %arg14[%c6_199, %c2_200, %c0_201] : memref<19x19x32xf32, #tpu.memory_space<vmem>>, vector<1x15x32xf32>
    %291 = vector.shape_cast %290 : vector<1x15x32xf32> to vector<15x32xf32>
    %c2_202 = arith.constant 2 : index
    %c0_203 = arith.constant 0 : index
    %292 = vector.load %arg4[%c2_202, %c0_203] : memref<9x32xf32, #tpu.memory_space<vmem>>, vector<1x32xf32>
    %293 = vector.broadcast %292 : vector<1x32xf32> to vector<15x32xf32>
    %294 = arith.mulf %291, %293 : vector<15x32xf32>
    %295 = arith.addf %289, %294 : vector<15x32xf32>
    %c7_204 = arith.constant 7 : index
    %c0_205 = arith.constant 0 : index
    %c0_206 = arith.constant 0 : index
    %296 = vector.load %arg14[%c7_204, %c0_205, %c0_206] : memref<19x19x32xf32, #tpu.memory_space<vmem>>, vector<1x15x32xf32>
    %297 = vector.shape_cast %296 : vector<1x15x32xf32> to vector<15x32xf32>
    %c3_207 = arith.constant 3 : index
    %c0_208 = arith.constant 0 : index
    %298 = vector.load %arg4[%c3_207, %c0_208] : memref<9x32xf32, #tpu.memory_space<vmem>>, vector<1x32xf32>
    %299 = vector.broadcast %298 : vector<1x32xf32> to vector<15x32xf32>
    %300 = arith.mulf %297, %299 : vector<15x32xf32>
    %301 = arith.addf %295, %300 : vector<15x32xf32>
    %c7_209 = arith.constant 7 : index
    %c1_210 = arith.constant 1 : index
    %c0_211 = arith.constant 0 : index
    %302 = vector.load %arg14[%c7_209, %c1_210, %c0_211] : memref<19x19x32xf32, #tpu.memory_space<vmem>>, vector<1x15x32xf32>
    %303 = vector.shape_cast %302 : vector<1x15x32xf32> to vector<15x32xf32>
    %c4_212 = arith.constant 4 : index
    %c0_213 = arith.constant 0 : index
    %304 = vector.load %arg4[%c4_212, %c0_213] : memref<9x32xf32, #tpu.memory_space<vmem>>, vector<1x32xf32>
    %305 = vector.broadcast %304 : vector<1x32xf32> to vector<15x32xf32>
    %306 = arith.mulf %303, %305 : vector<15x32xf32>
    %307 = arith.addf %301, %306 : vector<15x32xf32>
    %c7_214 = arith.constant 7 : index
    %c2_215 = arith.constant 2 : index
    %c0_216 = arith.constant 0 : index
    %308 = vector.load %arg14[%c7_214, %c2_215, %c0_216] : memref<19x19x32xf32, #tpu.memory_space<vmem>>, vector<1x15x32xf32>
    %309 = vector.shape_cast %308 : vector<1x15x32xf32> to vector<15x32xf32>
    %c5_217 = arith.constant 5 : index
    %c0_218 = arith.constant 0 : index
    %310 = vector.load %arg4[%c5_217, %c0_218] : memref<9x32xf32, #tpu.memory_space<vmem>>, vector<1x32xf32>
    %311 = vector.broadcast %310 : vector<1x32xf32> to vector<15x32xf32>
    %312 = arith.mulf %309, %311 : vector<15x32xf32>
    %313 = arith.addf %307, %312 : vector<15x32xf32>
    %c8_219 = arith.constant 8 : index
    %c0_220 = arith.constant 0 : index
    %c0_221 = arith.constant 0 : index
    %314 = vector.load %arg14[%c8_219, %c0_220, %c0_221] : memref<19x19x32xf32, #tpu.memory_space<vmem>>, vector<1x15x32xf32>
    %315 = vector.shape_cast %314 : vector<1x15x32xf32> to vector<15x32xf32>
    %c6_222 = arith.constant 6 : index
    %c0_223 = arith.constant 0 : index
    %316 = vector.load %arg4[%c6_222, %c0_223] : memref<9x32xf32, #tpu.memory_space<vmem>>, vector<1x32xf32>
    %317 = vector.broadcast %316 : vector<1x32xf32> to vector<15x32xf32>
    %318 = arith.mulf %315, %317 : vector<15x32xf32>
    %319 = arith.addf %313, %318 : vector<15x32xf32>
    %c8_224 = arith.constant 8 : index
    %c1_225 = arith.constant 1 : index
    %c0_226 = arith.constant 0 : index
    %320 = vector.load %arg14[%c8_224, %c1_225, %c0_226] : memref<19x19x32xf32, #tpu.memory_space<vmem>>, vector<1x15x32xf32>
    %321 = vector.shape_cast %320 : vector<1x15x32xf32> to vector<15x32xf32>
    %c7_227 = arith.constant 7 : index
    %c0_228 = arith.constant 0 : index
    %322 = vector.load %arg4[%c7_227, %c0_228] : memref<9x32xf32, #tpu.memory_space<vmem>>, vector<1x32xf32>
    %323 = vector.broadcast %322 : vector<1x32xf32> to vector<15x32xf32>
    %324 = arith.mulf %321, %323 : vector<15x32xf32>
    %325 = arith.addf %319, %324 : vector<15x32xf32>
    %c8_229 = arith.constant 8 : index
    %c2_230 = arith.constant 2 : index
    %c0_231 = arith.constant 0 : index
    %326 = vector.load %arg14[%c8_229, %c2_230, %c0_231] : memref<19x19x32xf32, #tpu.memory_space<vmem>>, vector<1x15x32xf32>
    %327 = vector.shape_cast %326 : vector<1x15x32xf32> to vector<15x32xf32>
    %c8_232 = arith.constant 8 : index
    %c0_233 = arith.constant 0 : index
    %328 = vector.load %arg4[%c8_232, %c0_233] : memref<9x32xf32, #tpu.memory_space<vmem>>, vector<1x32xf32>
    %329 = vector.broadcast %328 : vector<1x32xf32> to vector<15x32xf32>
    %330 = arith.mulf %327, %329 : vector<15x32xf32>
    %331 = arith.addf %325, %330 : vector<15x32xf32>
    %cst_234 = arith.constant dense<0.000000e+00> : vector<8x32xf32>
    %332 = tpu.matmul %96, %331, %cst_234 {dimension_numbers = #tpu.dot_dimension_numbers<[1], [0], [0], [1], [0, 0, 1, 1], [], []>} : vector<8x15xf32>, vector<15x32xf32>, vector<8x32xf32> -> vector<8x32xf32>
    %cst_235 = arith.constant 0.000000e+00 : f32
    %333 = vector.broadcast %cst_235 : f32 to vector<15x32xf32>
    %c8_236 = arith.constant 8 : index
    %c0_237 = arith.constant 0 : index
    %c0_238 = arith.constant 0 : index
    %334 = vector.load %arg14[%c8_236, %c0_237, %c0_238] : memref<19x19x32xf32, #tpu.memory_space<vmem>>, vector<1x15x32xf32>
    %335 = vector.shape_cast %334 : vector<1x15x32xf32> to vector<15x32xf32>
    %c0_239 = arith.constant 0 : index
    %c0_240 = arith.constant 0 : index
    %336 = vector.load %arg4[%c0_239, %c0_240] : memref<9x32xf32, #tpu.memory_space<vmem>>, vector<1x32xf32>
    %337 = vector.broadcast %336 : vector<1x32xf32> to vector<15x32xf32>
    %338 = arith.mulf %335, %337 : vector<15x32xf32>
    %339 = arith.addf %333, %338 : vector<15x32xf32>
    %c8_241 = arith.constant 8 : index
    %c1_242 = arith.constant 1 : index
    %c0_243 = arith.constant 0 : index
    %340 = vector.load %arg14[%c8_241, %c1_242, %c0_243] : memref<19x19x32xf32, #tpu.memory_space<vmem>>, vector<1x15x32xf32>
    %341 = vector.shape_cast %340 : vector<1x15x32xf32> to vector<15x32xf32>
    %c1_244 = arith.constant 1 : index
    %c0_245 = arith.constant 0 : index
    %342 = vector.load %arg4[%c1_244, %c0_245] : memref<9x32xf32, #tpu.memory_space<vmem>>, vector<1x32xf32>
    %343 = vector.broadcast %342 : vector<1x32xf32> to vector<15x32xf32>
    %344 = arith.mulf %341, %343 : vector<15x32xf32>
    %345 = arith.addf %339, %344 : vector<15x32xf32>
    %c8_246 = arith.constant 8 : index
    %c2_247 = arith.constant 2 : index
    %c0_248 = arith.constant 0 : index
    %346 = vector.load %arg14[%c8_246, %c2_247, %c0_248] : memref<19x19x32xf32, #tpu.memory_space<vmem>>, vector<1x15x32xf32>
    %347 = vector.shape_cast %346 : vector<1x15x32xf32> to vector<15x32xf32>
    %c2_249 = arith.constant 2 : index
    %c0_250 = arith.constant 0 : index
    %348 = vector.load %arg4[%c2_249, %c0_250] : memref<9x32xf32, #tpu.memory_space<vmem>>, vector<1x32xf32>
    %349 = vector.broadcast %348 : vector<1x32xf32> to vector<15x32xf32>
    %350 = arith.mulf %347, %349 : vector<15x32xf32>
    %351 = arith.addf %345, %350 : vector<15x32xf32>
    %c9_251 = arith.constant 9 : index
    %c0_252 = arith.constant 0 : index
    %c0_253 = arith.constant 0 : index
    %352 = vector.load %arg14[%c9_251, %c0_252, %c0_253] : memref<19x19x32xf32, #tpu.memory_space<vmem>>, vector<1x15x32xf32>
    %353 = vector.shape_cast %352 : vector<1x15x32xf32> to vector<15x32xf32>
    %c3_254 = arith.constant 3 : index
    %c0_255 = arith.constant 0 : index
    %354 = vector.load %arg4[%c3_254, %c0_255] : memref<9x32xf32, #tpu.memory_space<vmem>>, vector<1x32xf32>
    %355 = vector.broadcast %354 : vector<1x32xf32> to vector<15x32xf32>
    %356 = arith.mulf %353, %355 : vector<15x32xf32>
    %357 = arith.addf %351, %356 : vector<15x32xf32>
    %c9_256 = arith.constant 9 : index
    %c1_257 = arith.constant 1 : index
    %c0_258 = arith.constant 0 : index
    %358 = vector.load %arg14[%c9_256, %c1_257, %c0_258] : memref<19x19x32xf32, #tpu.memory_space<vmem>>, vector<1x15x32xf32>
    %359 = vector.shape_cast %358 : vector<1x15x32xf32> to vector<15x32xf32>
    %c4_259 = arith.constant 4 : index
    %c0_260 = arith.constant 0 : index
    %360 = vector.load %arg4[%c4_259, %c0_260] : memref<9x32xf32, #tpu.memory_space<vmem>>, vector<1x32xf32>
    %361 = vector.broadcast %360 : vector<1x32xf32> to vector<15x32xf32>
    %362 = arith.mulf %359, %361 : vector<15x32xf32>
    %363 = arith.addf %357, %362 : vector<15x32xf32>
    %c9_261 = arith.constant 9 : index
    %c2_262 = arith.constant 2 : index
    %c0_263 = arith.constant 0 : index
    %364 = vector.load %arg14[%c9_261, %c2_262, %c0_263] : memref<19x19x32xf32, #tpu.memory_space<vmem>>, vector<1x15x32xf32>
    %365 = vector.shape_cast %364 : vector<1x15x32xf32> to vector<15x32xf32>
    %c5_264 = arith.constant 5 : index
    %c0_265 = arith.constant 0 : index
    %366 = vector.load %arg4[%c5_264, %c0_265] : memref<9x32xf32, #tpu.memory_space<vmem>>, vector<1x32xf32>
    %367 = vector.broadcast %366 : vector<1x32xf32> to vector<15x32xf32>
    %368 = arith.mulf %365, %367 : vector<15x32xf32>
    %369 = arith.addf %363, %368 : vector<15x32xf32>
    %c10_266 = arith.constant 10 : index
    %c0_267 = arith.constant 0 : index
    %c0_268 = arith.constant 0 : index
    %370 = vector.load %arg14[%c10_266, %c0_267, %c0_268] : memref<19x19x32xf32, #tpu.memory_space<vmem>>, vector<1x15x32xf32>
    %371 = vector.shape_cast %370 : vector<1x15x32xf32> to vector<15x32xf32>
    %c6_269 = arith.constant 6 : index
    %c0_270 = arith.constant 0 : index
    %372 = vector.load %arg4[%c6_269, %c0_270] : memref<9x32xf32, #tpu.memory_space<vmem>>, vector<1x32xf32>
    %373 = vector.broadcast %372 : vector<1x32xf32> to vector<15x32xf32>
    %374 = arith.mulf %371, %373 : vector<15x32xf32>
    %375 = arith.addf %369, %374 : vector<15x32xf32>
    %c10_271 = arith.constant 10 : index
    %c1_272 = arith.constant 1 : index
    %c0_273 = arith.constant 0 : index
    %376 = vector.load %arg14[%c10_271, %c1_272, %c0_273] : memref<19x19x32xf32, #tpu.memory_space<vmem>>, vector<1x15x32xf32>
    %377 = vector.shape_cast %376 : vector<1x15x32xf32> to vector<15x32xf32>
    %c7_274 = arith.constant 7 : index
    %c0_275 = arith.constant 0 : index
    %378 = vector.load %arg4[%c7_274, %c0_275] : memref<9x32xf32, #tpu.memory_space<vmem>>, vector<1x32xf32>
    %379 = vector.broadcast %378 : vector<1x32xf32> to vector<15x32xf32>
    %380 = arith.mulf %377, %379 : vector<15x32xf32>
    %381 = arith.addf %375, %380 : vector<15x32xf32>
    %c10_276 = arith.constant 10 : index
    %c2_277 = arith.constant 2 : index
    %c0_278 = arith.constant 0 : index
    %382 = vector.load %arg14[%c10_276, %c2_277, %c0_278] : memref<19x19x32xf32, #tpu.memory_space<vmem>>, vector<1x15x32xf32>
    %383 = vector.shape_cast %382 : vector<1x15x32xf32> to vector<15x32xf32>
    %c8_279 = arith.constant 8 : index
    %c0_280 = arith.constant 0 : index
    %384 = vector.load %arg4[%c8_279, %c0_280] : memref<9x32xf32, #tpu.memory_space<vmem>>, vector<1x32xf32>
    %385 = vector.broadcast %384 : vector<1x32xf32> to vector<15x32xf32>
    %386 = arith.mulf %383, %385 : vector<15x32xf32>
    %387 = arith.addf %381, %386 : vector<15x32xf32>
    %cst_281 = arith.constant dense<0.000000e+00> : vector<8x32xf32>
    %388 = tpu.matmul %96, %387, %cst_281 {dimension_numbers = #tpu.dot_dimension_numbers<[1], [0], [0], [1], [0, 0, 1, 1], [], []>} : vector<8x15xf32>, vector<15x32xf32>, vector<8x32xf32> -> vector<8x32xf32>
    %cst_282 = arith.constant 0.000000e+00 : f32
    %389 = vector.broadcast %cst_282 : f32 to vector<15x32xf32>
    %c10_283 = arith.constant 10 : index
    %c0_284 = arith.constant 0 : index
    %c0_285 = arith.constant 0 : index
    %390 = vector.load %arg14[%c10_283, %c0_284, %c0_285] : memref<19x19x32xf32, #tpu.memory_space<vmem>>, vector<1x15x32xf32>
    %391 = vector.shape_cast %390 : vector<1x15x32xf32> to vector<15x32xf32>
    %c0_286 = arith.constant 0 : index
    %c0_287 = arith.constant 0 : index
    %392 = vector.load %arg4[%c0_286, %c0_287] : memref<9x32xf32, #tpu.memory_space<vmem>>, vector<1x32xf32>
    %393 = vector.broadcast %392 : vector<1x32xf32> to vector<15x32xf32>
    %394 = arith.mulf %391, %393 : vector<15x32xf32>
    %395 = arith.addf %389, %394 : vector<15x32xf32>
    %c10_288 = arith.constant 10 : index
    %c1_289 = arith.constant 1 : index
    %c0_290 = arith.constant 0 : index
    %396 = vector.load %arg14[%c10_288, %c1_289, %c0_290] : memref<19x19x32xf32, #tpu.memory_space<vmem>>, vector<1x15x32xf32>
    %397 = vector.shape_cast %396 : vector<1x15x32xf32> to vector<15x32xf32>
    %c1_291 = arith.constant 1 : index
    %c0_292 = arith.constant 0 : index
    %398 = vector.load %arg4[%c1_291, %c0_292] : memref<9x32xf32, #tpu.memory_space<vmem>>, vector<1x32xf32>
    %399 = vector.broadcast %398 : vector<1x32xf32> to vector<15x32xf32>
    %400 = arith.mulf %397, %399 : vector<15x32xf32>
    %401 = arith.addf %395, %400 : vector<15x32xf32>
    %c10_293 = arith.constant 10 : index
    %c2_294 = arith.constant 2 : index
    %c0_295 = arith.constant 0 : index
    %402 = vector.load %arg14[%c10_293, %c2_294, %c0_295] : memref<19x19x32xf32, #tpu.memory_space<vmem>>, vector<1x15x32xf32>
    %403 = vector.shape_cast %402 : vector<1x15x32xf32> to vector<15x32xf32>
    %c2_296 = arith.constant 2 : index
    %c0_297 = arith.constant 0 : index
    %404 = vector.load %arg4[%c2_296, %c0_297] : memref<9x32xf32, #tpu.memory_space<vmem>>, vector<1x32xf32>
    %405 = vector.broadcast %404 : vector<1x32xf32> to vector<15x32xf32>
    %406 = arith.mulf %403, %405 : vector<15x32xf32>
    %407 = arith.addf %401, %406 : vector<15x32xf32>
    %c11_298 = arith.constant 11 : index
    %c0_299 = arith.constant 0 : index
    %c0_300 = arith.constant 0 : index
    %408 = vector.load %arg14[%c11_298, %c0_299, %c0_300] : memref<19x19x32xf32, #tpu.memory_space<vmem>>, vector<1x15x32xf32>
    %409 = vector.shape_cast %408 : vector<1x15x32xf32> to vector<15x32xf32>
    %c3_301 = arith.constant 3 : index
    %c0_302 = arith.constant 0 : index
    %410 = vector.load %arg4[%c3_301, %c0_302] : memref<9x32xf32, #tpu.memory_space<vmem>>, vector<1x32xf32>
    %411 = vector.broadcast %410 : vector<1x32xf32> to vector<15x32xf32>
    %412 = arith.mulf %409, %411 : vector<15x32xf32>
    %413 = arith.addf %407, %412 : vector<15x32xf32>
    %c11_303 = arith.constant 11 : index
    %c1_304 = arith.constant 1 : index
    %c0_305 = arith.constant 0 : index
    %414 = vector.load %arg14[%c11_303, %c1_304, %c0_305] : memref<19x19x32xf32, #tpu.memory_space<vmem>>, vector<1x15x32xf32>
    %415 = vector.shape_cast %414 : vector<1x15x32xf32> to vector<15x32xf32>
    %c4_306 = arith.constant 4 : index
    %c0_307 = arith.constant 0 : index
    %416 = vector.load %arg4[%c4_306, %c0_307] : memref<9x32xf32, #tpu.memory_space<vmem>>, vector<1x32xf32>
    %417 = vector.broadcast %416 : vector<1x32xf32> to vector<15x32xf32>
    %418 = arith.mulf %415, %417 : vector<15x32xf32>
    %419 = arith.addf %413, %418 : vector<15x32xf32>
    %c11_308 = arith.constant 11 : index
    %c2_309 = arith.constant 2 : index
    %c0_310 = arith.constant 0 : index
    %420 = vector.load %arg14[%c11_308, %c2_309, %c0_310] : memref<19x19x32xf32, #tpu.memory_space<vmem>>, vector<1x15x32xf32>
    %421 = vector.shape_cast %420 : vector<1x15x32xf32> to vector<15x32xf32>
    %c5_311 = arith.constant 5 : index
    %c0_312 = arith.constant 0 : index
    %422 = vector.load %arg4[%c5_311, %c0_312] : memref<9x32xf32, #tpu.memory_space<vmem>>, vector<1x32xf32>
    %423 = vector.broadcast %422 : vector<1x32xf32> to vector<15x32xf32>
    %424 = arith.mulf %421, %423 : vector<15x32xf32>
    %425 = arith.addf %419, %424 : vector<15x32xf32>
    %c12_313 = arith.constant 12 : index
    %c0_314 = arith.constant 0 : index
    %c0_315 = arith.constant 0 : index
    %426 = vector.load %arg14[%c12_313, %c0_314, %c0_315] : memref<19x19x32xf32, #tpu.memory_space<vmem>>, vector<1x15x32xf32>
    %427 = vector.shape_cast %426 : vector<1x15x32xf32> to vector<15x32xf32>
    %c6_316 = arith.constant 6 : index
    %c0_317 = arith.constant 0 : index
    %428 = vector.load %arg4[%c6_316, %c0_317] : memref<9x32xf32, #tpu.memory_space<vmem>>, vector<1x32xf32>
    %429 = vector.broadcast %428 : vector<1x32xf32> to vector<15x32xf32>
    %430 = arith.mulf %427, %429 : vector<15x32xf32>
    %431 = arith.addf %425, %430 : vector<15x32xf32>
    %c12_318 = arith.constant 12 : index
    %c1_319 = arith.constant 1 : index
    %c0_320 = arith.constant 0 : index
    %432 = vector.load %arg14[%c12_318, %c1_319, %c0_320] : memref<19x19x32xf32, #tpu.memory_space<vmem>>, vector<1x15x32xf32>
    %433 = vector.shape_cast %432 : vector<1x15x32xf32> to vector<15x32xf32>
    %c7_321 = arith.constant 7 : index
    %c0_322 = arith.constant 0 : index
    %434 = vector.load %arg4[%c7_321, %c0_322] : memref<9x32xf32, #tpu.memory_space<vmem>>, vector<1x32xf32>
    %435 = vector.broadcast %434 : vector<1x32xf32> to vector<15x32xf32>
    %436 = arith.mulf %433, %435 : vector<15x32xf32>
    %437 = arith.addf %431, %436 : vector<15x32xf32>
    %c12_323 = arith.constant 12 : index
    %c2_324 = arith.constant 2 : index
    %c0_325 = arith.constant 0 : index
    %438 = vector.load %arg14[%c12_323, %c2_324, %c0_325] : memref<19x19x32xf32, #tpu.memory_space<vmem>>, vector<1x15x32xf32>
    %439 = vector.shape_cast %438 : vector<1x15x32xf32> to vector<15x32xf32>
    %c8_326 = arith.constant 8 : index
    %c0_327 = arith.constant 0 : index
    %440 = vector.load %arg4[%c8_326, %c0_327] : memref<9x32xf32, #tpu.memory_space<vmem>>, vector<1x32xf32>
    %441 = vector.broadcast %440 : vector<1x32xf32> to vector<15x32xf32>
    %442 = arith.mulf %439, %441 : vector<15x32xf32>
    %443 = arith.addf %437, %442 : vector<15x32xf32>
    %cst_328 = arith.constant dense<0.000000e+00> : vector<8x32xf32>
    %444 = tpu.matmul %96, %443, %cst_328 {dimension_numbers = #tpu.dot_dimension_numbers<[1], [0], [0], [1], [0, 0, 1, 1], [], []>} : vector<8x15xf32>, vector<15x32xf32>, vector<8x32xf32> -> vector<8x32xf32>
    %cst_329 = arith.constant 0.000000e+00 : f32
    %445 = vector.broadcast %cst_329 : f32 to vector<15x32xf32>
    %c12_330 = arith.constant 12 : index
    %c0_331 = arith.constant 0 : index
    %c0_332 = arith.constant 0 : index
    %446 = vector.load %arg14[%c12_330, %c0_331, %c0_332] : memref<19x19x32xf32, #tpu.memory_space<vmem>>, vector<1x15x32xf32>
    %447 = vector.shape_cast %446 : vector<1x15x32xf32> to vector<15x32xf32>
    %c0_333 = arith.constant 0 : index
    %c0_334 = arith.constant 0 : index
    %448 = vector.load %arg4[%c0_333, %c0_334] : memref<9x32xf32, #tpu.memory_space<vmem>>, vector<1x32xf32>
    %449 = vector.broadcast %448 : vector<1x32xf32> to vector<15x32xf32>
    %450 = arith.mulf %447, %449 : vector<15x32xf32>
    %451 = arith.addf %445, %450 : vector<15x32xf32>
    %c12_335 = arith.constant 12 : index
    %c1_336 = arith.constant 1 : index
    %c0_337 = arith.constant 0 : index
    %452 = vector.load %arg14[%c12_335, %c1_336, %c0_337] : memref<19x19x32xf32, #tpu.memory_space<vmem>>, vector<1x15x32xf32>
    %453 = vector.shape_cast %452 : vector<1x15x32xf32> to vector<15x32xf32>
    %c1_338 = arith.constant 1 : index
    %c0_339 = arith.constant 0 : index
    %454 = vector.load %arg4[%c1_338, %c0_339] : memref<9x32xf32, #tpu.memory_space<vmem>>, vector<1x32xf32>
    %455 = vector.broadcast %454 : vector<1x32xf32> to vector<15x32xf32>
    %456 = arith.mulf %453, %455 : vector<15x32xf32>
    %457 = arith.addf %451, %456 : vector<15x32xf32>
    %c12_340 = arith.constant 12 : index
    %c2_341 = arith.constant 2 : index
    %c0_342 = arith.constant 0 : index
    %458 = vector.load %arg14[%c12_340, %c2_341, %c0_342] : memref<19x19x32xf32, #tpu.memory_space<vmem>>, vector<1x15x32xf32>
    %459 = vector.shape_cast %458 : vector<1x15x32xf32> to vector<15x32xf32>
    %c2_343 = arith.constant 2 : index
    %c0_344 = arith.constant 0 : index
    %460 = vector.load %arg4[%c2_343, %c0_344] : memref<9x32xf32, #tpu.memory_space<vmem>>, vector<1x32xf32>
    %461 = vector.broadcast %460 : vector<1x32xf32> to vector<15x32xf32>
    %462 = arith.mulf %459, %461 : vector<15x32xf32>
    %463 = arith.addf %457, %462 : vector<15x32xf32>
    %c13_345 = arith.constant 13 : index
    %c0_346 = arith.constant 0 : index
    %c0_347 = arith.constant 0 : index
    %464 = vector.load %arg14[%c13_345, %c0_346, %c0_347] : memref<19x19x32xf32, #tpu.memory_space<vmem>>, vector<1x15x32xf32>
    %465 = vector.shape_cast %464 : vector<1x15x32xf32> to vector<15x32xf32>
    %c3_348 = arith.constant 3 : index
    %c0_349 = arith.constant 0 : index
    %466 = vector.load %arg4[%c3_348, %c0_349] : memref<9x32xf32, #tpu.memory_space<vmem>>, vector<1x32xf32>
    %467 = vector.broadcast %466 : vector<1x32xf32> to vector<15x32xf32>
    %468 = arith.mulf %465, %467 : vector<15x32xf32>
    %469 = arith.addf %463, %468 : vector<15x32xf32>
    %c13_350 = arith.constant 13 : index
    %c1_351 = arith.constant 1 : index
    %c0_352 = arith.constant 0 : index
    %470 = vector.load %arg14[%c13_350, %c1_351, %c0_352] : memref<19x19x32xf32, #tpu.memory_space<vmem>>, vector<1x15x32xf32>
    %471 = vector.shape_cast %470 : vector<1x15x32xf32> to vector<15x32xf32>
    %c4_353 = arith.constant 4 : index
    %c0_354 = arith.constant 0 : index
    %472 = vector.load %arg4[%c4_353, %c0_354] : memref<9x32xf32, #tpu.memory_space<vmem>>, vector<1x32xf32>
    %473 = vector.broadcast %472 : vector<1x32xf32> to vector<15x32xf32>
    %474 = arith.mulf %471, %473 : vector<15x32xf32>
    %475 = arith.addf %469, %474 : vector<15x32xf32>
    %c13_355 = arith.constant 13 : index
    %c2_356 = arith.constant 2 : index
    %c0_357 = arith.constant 0 : index
    %476 = vector.load %arg14[%c13_355, %c2_356, %c0_357] : memref<19x19x32xf32, #tpu.memory_space<vmem>>, vector<1x15x32xf32>
    %477 = vector.shape_cast %476 : vector<1x15x32xf32> to vector<15x32xf32>
    %c5_358 = arith.constant 5 : index
    %c0_359 = arith.constant 0 : index
    %478 = vector.load %arg4[%c5_358, %c0_359] : memref<9x32xf32, #tpu.memory_space<vmem>>, vector<1x32xf32>
    %479 = vector.broadcast %478 : vector<1x32xf32> to vector<15x32xf32>
    %480 = arith.mulf %477, %479 : vector<15x32xf32>
    %481 = arith.addf %475, %480 : vector<15x32xf32>
    %c14_360 = arith.constant 14 : index
    %c0_361 = arith.constant 0 : index
    %c0_362 = arith.constant 0 : index
    %482 = vector.load %arg14[%c14_360, %c0_361, %c0_362] : memref<19x19x32xf32, #tpu.memory_space<vmem>>, vector<1x15x32xf32>
    %483 = vector.shape_cast %482 : vector<1x15x32xf32> to vector<15x32xf32>
    %c6_363 = arith.constant 6 : index
    %c0_364 = arith.constant 0 : index
    %484 = vector.load %arg4[%c6_363, %c0_364] : memref<9x32xf32, #tpu.memory_space<vmem>>, vector<1x32xf32>
    %485 = vector.broadcast %484 : vector<1x32xf32> to vector<15x32xf32>
    %486 = arith.mulf %483, %485 : vector<15x32xf32>
    %487 = arith.addf %481, %486 : vector<15x32xf32>
    %c14_365 = arith.constant 14 : index
    %c1_366 = arith.constant 1 : index
    %c0_367 = arith.constant 0 : index
    %488 = vector.load %arg14[%c14_365, %c1_366, %c0_367] : memref<19x19x32xf32, #tpu.memory_space<vmem>>, vector<1x15x32xf32>
    %489 = vector.shape_cast %488 : vector<1x15x32xf32> to vector<15x32xf32>
    %c7_368 = arith.constant 7 : index
    %c0_369 = arith.constant 0 : index
    %490 = vector.load %arg4[%c7_368, %c0_369] : memref<9x32xf32, #tpu.memory_space<vmem>>, vector<1x32xf32>
    %491 = vector.broadcast %490 : vector<1x32xf32> to vector<15x32xf32>
    %492 = arith.mulf %489, %491 : vector<15x32xf32>
    %493 = arith.addf %487, %492 : vector<15x32xf32>
    %c14_370 = arith.constant 14 : index
    %c2_371 = arith.constant 2 : index
    %c0_372 = arith.constant 0 : index
    %494 = vector.load %arg14[%c14_370, %c2_371, %c0_372] : memref<19x19x32xf32, #tpu.memory_space<vmem>>, vector<1x15x32xf32>
    %495 = vector.shape_cast %494 : vector<1x15x32xf32> to vector<15x32xf32>
    %c8_373 = arith.constant 8 : index
    %c0_374 = arith.constant 0 : index
    %496 = vector.load %arg4[%c8_373, %c0_374] : memref<9x32xf32, #tpu.memory_space<vmem>>, vector<1x32xf32>
    %497 = vector.broadcast %496 : vector<1x32xf32> to vector<15x32xf32>
    %498 = arith.mulf %495, %497 : vector<15x32xf32>
    %499 = arith.addf %493, %498 : vector<15x32xf32>
    %cst_375 = arith.constant dense<0.000000e+00> : vector<8x32xf32>
    %500 = tpu.matmul %96, %499, %cst_375 {dimension_numbers = #tpu.dot_dimension_numbers<[1], [0], [0], [1], [0, 0, 1, 1], [], []>} : vector<8x15xf32>, vector<15x32xf32>, vector<8x32xf32> -> vector<8x32xf32>
    %cst_376 = arith.constant 0.000000e+00 : f32
    %501 = vector.broadcast %cst_376 : f32 to vector<15x32xf32>
    %c14_377 = arith.constant 14 : index
    %c0_378 = arith.constant 0 : index
    %c0_379 = arith.constant 0 : index
    %502 = vector.load %arg14[%c14_377, %c0_378, %c0_379] : memref<19x19x32xf32, #tpu.memory_space<vmem>>, vector<1x15x32xf32>
    %503 = vector.shape_cast %502 : vector<1x15x32xf32> to vector<15x32xf32>
    %c0_380 = arith.constant 0 : index
    %c0_381 = arith.constant 0 : index
    %504 = vector.load %arg4[%c0_380, %c0_381] : memref<9x32xf32, #tpu.memory_space<vmem>>, vector<1x32xf32>
    %505 = vector.broadcast %504 : vector<1x32xf32> to vector<15x32xf32>
    %506 = arith.mulf %503, %505 : vector<15x32xf32>
    %507 = arith.addf %501, %506 : vector<15x32xf32>
    %c14_382 = arith.constant 14 : index
    %c1_383 = arith.constant 1 : index
    %c0_384 = arith.constant 0 : index
    %508 = vector.load %arg14[%c14_382, %c1_383, %c0_384] : memref<19x19x32xf32, #tpu.memory_space<vmem>>, vector<1x15x32xf32>
    %509 = vector.shape_cast %508 : vector<1x15x32xf32> to vector<15x32xf32>
    %c1_385 = arith.constant 1 : index
    %c0_386 = arith.constant 0 : index
    %510 = vector.load %arg4[%c1_385, %c0_386] : memref<9x32xf32, #tpu.memory_space<vmem>>, vector<1x32xf32>
    %511 = vector.broadcast %510 : vector<1x32xf32> to vector<15x32xf32>
    %512 = arith.mulf %509, %511 : vector<15x32xf32>
    %513 = arith.addf %507, %512 : vector<15x32xf32>
    %c14_387 = arith.constant 14 : index
    %c2_388 = arith.constant 2 : index
    %c0_389 = arith.constant 0 : index
    %514 = vector.load %arg14[%c14_387, %c2_388, %c0_389] : memref<19x19x32xf32, #tpu.memory_space<vmem>>, vector<1x15x32xf32>
    %515 = vector.shape_cast %514 : vector<1x15x32xf32> to vector<15x32xf32>
    %c2_390 = arith.constant 2 : index
    %c0_391 = arith.constant 0 : index
    %516 = vector.load %arg4[%c2_390, %c0_391] : memref<9x32xf32, #tpu.memory_space<vmem>>, vector<1x32xf32>
    %517 = vector.broadcast %516 : vector<1x32xf32> to vector<15x32xf32>
    %518 = arith.mulf %515, %517 : vector<15x32xf32>
    %519 = arith.addf %513, %518 : vector<15x32xf32>
    %c15_392 = arith.constant 15 : index
    %c0_393 = arith.constant 0 : index
    %c0_394 = arith.constant 0 : index
    %520 = vector.load %arg14[%c15_392, %c0_393, %c0_394] : memref<19x19x32xf32, #tpu.memory_space<vmem>>, vector<1x15x32xf32>
    %521 = vector.shape_cast %520 : vector<1x15x32xf32> to vector<15x32xf32>
    %c3_395 = arith.constant 3 : index
    %c0_396 = arith.constant 0 : index
    %522 = vector.load %arg4[%c3_395, %c0_396] : memref<9x32xf32, #tpu.memory_space<vmem>>, vector<1x32xf32>
    %523 = vector.broadcast %522 : vector<1x32xf32> to vector<15x32xf32>
    %524 = arith.mulf %521, %523 : vector<15x32xf32>
    %525 = arith.addf %519, %524 : vector<15x32xf32>
    %c15_397 = arith.constant 15 : index
    %c1_398 = arith.constant 1 : index
    %c0_399 = arith.constant 0 : index
    %526 = vector.load %arg14[%c15_397, %c1_398, %c0_399] : memref<19x19x32xf32, #tpu.memory_space<vmem>>, vector<1x15x32xf32>
    %527 = vector.shape_cast %526 : vector<1x15x32xf32> to vector<15x32xf32>
    %c4_400 = arith.constant 4 : index
    %c0_401 = arith.constant 0 : index
    %528 = vector.load %arg4[%c4_400, %c0_401] : memref<9x32xf32, #tpu.memory_space<vmem>>, vector<1x32xf32>
    %529 = vector.broadcast %528 : vector<1x32xf32> to vector<15x32xf32>
    %530 = arith.mulf %527, %529 : vector<15x32xf32>
    %531 = arith.addf %525, %530 : vector<15x32xf32>
    %c15_402 = arith.constant 15 : index
    %c2_403 = arith.constant 2 : index
    %c0_404 = arith.constant 0 : index
    %532 = vector.load %arg14[%c15_402, %c2_403, %c0_404] : memref<19x19x32xf32, #tpu.memory_space<vmem>>, vector<1x15x32xf32>
    %533 = vector.shape_cast %532 : vector<1x15x32xf32> to vector<15x32xf32>
    %c5_405 = arith.constant 5 : index
    %c0_406 = arith.constant 0 : index
    %534 = vector.load %arg4[%c5_405, %c0_406] : memref<9x32xf32, #tpu.memory_space<vmem>>, vector<1x32xf32>
    %535 = vector.broadcast %534 : vector<1x32xf32> to vector<15x32xf32>
    %536 = arith.mulf %533, %535 : vector<15x32xf32>
    %537 = arith.addf %531, %536 : vector<15x32xf32>
    %c16_407 = arith.constant 16 : index
    %c0_408 = arith.constant 0 : index
    %c0_409 = arith.constant 0 : index
    %538 = vector.load %arg14[%c16_407, %c0_408, %c0_409] : memref<19x19x32xf32, #tpu.memory_space<vmem>>, vector<1x15x32xf32>
    %539 = vector.shape_cast %538 : vector<1x15x32xf32> to vector<15x32xf32>
    %c6_410 = arith.constant 6 : index
    %c0_411 = arith.constant 0 : index
    %540 = vector.load %arg4[%c6_410, %c0_411] : memref<9x32xf32, #tpu.memory_space<vmem>>, vector<1x32xf32>
    %541 = vector.broadcast %540 : vector<1x32xf32> to vector<15x32xf32>
    %542 = arith.mulf %539, %541 : vector<15x32xf32>
    %543 = arith.addf %537, %542 : vector<15x32xf32>
    %c16_412 = arith.constant 16 : index
    %c1_413 = arith.constant 1 : index
    %c0_414 = arith.constant 0 : index
    %544 = vector.load %arg14[%c16_412, %c1_413, %c0_414] : memref<19x19x32xf32, #tpu.memory_space<vmem>>, vector<1x15x32xf32>
    %545 = vector.shape_cast %544 : vector<1x15x32xf32> to vector<15x32xf32>
    %c7_415 = arith.constant 7 : index
    %c0_416 = arith.constant 0 : index
    %546 = vector.load %arg4[%c7_415, %c0_416] : memref<9x32xf32, #tpu.memory_space<vmem>>, vector<1x32xf32>
    %547 = vector.broadcast %546 : vector<1x32xf32> to vector<15x32xf32>
    %548 = arith.mulf %545, %547 : vector<15x32xf32>
    %549 = arith.addf %543, %548 : vector<15x32xf32>
    %c16_417 = arith.constant 16 : index
    %c2_418 = arith.constant 2 : index
    %c0_419 = arith.constant 0 : index
    %550 = vector.load %arg14[%c16_417, %c2_418, %c0_419] : memref<19x19x32xf32, #tpu.memory_space<vmem>>, vector<1x15x32xf32>
    %551 = vector.shape_cast %550 : vector<1x15x32xf32> to vector<15x32xf32>
    %c8_420 = arith.constant 8 : index
    %c0_421 = arith.constant 0 : index
    %552 = vector.load %arg4[%c8_420, %c0_421] : memref<9x32xf32, #tpu.memory_space<vmem>>, vector<1x32xf32>
    %553 = vector.broadcast %552 : vector<1x32xf32> to vector<15x32xf32>
    %554 = arith.mulf %551, %553 : vector<15x32xf32>
    %555 = arith.addf %549, %554 : vector<15x32xf32>
    %cst_422 = arith.constant dense<0.000000e+00> : vector<8x32xf32>
    %556 = tpu.matmul %96, %555, %cst_422 {dimension_numbers = #tpu.dot_dimension_numbers<[1], [0], [0], [1], [0, 0, 1, 1], [], []>} : vector<8x15xf32>, vector<15x32xf32>, vector<8x32xf32> -> vector<8x32xf32>
    %557 = tpu.concatenate %164, %220, %276, %332, %388, %444, %500, %556 in 0 : vector<8x32xf32>, vector<8x32xf32>, vector<8x32xf32>, vector<8x32xf32>, vector<8x32xf32>, vector<8x32xf32>, vector<8x32xf32>, vector<8x32xf32> -> vector<64x32xf32>
    %cst_423 = arith.constant 0.000000e+00 : f32
    %558 = vector.broadcast %cst_423 : f32 to vector<128x32xf32>
    %c0_424 = arith.constant 0 : index
    %c0_425 = arith.constant 0 : index
    %559 = vector.load %arg15[%c0_424, %c0_425] : memref<128x32xf32, #tpu.memory_space<vmem>>, vector<128x32xf32>
    tpu.vector_store %arg15[%c0_424, %c0_425], %558 {strides = array<i32>} : memref<128x32xf32, #tpu.memory_space<vmem>>, vector<128x32xf32>,
    %cst_426 = arith.constant 0.000000e+00 : f32
    %560 = vector.broadcast %cst_426 : f32 to vector<19x32xf32>
    %c0_427 = arith.constant 0 : index
    %c0_428 = arith.constant 0 : index
    %c0_429 = arith.constant 0 : index
    %561 = vector.load %arg14[%c0_427, %c0_428, %c0_429] : memref<19x19x32xf32, #tpu.memory_space<vmem>>, vector<1x19x32xf32>
    %562 = vector.shape_cast %561 : vector<1x19x32xf32> to vector<19x32xf32>
    %563 = arith.addf %560, %562 : vector<19x32xf32>
    %c1_430 = arith.constant 1 : index
    %c0_431 = arith.constant 0 : index
    %c0_432 = arith.constant 0 : index
    %564 = vector.load %arg14[%c1_430, %c0_431, %c0_432] : memref<19x19x32xf32, #tpu.memory_space<vmem>>, vector<1x19x32xf32>
    %565 = vector.shape_cast %564 : vector<1x19x32xf32> to vector<19x32xf32>
    %566 = arith.addf %563, %565 : vector<19x32xf32>
    %c2_433 = arith.constant 2 : index
    %c0_434 = arith.constant 0 : index
    %c0_435 = arith.constant 0 : index
    %567 = vector.load %arg14[%c2_433, %c0_434, %c0_435] : memref<19x19x32xf32, #tpu.memory_space<vmem>>, vector<1x19x32xf32>
    %568 = vector.shape_cast %567 : vector<1x19x32xf32> to vector<19x32xf32>
    %569 = arith.addf %566, %568 : vector<19x32xf32>
    %cst_436 = arith.constant dense<0.000000e+00> : vector<9x32xf32>
    %570 = tpu.matmul %108, %569, %cst_436 {dimension_numbers = #tpu.dot_dimension_numbers<[1], [0], [0], [1], [0, 0, 1, 1], [], []>} : vector<9x19xf32>, vector<19x32xf32>, vector<9x32xf32> -> vector<9x32xf32>
    %c0_437 = arith.constant 0 : index
    %c0_438 = arith.constant 0 : index
    %571 = vector.load %arg15[%c0_437, %c0_438] : memref<128x32xf32, #tpu.memory_space<vmem>>, vector<9x32xf32>
    tpu.vector_store %arg15[%c0_437, %c0_438], %570 {strides = array<i32>} : memref<128x32xf32, #tpu.memory_space<vmem>>, vector<9x32xf32>,
    %cst_439 = arith.constant 0.000000e+00 : f32
    %572 = vector.broadcast %cst_439 : f32 to vector<19x32xf32>
    %c2_440 = arith.constant 2 : index
    %c0_441 = arith.constant 0 : index
    %c0_442 = arith.constant 0 : index
    %573 = vector.load %arg14[%c2_440, %c0_441, %c0_442] : memref<19x19x32xf32, #tpu.memory_space<vmem>>, vector<1x19x32xf32>
    %574 = vector.shape_cast %573 : vector<1x19x32xf32> to vector<19x32xf32>
    %575 = arith.addf %572, %574 : vector<19x32xf32>
    %c3_443 = arith.constant 3 : index
    %c0_444 = arith.constant 0 : index
    %c0_445 = arith.constant 0 : index
    %576 = vector.load %arg14[%c3_443, %c0_444, %c0_445] : memref<19x19x32xf32, #tpu.memory_space<vmem>>, vector<1x19x32xf32>
    %577 = vector.shape_cast %576 : vector<1x19x32xf32> to vector<19x32xf32>
    %578 = arith.addf %575, %577 : vector<19x32xf32>
    %c4_446 = arith.constant 4 : index
    %c0_447 = arith.constant 0 : index
    %c0_448 = arith.constant 0 : index
    %579 = vector.load %arg14[%c4_446, %c0_447, %c0_448] : memref<19x19x32xf32, #tpu.memory_space<vmem>>, vector<1x19x32xf32>
    %580 = vector.shape_cast %579 : vector<1x19x32xf32> to vector<19x32xf32>
    %581 = arith.addf %578, %580 : vector<19x32xf32>
    %cst_449 = arith.constant dense<0.000000e+00> : vector<9x32xf32>
    %582 = tpu.matmul %108, %581, %cst_449 {dimension_numbers = #tpu.dot_dimension_numbers<[1], [0], [0], [1], [0, 0, 1, 1], [], []>} : vector<9x19xf32>, vector<19x32xf32>, vector<9x32xf32> -> vector<9x32xf32>
    %c9_450 = arith.constant 9 : index
    %c0_451 = arith.constant 0 : index
    %583 = vector.load %arg15[%c9_450, %c0_451] : memref<128x32xf32, #tpu.memory_space<vmem>>, vector<9x32xf32>
    tpu.vector_store %arg15[%c9_450, %c0_451], %582 {strides = array<i32>} : memref<128x32xf32, #tpu.memory_space<vmem>>, vector<9x32xf32>,
    %cst_452 = arith.constant 0.000000e+00 : f32
    %584 = vector.broadcast %cst_452 : f32 to vector<19x32xf32>
    %c4_453 = arith.constant 4 : index
    %c0_454 = arith.constant 0 : index
    %c0_455 = arith.constant 0 : index
    %585 = vector.load %arg14[%c4_453, %c0_454, %c0_455] : memref<19x19x32xf32, #tpu.memory_space<vmem>>, vector<1x19x32xf32>
    %586 = vector.shape_cast %585 : vector<1x19x32xf32> to vector<19x32xf32>
    %587 = arith.addf %584, %586 : vector<19x32xf32>
    %c5_456 = arith.constant 5 : index
    %c0_457 = arith.constant 0 : index
    %c0_458 = arith.constant 0 : index
    %588 = vector.load %arg14[%c5_456, %c0_457, %c0_458] : memref<19x19x32xf32, #tpu.memory_space<vmem>>, vector<1x19x32xf32>
    %589 = vector.shape_cast %588 : vector<1x19x32xf32> to vector<19x32xf32>
    %590 = arith.addf %587, %589 : vector<19x32xf32>
    %c6_459 = arith.constant 6 : index
    %c0_460 = arith.constant 0 : index
    %c0_461 = arith.constant 0 : index
    %591 = vector.load %arg14[%c6_459, %c0_460, %c0_461] : memref<19x19x32xf32, #tpu.memory_space<vmem>>, vector<1x19x32xf32>
    %592 = vector.shape_cast %591 : vector<1x19x32xf32> to vector<19x32xf32>
    %593 = arith.addf %590, %592 : vector<19x32xf32>
    %cst_462 = arith.constant dense<0.000000e+00> : vector<9x32xf32>
    %594 = tpu.matmul %108, %593, %cst_462 {dimension_numbers = #tpu.dot_dimension_numbers<[1], [0], [0], [1], [0, 0, 1, 1], [], []>} : vector<9x19xf32>, vector<19x32xf32>, vector<9x32xf32> -> vector<9x32xf32>
    %c18 = arith.constant 18 : index
    %c0_463 = arith.constant 0 : index
    %595 = vector.load %arg15[%c18, %c0_463] : memref<128x32xf32, #tpu.memory_space<vmem>>, vector<9x32xf32>
    tpu.vector_store %arg15[%c18, %c0_463], %594 {strides = array<i32>} : memref<128x32xf32, #tpu.memory_space<vmem>>, vector<9x32xf32>,
    %cst_464 = arith.constant 0.000000e+00 : f32
    %596 = vector.broadcast %cst_464 : f32 to vector<19x32xf32>
    %c6_465 = arith.constant 6 : index
    %c0_466 = arith.constant 0 : index
    %c0_467 = arith.constant 0 : index
    %597 = vector.load %arg14[%c6_465, %c0_466, %c0_467] : memref<19x19x32xf32, #tpu.memory_space<vmem>>, vector<1x19x32xf32>
    %598 = vector.shape_cast %597 : vector<1x19x32xf32> to vector<19x32xf32>
    %599 = arith.addf %596, %598 : vector<19x32xf32>
    %c7_468 = arith.constant 7 : index
    %c0_469 = arith.constant 0 : index
    %c0_470 = arith.constant 0 : index
    %600 = vector.load %arg14[%c7_468, %c0_469, %c0_470] : memref<19x19x32xf32, #tpu.memory_space<vmem>>, vector<1x19x32xf32>
    %601 = vector.shape_cast %600 : vector<1x19x32xf32> to vector<19x32xf32>
    %602 = arith.addf %599, %601 : vector<19x32xf32>
    %c8_471 = arith.constant 8 : index
    %c0_472 = arith.constant 0 : index
    %c0_473 = arith.constant 0 : index
    %603 = vector.load %arg14[%c8_471, %c0_472, %c0_473] : memref<19x19x32xf32, #tpu.memory_space<vmem>>, vector<1x19x32xf32>
    %604 = vector.shape_cast %603 : vector<1x19x32xf32> to vector<19x32xf32>
    %605 = arith.addf %602, %604 : vector<19x32xf32>
    %cst_474 = arith.constant dense<0.000000e+00> : vector<9x32xf32>
    %606 = tpu.matmul %108, %605, %cst_474 {dimension_numbers = #tpu.dot_dimension_numbers<[1], [0], [0], [1], [0, 0, 1, 1], [], []>} : vector<9x19xf32>, vector<19x32xf32>, vector<9x32xf32> -> vector<9x32xf32>
    %c27 = arith.constant 27 : index
    %c0_475 = arith.constant 0 : index
    %607 = vector.load %arg15[%c27, %c0_475] : memref<128x32xf32, #tpu.memory_space<vmem>>, vector<9x32xf32>
    tpu.vector_store %arg15[%c27, %c0_475], %606 {strides = array<i32>} : memref<128x32xf32, #tpu.memory_space<vmem>>, vector<9x32xf32>,
    %cst_476 = arith.constant 0.000000e+00 : f32
    %608 = vector.broadcast %cst_476 : f32 to vector<19x32xf32>
    %c8_477 = arith.constant 8 : index
    %c0_478 = arith.constant 0 : index
    %c0_479 = arith.constant 0 : index
    %609 = vector.load %arg14[%c8_477, %c0_478, %c0_479] : memref<19x19x32xf32, #tpu.memory_space<vmem>>, vector<1x19x32xf32>
    %610 = vector.shape_cast %609 : vector<1x19x32xf32> to vector<19x32xf32>
    %611 = arith.addf %608, %610 : vector<19x32xf32>
    %c9_480 = arith.constant 9 : index
    %c0_481 = arith.constant 0 : index
    %c0_482 = arith.constant 0 : index
    %612 = vector.load %arg14[%c9_480, %c0_481, %c0_482] : memref<19x19x32xf32, #tpu.memory_space<vmem>>, vector<1x19x32xf32>
    %613 = vector.shape_cast %612 : vector<1x19x32xf32> to vector<19x32xf32>
    %614 = arith.addf %611, %613 : vector<19x32xf32>
    %c10_483 = arith.constant 10 : index
    %c0_484 = arith.constant 0 : index
    %c0_485 = arith.constant 0 : index
    %615 = vector.load %arg14[%c10_483, %c0_484, %c0_485] : memref<19x19x32xf32, #tpu.memory_space<vmem>>, vector<1x19x32xf32>
    %616 = vector.shape_cast %615 : vector<1x19x32xf32> to vector<19x32xf32>
    %617 = arith.addf %614, %616 : vector<19x32xf32>
    %cst_486 = arith.constant dense<0.000000e+00> : vector<9x32xf32>
    %618 = tpu.matmul %108, %617, %cst_486 {dimension_numbers = #tpu.dot_dimension_numbers<[1], [0], [0], [1], [0, 0, 1, 1], [], []>} : vector<9x19xf32>, vector<19x32xf32>, vector<9x32xf32> -> vector<9x32xf32>
    %c36 = arith.constant 36 : index
    %c0_487 = arith.constant 0 : index
    %619 = vector.load %arg15[%c36, %c0_487] : memref<128x32xf32, #tpu.memory_space<vmem>>, vector<9x32xf32>
    tpu.vector_store %arg15[%c36, %c0_487], %618 {strides = array<i32>} : memref<128x32xf32, #tpu.memory_space<vmem>>, vector<9x32xf32>,
    %cst_488 = arith.constant 0.000000e+00 : f32
    %620 = vector.broadcast %cst_488 : f32 to vector<19x32xf32>
    %c10_489 = arith.constant 10 : index
    %c0_490 = arith.constant 0 : index
    %c0_491 = arith.constant 0 : index
    %621 = vector.load %arg14[%c10_489, %c0_490, %c0_491] : memref<19x19x32xf32, #tpu.memory_space<vmem>>, vector<1x19x32xf32>
    %622 = vector.shape_cast %621 : vector<1x19x32xf32> to vector<19x32xf32>
    %623 = arith.addf %620, %622 : vector<19x32xf32>
    %c11_492 = arith.constant 11 : index
    %c0_493 = arith.constant 0 : index
    %c0_494 = arith.constant 0 : index
    %624 = vector.load %arg14[%c11_492, %c0_493, %c0_494] : memref<19x19x32xf32, #tpu.memory_space<vmem>>, vector<1x19x32xf32>
    %625 = vector.shape_cast %624 : vector<1x19x32xf32> to vector<19x32xf32>
    %626 = arith.addf %623, %625 : vector<19x32xf32>
    %c12_495 = arith.constant 12 : index
    %c0_496 = arith.constant 0 : index
    %c0_497 = arith.constant 0 : index
    %627 = vector.load %arg14[%c12_495, %c0_496, %c0_497] : memref<19x19x32xf32, #tpu.memory_space<vmem>>, vector<1x19x32xf32>
    %628 = vector.shape_cast %627 : vector<1x19x32xf32> to vector<19x32xf32>
    %629 = arith.addf %626, %628 : vector<19x32xf32>
    %cst_498 = arith.constant dense<0.000000e+00> : vector<9x32xf32>
    %630 = tpu.matmul %108, %629, %cst_498 {dimension_numbers = #tpu.dot_dimension_numbers<[1], [0], [0], [1], [0, 0, 1, 1], [], []>} : vector<9x19xf32>, vector<19x32xf32>, vector<9x32xf32> -> vector<9x32xf32>
    %c45 = arith.constant 45 : index
    %c0_499 = arith.constant 0 : index
    %631 = vector.load %arg15[%c45, %c0_499] : memref<128x32xf32, #tpu.memory_space<vmem>>, vector<9x32xf32>
    tpu.vector_store %arg15[%c45, %c0_499], %630 {strides = array<i32>} : memref<128x32xf32, #tpu.memory_space<vmem>>, vector<9x32xf32>,
    %cst_500 = arith.constant 0.000000e+00 : f32
    %632 = vector.broadcast %cst_500 : f32 to vector<19x32xf32>
    %c12_501 = arith.constant 12 : index
    %c0_502 = arith.constant 0 : index
    %c0_503 = arith.constant 0 : index
    %633 = vector.load %arg14[%c12_501, %c0_502, %c0_503] : memref<19x19x32xf32, #tpu.memory_space<vmem>>, vector<1x19x32xf32>
    %634 = vector.shape_cast %633 : vector<1x19x32xf32> to vector<19x32xf32>
    %635 = arith.addf %632, %634 : vector<19x32xf32>
    %c13_504 = arith.constant 13 : index
    %c0_505 = arith.constant 0 : index
    %c0_506 = arith.constant 0 : index
    %636 = vector.load %arg14[%c13_504, %c0_505, %c0_506] : memref<19x19x32xf32, #tpu.memory_space<vmem>>, vector<1x19x32xf32>
    %637 = vector.shape_cast %636 : vector<1x19x32xf32> to vector<19x32xf32>
    %638 = arith.addf %635, %637 : vector<19x32xf32>
    %c14_507 = arith.constant 14 : index
    %c0_508 = arith.constant 0 : index
    %c0_509 = arith.constant 0 : index
    %639 = vector.load %arg14[%c14_507, %c0_508, %c0_509] : memref<19x19x32xf32, #tpu.memory_space<vmem>>, vector<1x19x32xf32>
    %640 = vector.shape_cast %639 : vector<1x19x32xf32> to vector<19x32xf32>
    %641 = arith.addf %638, %640 : vector<19x32xf32>
    %cst_510 = arith.constant dense<0.000000e+00> : vector<9x32xf32>
    %642 = tpu.matmul %108, %641, %cst_510 {dimension_numbers = #tpu.dot_dimension_numbers<[1], [0], [0], [1], [0, 0, 1, 1], [], []>} : vector<9x19xf32>, vector<19x32xf32>, vector<9x32xf32> -> vector<9x32xf32>
    %c54 = arith.constant 54 : index
    %c0_511 = arith.constant 0 : index
    %643 = vector.load %arg15[%c54, %c0_511] : memref<128x32xf32, #tpu.memory_space<vmem>>, vector<9x32xf32>
    tpu.vector_store %arg15[%c54, %c0_511], %642 {strides = array<i32>} : memref<128x32xf32, #tpu.memory_space<vmem>>, vector<9x32xf32>,
    %cst_512 = arith.constant 0.000000e+00 : f32
    %644 = vector.broadcast %cst_512 : f32 to vector<19x32xf32>
    %c14_513 = arith.constant 14 : index
    %c0_514 = arith.constant 0 : index
    %c0_515 = arith.constant 0 : index
    %645 = vector.load %arg14[%c14_513, %c0_514, %c0_515] : memref<19x19x32xf32, #tpu.memory_space<vmem>>, vector<1x19x32xf32>
    %646 = vector.shape_cast %645 : vector<1x19x32xf32> to vector<19x32xf32>
    %647 = arith.addf %644, %646 : vector<19x32xf32>
    %c15_516 = arith.constant 15 : index
    %c0_517 = arith.constant 0 : index
    %c0_518 = arith.constant 0 : index
    %648 = vector.load %arg14[%c15_516, %c0_517, %c0_518] : memref<19x19x32xf32, #tpu.memory_space<vmem>>, vector<1x19x32xf32>
    %649 = vector.shape_cast %648 : vector<1x19x32xf32> to vector<19x32xf32>
    %650 = arith.addf %647, %649 : vector<19x32xf32>
    %c16_519 = arith.constant 16 : index
    %c0_520 = arith.constant 0 : index
    %c0_521 = arith.constant 0 : index
    %651 = vector.load %arg14[%c16_519, %c0_520, %c0_521] : memref<19x19x32xf32, #tpu.memory_space<vmem>>, vector<1x19x32xf32>
    %652 = vector.shape_cast %651 : vector<1x19x32xf32> to vector<19x32xf32>
    %653 = arith.addf %650, %652 : vector<19x32xf32>
    %cst_522 = arith.constant dense<0.000000e+00> : vector<9x32xf32>
    %654 = tpu.matmul %108, %653, %cst_522 {dimension_numbers = #tpu.dot_dimension_numbers<[1], [0], [0], [1], [0, 0, 1, 1], [], []>} : vector<9x19xf32>, vector<19x32xf32>, vector<9x32xf32> -> vector<9x32xf32>
    %c63 = arith.constant 63 : index
    %c0_523 = arith.constant 0 : index
    %655 = vector.load %arg15[%c63, %c0_523] : memref<128x32xf32, #tpu.memory_space<vmem>>, vector<9x32xf32>
    tpu.vector_store %arg15[%c63, %c0_523], %654 {strides = array<i32>} : memref<128x32xf32, #tpu.memory_space<vmem>>, vector<9x32xf32>,
    %cst_524 = arith.constant 0.000000e+00 : f32
    %656 = vector.broadcast %cst_524 : f32 to vector<19x32xf32>
    %c16_525 = arith.constant 16 : index
    %c0_526 = arith.constant 0 : index
    %c0_527 = arith.constant 0 : index
    %657 = vector.load %arg14[%c16_525, %c0_526, %c0_527] : memref<19x19x32xf32, #tpu.memory_space<vmem>>, vector<1x19x32xf32>
    %658 = vector.shape_cast %657 : vector<1x19x32xf32> to vector<19x32xf32>
    %659 = arith.addf %656, %658 : vector<19x32xf32>
    %c17 = arith.constant 17 : index
    %c0_528 = arith.constant 0 : index
    %c0_529 = arith.constant 0 : index
    %660 = vector.load %arg14[%c17, %c0_528, %c0_529] : memref<19x19x32xf32, #tpu.memory_space<vmem>>, vector<1x19x32xf32>
    %661 = vector.shape_cast %660 : vector<1x19x32xf32> to vector<19x32xf32>
    %662 = arith.addf %659, %661 : vector<19x32xf32>
    %c18_530 = arith.constant 18 : index
    %c0_531 = arith.constant 0 : index
    %c0_532 = arith.constant 0 : index
    %663 = vector.load %arg14[%c18_530, %c0_531, %c0_532] : memref<19x19x32xf32, #tpu.memory_space<vmem>>, vector<1x19x32xf32>
    %664 = vector.shape_cast %663 : vector<1x19x32xf32> to vector<19x32xf32>
    %665 = arith.addf %662, %664 : vector<19x32xf32>
    %cst_533 = arith.constant dense<0.000000e+00> : vector<9x32xf32>
    %666 = tpu.matmul %108, %665, %cst_533 {dimension_numbers = #tpu.dot_dimension_numbers<[1], [0], [0], [1], [0, 0, 1, 1], [], []>} : vector<9x19xf32>, vector<19x32xf32>, vector<9x32xf32> -> vector<9x32xf32>
    %c72 = arith.constant 72 : index
    %c0_534 = arith.constant 0 : index
    %667 = vector.load %arg15[%c72, %c0_534] : memref<128x32xf32, #tpu.memory_space<vmem>>, vector<9x32xf32>
    tpu.vector_store %arg15[%c72, %c0_534], %666 {strides = array<i32>} : memref<128x32xf32, #tpu.memory_space<vmem>>, vector<9x32xf32>,
    %c0_535 = arith.constant 0 : index
    %c0_536 = arith.constant 0 : index
    %668 = vector.load %arg15[%c0_535, %c0_536] : memref<128x32xf32, #tpu.memory_space<vmem>>, vector<128x32xf32>
    %c0_537 = arith.constant 0 : index
    %c0_538 = arith.constant 0 : index
    %669 = vector.load %arg5[%c0_537, %c0_538] : memref<128x32xf32, #tpu.memory_space<vmem>>, vector<128x32xf32>
    %670 = arith.mulf %668, %669 : vector<128x32xf32>
    %671 = arith.truncf %557 : vector<64x32xf32> to vector<64x32xbf16>
    %c0_539 = arith.constant 0 : index
    %c0_540 = arith.constant 0 : index
    %672 = vector.load %arg6[%c0_539, %c0_540] : memref<32x32xbf16, #tpu.memory_space<vmem>>, vector<32x32xbf16>
    %cst_541 = arith.constant dense<0.000000e+00> : vector<64x32xf32>
    %673 = tpu.matmul %671, %672, %cst_541 {dimension_numbers = #tpu.dot_dimension_numbers<[1], [0], [0], [1], [0, 0, 1, 1], [], []>} : vector<64x32xbf16>, vector<32x32xbf16>, vector<64x32xf32> -> vector<64x32xf32>
    %c0_542 = arith.constant 0 : index
    %c0_543 = arith.constant 0 : index
    %674 = vector.load %arg7[%c0_542, %c0_543] : memref<1x32xf32, #tpu.memory_space<vmem>>, vector<1x32xf32>
    %675 = vector.broadcast %674 : vector<1x32xf32> to vector<64x32xf32>
    %676 = arith.addf %673, %675 : vector<64x32xf32>
    %677 = arith.truncf %670 : vector<128x32xf32> to vector<128x32xbf16>
    %c0_544 = arith.constant 0 : index
    %c0_545 = arith.constant 0 : index
    %678 = vector.load %arg8[%c0_544, %c0_545] : memref<32x32xbf16, #tpu.memory_space<vmem>>, vector<32x32xbf16>
    %cst_546 = arith.constant dense<0.000000e+00> : vector<32x128xf32>
    %679 = tpu.matmul %678, %677, %cst_546 {dimension_numbers = #tpu.dot_dimension_numbers<[1], [1], [0], [0], [0, 0, 1, 0], [], []>} : vector<32x32xbf16>, vector<128x32xbf16>, vector<32x128xf32> -> vector<32x128xf32>
    %c0_547 = arith.constant 0 : index
    %c0_548 = arith.constant 0 : index
    %680 = vector.load %arg9[%c0_547, %c0_548] : memref<32x1xf32, #tpu.memory_space<vmem>>, vector<32x1xf32>
    %681 = vector.broadcast %680 : vector<32x1xf32> to vector<32x128xf32>
    %682 = arith.addf %679, %681 : vector<32x128xf32>
    %c0_549 = arith.constant 0 : index
    %c0_550 = arith.constant 0 : index
    %683 = vector.load %arg10[%c0_549, %c0_550] : memref<32x32xbf16, #tpu.memory_space<vmem>>, vector<32x32xbf16>
    %cst_551 = arith.constant dense<0.000000e+00> : vector<32x128xf32>
    %684 = tpu.matmul %683, %677, %cst_551 {dimension_numbers = #tpu.dot_dimension_numbers<[1], [1], [0], [0], [0, 0, 1, 0], [], []>} : vector<32x32xbf16>, vector<128x32xbf16>, vector<32x128xf32> -> vector<32x128xf32>
    %c0_552 = arith.constant 0 : index
    %c0_553 = arith.constant 0 : index
    %685 = vector.load %arg11[%c0_552, %c0_553] : memref<32x1xf32, #tpu.memory_space<vmem>>, vector<32x1xf32>
    %686 = vector.broadcast %685 : vector<32x1xf32> to vector<32x128xf32>
    %687 = arith.addf %684, %686 : vector<32x128xf32>
    %c0_554 = arith.constant 0 : index
    %c0_555 = arith.constant 0 : index
    %c0_556 = arith.constant 0 : index
    %688 = vector.load %arg13[%c0_554, %c0_555, %c0_556] : memref<1x32x128xf32, #tpu.memory_space<vmem>>, vector<1x32x128xf32>
    %689 = vector.shape_cast %688 : vector<1x32x128xf32> to vector<32x128xf32>
    %690 = vector.shape_cast %687 : vector<32x128xf32> to vector<1x32x128xf32>
    tpu.vector_store %arg13[%c0_554, %c0_555, %c0_556], %690 {strides = array<i32>} : memref<1x32x128xf32, #tpu.memory_space<vmem>>, vector<1x32x128xf32>,
    %691 = tpu.iota {dimensions = array<i32: 0>} : vector<32x1xi32>
    %692 = arith.truncf %682 : vector<32x128xf32> to vector<32x128xbf16>
    %c0_i32_557 = arith.constant 0 : i32
    %693 = vector.broadcast %c0_i32_557 : i32 to vector<32x1xi32>
    %694 = arith.cmpi sge, %691, %693 : vector<32x1xi32>
    %c8_i32 = arith.constant 8 : i32
    %695 = vector.broadcast %c8_i32 : i32 to vector<32x1xi32>
    %696 = arith.cmpi slt, %691, %695 : vector<32x1xi32>
    %697 = arith.andi %694, %696 : vector<32x1xi1>
    %cst_558 = arith.constant 0.000000e+00 : bf16
    %698 = vector.broadcast %cst_558 : bf16 to vector<32x128xbf16>
    %699 = vector.shape_cast %697 : vector<32x1xi1> to vector<32x1xi1>
    %700 = vector.broadcast %699 : vector<32x1xi1> to vector<32x128xi1>
    %701 = arith.select %700, %692, %698 : vector<32x128xi1>, vector<32x128xbf16>
    %c8_i32_559 = arith.constant 8 : i32
    %702 = vector.broadcast %c8_i32_559 : i32 to vector<32x1xi32>
    %703 = arith.cmpi sge, %691, %702 : vector<32x1xi32>
    %c16_i32 = arith.constant 16 : i32
    %704 = vector.broadcast %c16_i32 : i32 to vector<32x1xi32>
    %705 = arith.cmpi slt, %691, %704 : vector<32x1xi32>
    %706 = arith.andi %703, %705 : vector<32x1xi1>
    %cst_560 = arith.constant 0.000000e+00 : bf16
    %707 = vector.broadcast %cst_560 : bf16 to vector<32x128xbf16>
    %708 = vector.shape_cast %706 : vector<32x1xi1> to vector<32x1xi1>
    %709 = vector.broadcast %708 : vector<32x1xi1> to vector<32x128xi1>
    %710 = arith.select %709, %692, %707 : vector<32x128xi1>, vector<32x128xbf16>
    %c16_i32_561 = arith.constant 16 : i32
    %711 = vector.broadcast %c16_i32_561 : i32 to vector<32x1xi32>
    %712 = arith.cmpi sge, %691, %711 : vector<32x1xi32>
    %c24_i32 = arith.constant 24 : i32
    %713 = vector.broadcast %c24_i32 : i32 to vector<32x1xi32>
    %714 = arith.cmpi slt, %691, %713 : vector<32x1xi32>
    %715 = arith.andi %712, %714 : vector<32x1xi1>
    %cst_562 = arith.constant 0.000000e+00 : bf16
    %716 = vector.broadcast %cst_562 : bf16 to vector<32x128xbf16>
    %717 = vector.shape_cast %715 : vector<32x1xi1> to vector<32x1xi1>
    %718 = vector.broadcast %717 : vector<32x1xi1> to vector<32x128xi1>
    %719 = arith.select %718, %692, %716 : vector<32x128xi1>, vector<32x128xbf16>
    %c24_i32_563 = arith.constant 24 : i32
    %720 = vector.broadcast %c24_i32_563 : i32 to vector<32x1xi32>
    %721 = arith.cmpi sge, %691, %720 : vector<32x1xi32>
    %c32_i32 = arith.constant 32 : i32
    %722 = vector.broadcast %c32_i32 : i32 to vector<32x1xi32>
    %723 = arith.cmpi slt, %691, %722 : vector<32x1xi32>
    %724 = arith.andi %721, %723 : vector<32x1xi1>
    %cst_564 = arith.constant 0.000000e+00 : bf16
    %725 = vector.broadcast %cst_564 : bf16 to vector<32x128xbf16>
    %726 = vector.shape_cast %724 : vector<32x1xi1> to vector<32x1xi1>
    %727 = vector.broadcast %726 : vector<32x1xi1> to vector<32x128xi1>
    %728 = arith.select %727, %692, %725 : vector<32x128xi1>, vector<32x128xbf16>
    %729 = tpu.concatenate %701, %710, %719, %728 in 1 : vector<32x128xbf16>, vector<32x128xbf16>, vector<32x128xbf16>, vector<32x128xbf16> -> vector<32x512xbf16>
    %730 = arith.truncf %676 : vector<64x32xf32> to vector<64x32xbf16>
    %cst_565 = arith.constant dense<0.000000e+00> : vector<64x512xf32>
    %731 = tpu.matmul %730, %729, %cst_565 {dimension_numbers = #tpu.dot_dimension_numbers<[1], [0], [0], [1], [0, 0, 1, 1], [], []>} : vector<64x32xbf16>, vector<32x512xbf16>, vector<64x512xf32> -> vector<64x512xf32>
    %c0_566 = arith.constant 0 : index
    %c0_567 = arith.constant 0 : index
    %c0_568 = arith.constant 0 : index
    %732 = vector.load %arg12[%c0_566, %c0_567, %c0_568] : memref<1x64x512xf32, #tpu.memory_space<vmem>>, vector<1x64x512xf32>
    %733 = vector.shape_cast %732 : vector<1x64x512xf32> to vector<64x512xf32>
    %734 = vector.shape_cast %731 : vector<64x512xf32> to vector<1x64x512xf32>
    tpu.vector_store %arg12[%c0_566, %c0_567, %c0_568], %734 {strides = array<i32>} : memref<1x64x512xf32, #tpu.memory_space<vmem>>, vector<1x64x512xf32>,
    return
  }
  func.func @transform_0(%arg0: i32) -> (i32, i32, i32) {
    %c0_i32 = arith.constant 0 : i32
    %c0_i32_0 = arith.constant 0 : i32
    %c0_i32_1 = arith.constant 0 : i32
    return %arg0, %c0_i32, %c0_i32_0 : i32, i32, i32
  }
  func.func @transform_1(%arg0: i32) -> (i32, i32) {
    %c0_i32 = arith.constant 0 : i32
    %c0_i32_0 = arith.constant 0 : i32
    %c0_i32_1 = arith.constant 0 : i32
    return %c0_i32, %c0_i32_0 : i32, i32
  }
  func.func @transform_2(%arg0: i32) -> (i32, i32) {
    %c0_i32 = arith.constant 0 : i32
    %c0_i32_0 = arith.constant 0 : i32
    %c0_i32_1 = arith.constant 0 : i32
    return %c0_i32, %c0_i32_0 : i32, i32
  }
  func.func @transform_3(%arg0: i32) -> (i32, i32) {
    %c0_i32 = arith.constant 0 : i32
    %c0_i32_0 = arith.constant 0 : i32
    %c0_i32_1 = arith.constant 0 : i32
    return %c0_i32, %c0_i32_0 : i32, i32
  }
  func.func @transform_4(%arg0: i32) -> (i32, i32) {
    %c0_i32 = arith.constant 0 : i32
    %c0_i32_0 = arith.constant 0 : i32
    %c0_i32_1 = arith.constant 0 : i32
    return %c0_i32, %c0_i32_0 : i32, i32
  }
  func.func @transform_5(%arg0: i32) -> (i32, i32) {
    %c0_i32 = arith.constant 0 : i32
    %c0_i32_0 = arith.constant 0 : i32
    %c0_i32_1 = arith.constant 0 : i32
    return %c0_i32, %c0_i32_0 : i32, i32
  }
  func.func @transform_6(%arg0: i32) -> (i32, i32) {
    %c0_i32 = arith.constant 0 : i32
    %c0_i32_0 = arith.constant 0 : i32
    %c0_i32_1 = arith.constant 0 : i32
    return %c0_i32, %c0_i32_0 : i32, i32
  }
  func.func @transform_7(%arg0: i32) -> (i32, i32) {
    %c0_i32 = arith.constant 0 : i32
    %c0_i32_0 = arith.constant 0 : i32
    %c0_i32_1 = arith.constant 0 : i32
    return %c0_i32, %c0_i32_0 : i32, i32
  }
  func.func @transform_8(%arg0: i32) -> (i32, i32) {
    %c0_i32 = arith.constant 0 : i32
    %c0_i32_0 = arith.constant 0 : i32
    %c0_i32_1 = arith.constant 0 : i32
    return %c0_i32, %c0_i32_0 : i32, i32
  }
  func.func @transform_9(%arg0: i32) -> (i32, i32) {
    %c0_i32 = arith.constant 0 : i32
    %c0_i32_0 = arith.constant 0 : i32
    %c0_i32_1 = arith.constant 0 : i32
    return %c0_i32, %c0_i32_0 : i32, i32
  }
  func.func @transform_10(%arg0: i32) -> (i32, i32) {
    %c0_i32 = arith.constant 0 : i32
    %c0_i32_0 = arith.constant 0 : i32
    %c0_i32_1 = arith.constant 0 : i32
    return %c0_i32, %c0_i32_0 : i32, i32
  }
  func.func @transform_11(%arg0: i32) -> (i32, i32, i32) {
    %c0_i32 = arith.constant 0 : i32
    %c0_i32_0 = arith.constant 0 : i32
    %c0_i32_1 = arith.constant 0 : i32
    return %arg0, %c0_i32, %c0_i32_0 : i32, i32, i32
  }
  func.func @transform_12(%arg0: i32) -> (i32, i32, i32) {
    %c0_i32 = arith.constant 0 : i32
    %c0_i32_0 = arith.constant 0 : i32
    %c0_i32_1 = arith.constant 0 : i32
    return %arg0, %c0_i32, %c0_i32_0 : i32, i32, i32
  }
}

</mosaic_0001>

<llo_original>
// kernel: tpu_custom_call.1
$region0: #{tpu_custom_call.1}
  #allocation0 [shape = 'u32[]', space=smem, size = 0x4, offset = 0x4, fixed_abs, tag = 'smem constant byte address 0x4 - core index']
  #allocation1 [shape = 'u32[144,128]{1,0:T(1,128)}', space=vmem, size = 0x12000, scoped, tag = 'internal scratch']
  #allocation2 [shape = 'f32[19,19,32]{2,1,0:T(8,128)}', space=vmem, size = 0x39000, scoped, tag = 'scratch operand']
  #allocation3 [shape = 'f32[128,32]{1,0:T(8,128)}', space=vmem, size = 0x10000, scoped, tag = 'scratch operand']
  %s0 = inlined_call_operand.vmem [shape: f32[2,256,32], index: 0, kind: input, shape index: {}]
  %s1 = inlined_call_operand.vmem [shape: f32[1,32], index: 1, kind: input, shape index: {}]
  %s2 = inlined_call_operand.vmem [shape: f32[1,32], index: 2, kind: input, shape index: {}]
  %s3 = inlined_call_operand.vmem [shape: f32[9,32], index: 3, kind: input, shape index: {}]
  %s4 = inlined_call_operand.vmem [shape: f32[128,32], index: 4, kind: input, shape index: {}]
  %s5 = inlined_call_operand.vmem [shape: bf16[32,32], index: 5, kind: input, shape index: {}]
  %s6 = inlined_call_operand.vmem [shape: f32[1,32], index: 6, kind: input, shape index: {}]
  %s7 = inlined_call_operand.vmem [shape: bf16[32,32], index: 7, kind: input, shape index: {}]
  %s8 = inlined_call_operand.vmem [shape: f32[32,1], index: 8, kind: input, shape index: {}]
  %s9 = inlined_call_operand.vmem [shape: bf16[32,32], index: 9, kind: input, shape index: {}]
  %s10 = inlined_call_operand.vmem [shape: f32[32,1], index: 10, kind: input, shape index: {}]
  %s11 = inlined_call_operand.hbm [shape: f32[2,64,512], index: 11, kind: output, shape index: {0}]
  %s12 = inlined_call_operand.hbm [shape: f32[2,32,128], index: 12, kind: output, shape index: {1}]
  %13 = xla_tuple %s11, %s12
  %s14 = sld [smem:[#allocation0]]
  $region85: #{tpu_custom_call.1} parent=0
    _
  %s16 = ssub.s32 1, %s14
  %s17 = scalar_select 0, %s16, %s14
  $region1: #{tpu_custom_call.1} parent=0
    #allocation4 [shape = 'u8[262144]{0}', space=vmem, size = 0x40000, scoped, tag = 'output window, operand 0']
    #allocation5 [shape = 's32[2]{0}', space=sflag, size = 0x8, scoped, tag = 'scoped memory for tpu_custom_call.1']
    #allocation6 [shape = 'u8[32768]{0}', space=vmem, size = 0x8000, scoped, tag = 'output window, operand 1']
    #allocation7 [shape = 's32[2]{0}', space=sflag, size = 0x8, scoped, tag = 'scoped memory for tpu_custom_call.1']
    %18 = vsyncpa [#allocation5], 0
    %s19 = scalar_lea.sflag [#allocation5], 1
    %20 = vsyncpa %s19, 0
    %21 = vsyncpa [#allocation7], 0
    %s22 = scalar_lea.sflag [#allocation7], 1
    %23 = vsyncpa %s22, 0
    loop: start=0, step=1, limit=4
    $region2: #{tpu_custom_call.1} parent=1 // loop_pre_header
      _
    $region3: #{tpu_custom_call.1} parent=1 // loop_header
      %s25 = sphi 0, %s29
      %p26 = scmp.ge.s32.totalorder %s25, 4
      %s35 = sphi 0, %s37
      %s38 = sphi 0, %s35
      %s39 = sphi 0, %s38
      %s55 = sphi 0, %s39
      %s59 = sphi 0, %s59
      %s61 = sphi 0, %s59
      %s62 = sphi 0, %s61
      %s76 = sphi 0, %s62
      %s80 = sphi 0, %s80
      %s82 = sphi 0, %s80
      %s83 = sphi 0, %s82
      %s97 = sphi 0, %s83
      %s101 = sphi 0, %s101
      %s103 = sphi 0, %s101
      %s104 = sphi 0, %s103
      %s118 = sphi 0, %s104
      %s122 = sphi 0, %s122
      %s124 = sphi 0, %s122
      %s125 = sphi 0, %s124
      %s139 = sphi 0, %s125
      %s143 = sphi 0, %s143
      %s145 = sphi 0, %s143
      %s146 = sphi 0, %s145
      %s160 = sphi 0, %s146
      %s164 = sphi 0, %s164
      %s166 = sphi 0, %s164
      %s167 = sphi 0, %s166
      %s181 = sphi 0, %s167
      %s185 = sphi 0, %s185
      %s187 = sphi 0, %s185
      %s188 = sphi 0, %s187
      %s202 = sphi 0, %s188
      %s206 = sphi 0, %s206
      %s208 = sphi 0, %s206
      %s209 = sphi 0, %s208
      %s223 = sphi 0, %s209
      %s227 = sphi 0, %s227
      %s229 = sphi 0, %s227
      %s230 = sphi 0, %s229
      %s244 = sphi 0, %s230
      %s248 = sphi 0, %s248
      %s250 = sphi 0, %s248
      %s251 = sphi 0, %s250
      %s265 = sphi 0, %s251
      %s271 = sphi 0, %s273
      %s274 = sphi 0, %s271
      %s275 = sphi 0, %s274
      %s291 = sphi 0, %s275
      %s297 = sphi 0, %s299
      %s300 = sphi 0, %s297
      %s301 = sphi 0, %s300
      %s317 = sphi 0, %s301
    $region4: #{tpu_custom_call.1} parent=1 // loop_header_branch
      %28 = sbr.rel (%p26) target = $region8
    $region5: #{tpu_custom_call.1} parent=1 // loop_body
      %s30 = ssub.s32 %s25, 1
      %s31 = ssub.s32 %s25, 2
      %s32 = sadd.s32 %s25, 1
      %s33 = ssub.s32 %s25, %s32
      %p34 = scmp.eq.s32.totalorder %s33, 0
      %s36 = sadd.s32 %s35, 1
      %s37 = scalar_select %p34, %s35, %s36
      %p40 = pneg %p34
      %p41 = scmp.eq.s32.totalorder %s25, 1
      %p42 = por %p40, %p41
      %p43 = scmp.ne.s32.totalorder %s35, %s38
      %p44 = scmp.eq.s32.totalorder %s25, 0
      %p45 = por %p43, %p44
      %p46 = scmp.ne.s32.totalorder %s35, %s38
      %p47 = scmp.eq.s32.totalorder %s30, 1
      %p48 = por %p46, %p47
      %p49 = scmp.ne.s32.totalorder %s38, %s39
      %p50 = scmp.eq.s32.totalorder %s30, 0
      %p51 = por %p49, %p50
      %p52 = scmp.ne.s32.totalorder %s38, %s39
      %p53 = scmp.eq.s32.totalorder %s31, 1
      %p54 = por %p52, %p53
      %p56 = scmp.ne.s32.totalorder %s39, %s55
      %p57 = scmp.eq.s32.totalorder %s31, 0
      %p58 = por %p56, %p57
      %s60 = sadd.s32 %s59, 1
      %p63 = scmp.eq.s32.totalorder %s25, 1
      %p64 = scmp.ne.s32.totalorder %s59, %s61
      %p65 = scmp.eq.s32.totalorder %s25, 0
      %p66 = por %p64, %p65
      %p67 = scmp.ne.s32.totalorder %s59, %s61
      %p68 = scmp.eq.s32.totalorder %s30, 1
      %p69 = por %p67, %p68
      %p70 = scmp.ne.s32.totalorder %s61, %s62
      %p71 = scmp.eq.s32.totalorder %s30, 0
      %p72 = por %p70, %p71
      %p73 = scmp.ne.s32.totalorder %s61, %s62
      %p74 = scmp.eq.s32.totalorder %s31, 1
      %p75 = por %p73, %p74
      %p77 = scmp.ne.s32.totalorder %s62, %s76
      %p78 = scmp.eq.s32.totalorder %s31, 0
      %p79 = por %p77, %p78
      %s81 = sadd.s32 %s80, 1
      %p84 = scmp.eq.s32.totalorder %s25, 1
      %p85 = scmp.ne.s32.totalorder %s80, %s82
      %p86 = scmp.eq.s32.totalorder %s25, 0
      %p87 = por %p85, %p86
      %p88 = scmp.ne.s32.totalorder %s80, %s82
      %p89 = scmp.eq.s32.totalorder %s30, 1
      %p90 = por %p88, %p89
      %p91 = scmp.ne.s32.totalorder %s82, %s83
      %p92 = scmp.eq.s32.totalorder %s30, 0
      %p93 = por %p91, %p92
      %p94 = scmp.ne.s32.totalorder %s82, %s83
      %p95 = scmp.eq.s32.totalorder %s31, 1
      %p96 = por %p94, %p95
      %p98 = scmp.ne.s32.totalorder %s83, %s97
      %p99 = scmp.eq.s32.totalorder %s31, 0
      %p100 = por %p98, %p99
      %s102 = sadd.s32 %s101, 1
      %p105 = scmp.eq.s32.totalorder %s25, 1
      %p106 = scmp.ne.s32.totalorder %s101, %s103
      %p107 = scmp.eq.s32.totalorder %s25, 0
      %p108 = por %p106, %p107
      %p109 = scmp.ne.s32.totalorder %s101, %s103
      %p110 = scmp.eq.s32.totalorder %s30, 1
      %p111 = por %p109, %p110
      %p112 = scmp.ne.s32.totalorder %s103, %s104
      %p113 = scmp.eq.s32.totalorder %s30, 0
      %p114 = por %p112, %p113
      %p115 = scmp.ne.s32.totalorder %s103, %s104
      %p116 = scmp.eq.s32.totalorder %s31, 1
      %p117 = por %p115, %p116
      %p119 = scmp.ne.s32.totalorder %s104, %s118
      %p120 = scmp.eq.s32.totalorder %s31, 0
      %p121 = por %p119, %p120
      %s123 = sadd.s32 %s122, 1
      %p126 = scmp.eq.s32.totalorder %s25, 1
      %p127 = scmp.ne.s32.totalorder %s122, %s124
      %p128 = scmp.eq.s32.totalorder %s25, 0
      %p129 = por %p127, %p128
      %p130 = scmp.ne.s32.totalorder %s122, %s124
      %p131 = scmp.eq.s32.totalorder %s30, 1
      %p132 = por %p130, %p131
      %p133 = scmp.ne.s32.totalorder %s124, %s125
      %p134 = scmp.eq.s32.totalorder %s30, 0
      %p135 = por %p133, %p134
      %p136 = scmp.ne.s32.totalorder %s124, %s125
      %p137 = scmp.eq.s32.totalorder %s31, 1
      %p138 = por %p136, %p137
      %p140 = scmp.ne.s32.totalorder %s125, %s139
      %p141 = scmp.eq.s32.totalorder %s31, 0
      %p142 = por %p140, %p141
      %s144 = sadd.s32 %s143, 1
      %p147 = scmp.eq.s32.totalorder %s25, 1
      %p148 = scmp.ne.s32.totalorder %s143, %s145
      %p149 = scmp.eq.s32.totalorder %s25, 0
      %p150 = por %p148, %p149
      %p151 = scmp.ne.s32.totalorder %s143, %s145
      %p152 = scmp.eq.s32.totalorder %s30, 1
      %p153 = por %p151, %p152
      %p154 = scmp.ne.s32.totalorder %s145, %s146
      %p155 = scmp.eq.s32.totalorder %s30, 0
      %p156 = por %p154, %p155
      %p157 = scmp.ne.s32.totalorder %s145, %s146
      %p158 = scmp.eq.s32.totalorder %s31, 1
      %p159 = por %p157, %p158
      %p161 = scmp.ne.s32.totalorder %s146, %s160
      %p162 = scmp.eq.s32.totalorder %s31, 0
      %p163 = por %p161, %p162
      %s165 = sadd.s32 %s164, 1
      %p168 = scmp.eq.s32.totalorder %s25, 1
      %p169 = scmp.ne.s32.totalorder %s164, %s166
      %p170 = scmp.eq.s32.totalorder %s25, 0
      %p171 = por %p169, %p170
      %p172 = scmp.ne.s32.totalorder %s164, %s166
      %p173 = scmp.eq.s32.totalorder %s30, 1
      %p174 = por %p172, %p173
      %p175 = scmp.ne.s32.totalorder %s166, %s167
      %p176 = scmp.eq.s32.totalorder %s30, 0
      %p177 = por %p175, %p176
      %p178 = scmp.ne.s32.totalorder %s166, %s167
      %p179 = scmp.eq.s32.totalorder %s31, 1
      %p180 = por %p178, %p179
      %p182 = scmp.ne.s32.totalorder %s167, %s181
      %p183 = scmp.eq.s32.totalorder %s31, 0
      %p184 = por %p182, %p183
      %s186 = sadd.s32 %s185, 1
      %p189 = scmp.eq.s32.totalorder %s25, 1
      %p190 = scmp.ne.s32.totalorder %s185, %s187
      %p191 = scmp.eq.s32.totalorder %s25, 0
      %p192 = por %p190, %p191
      %p193 = scmp.ne.s32.totalorder %s185, %s187
      %p194 = scmp.eq.s32.totalorder %s30, 1
      %p195 = por %p193, %p194
      %p196 = scmp.ne.s32.totalorder %s187, %s188
      %p197 = scmp.eq.s32.totalorder %s30, 0
      %p198 = por %p196, %p197
      %p199 = scmp.ne.s32.totalorder %s187, %s188
      %p200 = scmp.eq.s32.totalorder %s31, 1
      %p201 = por %p199, %p200
      %p203 = scmp.ne.s32.totalorder %s188, %s202
      %p204 = scmp.eq.s32.totalorder %s31, 0
      %p205 = por %p203, %p204
      %s207 = sadd.s32 %s206, 1
      %p210 = scmp.eq.s32.totalorder %s25, 1
      %p211 = scmp.ne.s32.totalorder %s206, %s208
      %p212 = scmp.eq.s32.totalorder %s25, 0
      %p213 = por %p211, %p212
      %p214 = scmp.ne.s32.totalorder %s206, %s208
      %p215 = scmp.eq.s32.totalorder %s30, 1
      %p216 = por %p214, %p215
      %p217 = scmp.ne.s32.totalorder %s208, %s209
      %p218 = scmp.eq.s32.totalorder %s30, 0
      %p219 = por %p217, %p218
      %p220 = scmp.ne.s32.totalorder %s208, %s209
      %p221 = scmp.eq.s32.totalorder %s31, 1
      %p222 = por %p220, %p221
      %p224 = scmp.ne.s32.totalorder %s209, %s223
      %p225 = scmp.eq.s32.totalorder %s31, 0
      %p226 = por %p224, %p225
      %s228 = sadd.s32 %s227, 1
      %p231 = scmp.eq.s32.totalorder %s25, 1
      %p232 = scmp.ne.s32.totalorder %s227, %s229
      %p233 = scmp.eq.s32.totalorder %s25, 0
      %p234 = por %p232, %p233
      %p235 = scmp.ne.s32.totalorder %s227, %s229
      %p236 = scmp.eq.s32.totalorder %s30, 1
      %p237 = por %p235, %p236
      %p238 = scmp.ne.s32.totalorder %s229, %s230
      %p239 = scmp.eq.s32.totalorder %s30, 0
      %p240 = por %p238, %p239
      %p241 = scmp.ne.s32.totalorder %s229, %s230
      %p242 = scmp.eq.s32.totalorder %s31, 1
      %p243 = por %p241, %p242
      %p245 = scmp.ne.s32.totalorder %s230, %s244
      %p246 = scmp.eq.s32.totalorder %s31, 0
      %p247 = por %p245, %p246
      %s249 = sadd.s32 %s248, 1
      %p252 = scmp.eq.s32.totalorder %s25, 1
      %p253 = scmp.ne.s32.totalorder %s248, %s250
      %p254 = scmp.eq.s32.totalorder %s25, 0
      %p255 = por %p253, %p254
      %p256 = scmp.ne.s32.totalorder %s248, %s250
      %p257 = scmp.eq.s32.totalorder %s30, 1
      %p258 = por %p256, %p257
      %p259 = scmp.ne.s32.totalorder %s250, %s251
      %p260 = scmp.eq.s32.totalorder %s30, 0
      %p261 = por %p259, %p260
      %p262 = scmp.ne.s32.totalorder %s250, %s251
      %p263 = scmp.eq.s32.totalorder %s31, 1
      %p264 = por %p262, %p263
      %p266 = scmp.ne.s32.totalorder %s251, %s265
      %p267 = scmp.eq.s32.totalorder %s31, 0
      %p268 = por %p266, %p267
      %s269 = ssub.s32 %s25, %s32
      %p270 = scmp.eq.s32.totalorder %s269, 0
      %s272 = sadd.s32 %s271, 1
      %s273 = scalar_select %p270, %s271, %s272
      %p276 = pneg %p270
      %p277 = scmp.eq.s32.totalorder %s25, 1
      %p278 = por %p276, %p277
      %p279 = scmp.ne.s32.totalorder %s271, %s274
      %p280 = scmp.eq.s32.totalorder %s25, 0
      %p281 = por %p279, %p280
      %p282 = scmp.ne.s32.totalorder %s271, %s274
      %p283 = scmp.eq.s32.totalorder %s30, 1
      %p284 = por %p282, %p283
      %p285 = scmp.ne.s32.totalorder %s274, %s275
      %p286 = scmp.eq.s32.totalorder %s30, 0
      %p287 = por %p285, %p286
      %p288 = scmp.ne.s32.totalorder %s274, %s275
      %p289 = scmp.eq.s32.totalorder %s31, 1
      %p290 = por %p288, %p289
      %p292 = scmp.ne.s32.totalorder %s275, %s291
      %p293 = scmp.eq.s32.totalorder %s31, 0
      %p294 = por %p292, %p293
      %s295 = ssub.s32 %s25, %s32
      %p296 = scmp.eq.s32.totalorder %s295, 0
      %s298 = sadd.s32 %s297, 1
      %s299 = scalar_select %p296, %s297, %s298
      %p302 = pneg %p296
      %p303 = scmp.eq.s32.totalorder %s25, 1
      %p304 = por %p302, %p303
      %p305 = scmp.ne.s32.totalorder %s297, %s300
      %p306 = scmp.eq.s32.totalorder %s25, 0
      %p307 = por %p305, %p306
      %p308 = scmp.ne.s32.totalorder %s297, %s300
      %p309 = scmp.eq.s32.totalorder %s30, 1
      %p310 = por %p308, %p309
      %p311 = scmp.ne.s32.totalorder %s300, %s301
      %p312 = scmp.eq.s32.totalorder %s30, 0
      %p313 = por %p311, %p312
      %p314 = scmp.ne.s32.totalorder %s300, %s301
      %p315 = scmp.eq.s32.totalorder %s31, 1
      %p316 = por %p314, %p315
      %p318 = scmp.ne.s32.totalorder %s301, %s317
      %p319 = scmp.eq.s32.totalorder %s31, 0
      %p320 = por %p318, %p319
      %p321 = scmp.le.s32.totalorder 1, %s25
      %p322 = scmp.lt.s32.totalorder %s25, 3
      %p323 = pnand %p321, %p322
      %p324 = pneg %p323
      // Predicated region
      $region9: #{tpu_custom_call.1} parent=5 // pred_check
        _
      $region10: #{tpu_custom_call.1} parent=5 // pred_check_branch
        %326 = sbr.rel (%p323) target = $region12
      $region11: #{tpu_custom_call.1} parent=5 // pred_region
        %s327 = ssub.s32 %s25, 1
        // Predicated region
        $region13: #{tpu_custom_call.1} parent=11 // pred_check
          %p328 = pneg %p72
        $region14: #{tpu_custom_call.1} parent=11 // pred_check_branch
          %330 = sbr.rel (%p328) target = $region16
        $region15: #{tpu_custom_call.1} parent=11 // pred_region
          _
        $region16: #{tpu_custom_call.1} parent=11 // pred_fallthru
          _
        // Predicated region
        $region17: #{tpu_custom_call.1} parent=11 // pred_check
          %p331 = pneg %p93
        $region18: #{tpu_custom_call.1} parent=11 // pred_check_branch
          %333 = sbr.rel (%p331) target = $region20
        $region19: #{tpu_custom_call.1} parent=11 // pred_region
          _
        $region20: #{tpu_custom_call.1} parent=11 // pred_fallthru
          _
        // Predicated region
        $region21: #{tpu_custom_call.1} parent=11 // pred_check
          %p334 = pneg %p114
        $region22: #{tpu_custom_call.1} parent=11 // pred_check_branch
          %336 = sbr.rel (%p334) target = $region24
        $region23: #{tpu_custom_call.1} parent=11 // pred_region
          _
        $region24: #{tpu_custom_call.1} parent=11 // pred_fallthru
          _
        // Predicated region
        $region25: #{tpu_custom_call.1} parent=11 // pred_check
          %p337 = pneg %p135
        $region26: #{tpu_custom_call.1} parent=11 // pred_check_branch
          %339 = sbr.rel (%p337) target = $region28
        $region27: #{tpu_custom_call.1} parent=11 // pred_region
          _
        $region28: #{tpu_custom_call.1} parent=11 // pred_fallthru
          _
        // Predicated region
        $region29: #{tpu_custom_call.1} parent=11 // pred_check
          %p340 = pneg %p156
        $region30: #{tpu_custom_call.1} parent=11 // pred_check_branch
          %342 = sbr.rel (%p340) target = $region32
        $region31: #{tpu_custom_call.1} parent=11 // pred_region
          _
        $region32: #{tpu_custom_call.1} parent=11 // pred_fallthru
          _
        // Predicated region
        $region33: #{tpu_custom_call.1} parent=11 // pred_check
          %p343 = pneg %p177
        $region34: #{tpu_custom_call.1} parent=11 // pred_check_branch
          %345 = sbr.rel (%p343) target = $region36
        $region35: #{tpu_custom_call.1} parent=11 // pred_region
          _
        $region36: #{tpu_custom_call.1} parent=11 // pred_fallthru
          _
        // Predicated region
        $region37: #{tpu_custom_call.1} parent=11 // pred_check
          %p346 = pneg %p198
        $region38: #{tpu_custom_call.1} parent=11 // pred_check_branch
          %348 = sbr.rel (%p346) target = $region40
        $region39: #{tpu_custom_call.1} parent=11 // pred_region
          _
        $region40: #{tpu_custom_call.1} parent=11 // pred_fallthru
          _
        // Predicated region
        $region41: #{tpu_custom_call.1} parent=11 // pred_check
          %p349 = pneg %p219
        $region42: #{tpu_custom_call.1} parent=11 // pred_check_branch
          %351 = sbr.rel (%p349) target = $region44
        $region43: #{tpu_custom_call.1} parent=11 // pred_region
          _
        $region44: #{tpu_custom_call.1} parent=11 // pred_fallthru
          _
        // Predicated region
        $region45: #{tpu_custom_call.1} parent=11 // pred_check
          %p352 = pneg %p240
        $region46: #{tpu_custom_call.1} parent=11 // pred_check_branch
          %354 = sbr.rel (%p352) target = $region48
        $region47: #{tpu_custom_call.1} parent=11 // pred_region
          _
        $region48: #{tpu_custom_call.1} parent=11 // pred_fallthru
          _
        // Predicated region
        $region49: #{tpu_custom_call.1} parent=11 // pred_check
          %p355 = pneg %p261
        $region50: #{tpu_custom_call.1} parent=11 // pred_check_branch
          %357 = sbr.rel (%p355) target = $region52
        $region51: #{tpu_custom_call.1} parent=11 // pred_region
          _
        $region52: #{tpu_custom_call.1} parent=11 // pred_fallthru
          _
      $region12: #{tpu_custom_call.1} parent=5 // pred_fallthru
        _
      %p358 = scmp.lt.s32.totalorder %s25, 2
      // Predicated region
      $region53: #{tpu_custom_call.1} parent=5 // pred_check
        %p359 = pneg %p358
      $region54: #{tpu_custom_call.1} parent=5 // pred_check_branch
        %361 = sbr.rel (%p359) target = $region56
      $region55: #{tpu_custom_call.1} parent=5 // pred_region
        // Predicated region
        $region57: #{tpu_custom_call.1} parent=55 // pred_check
          %p362 = pneg %p45
        $region58: #{tpu_custom_call.1} parent=55 // pred_check_branch
          %364 = sbr.rel (%p362) target = $region60
        $region59: #{tpu_custom_call.1} parent=55 // pred_region
          %p365 = scmp.lt.s32.totalorder %s25, 1
          %s366 = scalar_select %p365, %s25, 1
          %s367 = smul.addr %s366, 32
          %s368 = smul.addr %s367, 8
          %s369 = scalar_lea.vmem %s0, %s368
        $region60: #{tpu_custom_call.1} parent=55 // pred_fallthru
          _
      $region56: #{tpu_custom_call.1} parent=5 // pred_fallthru
        _
      %p370 = scmp.le.s32.totalorder 1, %s25
      %p371 = scmp.lt.s32.totalorder %s25, 3
      %p372 = pnand %p370, %p371
      %p373 = pneg %p372
      // Predicated region
      $region61: #{tpu_custom_call.1} parent=5 // pred_check
        _
      $region62: #{tpu_custom_call.1} parent=5 // pred_check_branch
        %375 = sbr.rel (%p372) target = $region64
      $region63: #{tpu_custom_call.1} parent=5 // pred_region
        %s376 = ssub.s32 %s25, 1
        %p377 = scmp.lt.s32.totalorder %s30, 1
        %s378 = scalar_select %p377, %s30, 1
        %s379 = smul.addr %s378, 32
        %s380 = smul.addr %s379, 8
        %s381 = scalar_lea.vmem %s0, %s380
        %p382 = pneg %p51
        %p383 = pneg %p48
        %p384 = pneg %p72
        %p385 = pneg %p69
        %p386 = pneg %p93
        %p387 = pneg %p90
        %p388 = pneg %p114
        %p389 = pneg %p111
        %p390 = pneg %p135
        %p391 = pneg %p132
        %p392 = pneg %p156
        %p393 = pneg %p153
        %p394 = pneg %p177
        %p395 = pneg %p174
        %p396 = pneg %p198
        %p397 = pneg %p195
        %p398 = pneg %p219
        %p399 = pneg %p216
        %p400 = pneg %p240
        %p401 = pneg %p237
        %p402 = pneg %p261
        %p403 = pneg %p258
        %p404 = pneg %p287
        %p405 = pneg %p284
        %s406 = sand.u32 %s274, 1
        %s407 = scalar_lea.sflag [#allocation5], %s406
        %s408 = sand.u32 %s274, 1
        %s409 = smul.addr %s408, 256
        %s410 = scalar_lea.vmem [#allocation4], %s409
        %p411 = pneg %p313
        %p412 = pneg %p310
        %s413 = sand.u32 %s300, 1
        %s414 = scalar_lea.sflag [#allocation7], %s413
        %s415 = sand.u32 %s300, 1
        %s416 = smul.addr %s415, 32
        %s417 = scalar_lea.vmem [#allocation6], %s416
        %p418 = scmp.lt.s32.totalorder %s30, 1
        %s419 = scalar_select %p418, %s30, 1
        %s420 = smul.addr %s419, 32
        %s421 = smul.addr %s420, 8
        %s422 = scalar_lea.vmem %s0, %s421
        %v426 = vld [vmem:[%s422] sm:$0xff]
        %v427 = vld [vmem:[%s422 + $0x8] sm:$0xff]
        %v428 = vld [vmem:[%s422 + $0x10] sm:$0xff]
        %v429 = vld [vmem:[%s422 + $0x18] sm:$0xff]
        %v430 = vld [vmem:[%s422 + $0x20] sm:$0xff]
        %v431 = vld [vmem:[%s422 + $0x28] sm:$0xff]
        %v432 = vld [vmem:[%s422 + $0x30] sm:$0xff]
        %v433 = vld [vmem:[%s422 + $0x38] sm:$0xff]
        %v434 = vld [vmem:[%s422 + $0x40] sm:$0xff]
        %v435 = vld [vmem:[%s422 + $0x48] sm:$0xff]
        %v436 = vld [vmem:[%s422 + $0x50] sm:$0xff]
        %v437 = vld [vmem:[%s422 + $0x58] sm:$0xff]
        %v438 = vld [vmem:[%s422 + $0x60] sm:$0xff]
        %v439 = vld [vmem:[%s422 + $0x68] sm:$0xff]
        %v440 = vld [vmem:[%s422 + $0x70] sm:$0xff]
        %v441 = vld [vmem:[%s422 + $0x78] sm:$0xff]
        %v442 = vld [vmem:[%s422 + $0x80] sm:$0xff]
        %v443 = vld [vmem:[%s422 + $0x88] sm:$0xff]
        %v444 = vld [vmem:[%s422 + $0x90] sm:$0xff]
        %v445 = vld [vmem:[%s422 + $0x98] sm:$0xff]
        %v446 = vld [vmem:[%s422 + $0xa0] sm:$0xff]
        %v447 = vld [vmem:[%s422 + $0xa8] sm:$0xff]
        %v448 = vld [vmem:[%s422 + $0xb0] sm:$0xff]
        %v449 = vld [vmem:[%s422 + $0xb8] sm:$0xff]
        %v450 = vld [vmem:[%s422 + $0xc0] sm:$0xff]
        %v451 = vld [vmem:[%s422 + $0xc8] sm:$0xff]
        %v452 = vld [vmem:[%s422 + $0xd0] sm:$0xff]
        %v453 = vld [vmem:[%s422 + $0xd8] sm:$0xff]
        %v454 = vld [vmem:[%s422 + $0xe0] sm:$0xff]
        %v455 = vld [vmem:[%s422 + $0xe8] sm:$0xff]
        %v456 = vld [vmem:[%s422 + $0xf0] sm:$0xff]
        %v457 = vld [vmem:[%s422 + $0xf8] sm:$0xff]
        %vm458 = vcmask 261120
        %v459 = vsel %vm458, %v426, 0.0
        %460 = vadd.xlane.f32.xlu0 %v459
        %v461 = vpop.xlane.xlu0 %460
        %v462 = vsel %vm458, %v427, 0.0
        %463 = vadd.xlane.f32.xlu0 %v462
        %v464 = vpop.xlane.xlu0 %463
        %v465 = vsel %vm458, %v428, 0.0
        %466 = vadd.xlane.f32.xlu0 %v465
        %v467 = vpop.xlane.xlu0 %466
        %v468 = vsel %vm458, %v429, 0.0
        %469 = vadd.xlane.f32.xlu0 %v468
        %v470 = vpop.xlane.xlu0 %469
        %v471 = vsel %vm458, %v430, 0.0
        %472 = vadd.xlane.f32.xlu0 %v471
        %v473 = vpop.xlane.xlu0 %472
        %v474 = vsel %vm458, %v431, 0.0
        %475 = vadd.xlane.f32.xlu0 %v474
        %v476 = vpop.xlane.xlu0 %475
        %v477 = vsel %vm458, %v432, 0.0
        %478 = vadd.xlane.f32.xlu0 %v477
        %v479 = vpop.xlane.xlu0 %478
        %v480 = vsel %vm458, %v433, 0.0
        %481 = vadd.xlane.f32.xlu0 %v480
        %v482 = vpop.xlane.xlu0 %481
        %v483 = vsel %vm458, %v434, 0.0
        %484 = vadd.xlane.f32.xlu0 %v483
        %v485 = vpop.xlane.xlu0 %484
        %v486 = vsel %vm458, %v435, 0.0
        %487 = vadd.xlane.f32.xlu0 %v486
        %v488 = vpop.xlane.xlu0 %487
        %v489 = vsel %vm458, %v436, 0.0
        %490 = vadd.xlane.f32.xlu0 %v489
        %v491 = vpop.xlane.xlu0 %490
        %v492 = vsel %vm458, %v437, 0.0
        %493 = vadd.xlane.f32.xlu0 %v492
        %v494 = vpop.xlane.xlu0 %493
        %v495 = vsel %vm458, %v438, 0.0
        %496 = vadd.xlane.f32.xlu0 %v495
        %v497 = vpop.xlane.xlu0 %496
        %v498 = vsel %vm458, %v439, 0.0
        %499 = vadd.xlane.f32.xlu0 %v498
        %v500 = vpop.xlane.xlu0 %499
        %v501 = vsel %vm458, %v440, 0.0
        %502 = vadd.xlane.f32.xlu0 %v501
        %v503 = vpop.xlane.xlu0 %502
        %v504 = vsel %vm458, %v441, 0.0
        %505 = vadd.xlane.f32.xlu0 %v504
        %v506 = vpop.xlane.xlu0 %505
        %v507 = vsel %vm458, %v442, 0.0
        %508 = vadd.xlane.f32.xlu0 %v507
        %v509 = vpop.xlane.xlu0 %508
        %v510 = vsel %vm458, %v443, 0.0
        %511 = vadd.xlane.f32.xlu0 %v510
        %v512 = vpop.xlane.xlu0 %511
        %v513 = vsel %vm458, %v444, 0.0
        %514 = vadd.xlane.f32.xlu0 %v513
        %v515 = vpop.xlane.xlu0 %514
        %v516 = vsel %vm458, %v445, 0.0
        %517 = vadd.xlane.f32.xlu0 %v516
        %v518 = vpop.xlane.xlu0 %517
        %v519 = vsel %vm458, %v446, 0.0
        %520 = vadd.xlane.f32.xlu0 %v519
        %v521 = vpop.xlane.xlu0 %520
        %v522 = vsel %vm458, %v447, 0.0
        %523 = vadd.xlane.f32.xlu0 %v522
        %v524 = vpop.xlane.xlu0 %523
        %v525 = vsel %vm458, %v448, 0.0
        %526 = vadd.xlane.f32.xlu0 %v525
        %v527 = vpop.xlane.xlu0 %526
        %v528 = vsel %vm458, %v449, 0.0
        %529 = vadd.xlane.f32.xlu0 %v528
        %v530 = vpop.xlane.xlu0 %529
        %v531 = vsel %vm458, %v450, 0.0
        %532 = vadd.xlane.f32.xlu0 %v531
        %v533 = vpop.xlane.xlu0 %532
        %v534 = vsel %vm458, %v451, 0.0
        %535 = vadd.xlane.f32.xlu0 %v534
        %v536 = vpop.xlane.xlu0 %535
        %v537 = vsel %vm458, %v452, 0.0
        %538 = vadd.xlane.f32.xlu0 %v537
        %v539 = vpop.xlane.xlu0 %538
        %v540 = vsel %vm458, %v453, 0.0
        %541 = vadd.xlane.f32.xlu0 %v540
        %v542 = vpop.xlane.xlu0 %541
        %v543 = vsel %vm458, %v454, 0.0
        %544 = vadd.xlane.f32.xlu0 %v543
        %v545 = vpop.xlane.xlu0 %544
        %v546 = vsel %vm458, %v455, 0.0
        %547 = vadd.xlane.f32.xlu0 %v546
        %v548 = vpop.xlane.xlu0 %547
        %v549 = vsel %vm458, %v456, 0.0
        %550 = vadd.xlane.f32.xlu0 %v549
        %v551 = vpop.xlane.xlu0 %550
        %v552 = vsel %vm458, %v457, 0.0
        %553 = vadd.xlane.f32.xlu0 %v552
        %v554 = vpop.xlane.xlu0 %553
        %v555 = vrcp.pop 32.0
        %v556 = vmul.f32 %v461, %v555
        %v557 = vmul.f32 %v464, %v555
        %v558 = vmul.f32 %v467, %v555
        %v559 = vmul.f32 %v470, %v555
        %v560 = vmul.f32 %v473, %v555
        %v561 = vmul.f32 %v476, %v555
        %v562 = vmul.f32 %v479, %v555
        %v563 = vmul.f32 %v482, %v555
        %v564 = vmul.f32 %v485, %v555
        %v565 = vmul.f32 %v488, %v555
        %v566 = vmul.f32 %v491, %v555
        %v567 = vmul.f32 %v494, %v555
        %v568 = vmul.f32 %v497, %v555
        %v569 = vmul.f32 %v500, %v555
        %v570 = vmul.f32 %v503, %v555
        %v571 = vmul.f32 %v506, %v555
        %v572 = vmul.f32 %v509, %v555
        %v573 = vmul.f32 %v512, %v555
        %v574 = vmul.f32 %v515, %v555
        %v575 = vmul.f32 %v518, %v555
        %v576 = vmul.f32 %v521, %v555
        %v577 = vmul.f32 %v524, %v555
        %v578 = vmul.f32 %v527, %v555
        %v579 = vmul.f32 %v530, %v555
        %v580 = vmul.f32 %v533, %v555
        %v581 = vmul.f32 %v536, %v555
        %v582 = vmul.f32 %v539, %v555
        %v583 = vmul.f32 %v542, %v555
        %v584 = vmul.f32 %v545, %v555
        %v585 = vmul.f32 %v548, %v555
        %v586 = vmul.f32 %v551, %v555
        %v587 = vmul.f32 %v554, %v555
        %v588 = vsub.f32 %v426, %v556
        %v589 = vsub.f32 %v427, %v557
        %v590 = vsub.f32 %v428, %v558
        %v591 = vsub.f32 %v429, %v559
        %v592 = vsub.f32 %v430, %v560
        %v593 = vsub.f32 %v431, %v561
        %v594 = vsub.f32 %v432, %v562
        %v595 = vsub.f32 %v433, %v563
        %v596 = vsub.f32 %v434, %v564
        %v597 = vsub.f32 %v435, %v565
        %v598 = vsub.f32 %v436, %v566
        %v599 = vsub.f32 %v437, %v567
        %v600 = vsub.f32 %v438, %v568
        %v601 = vsub.f32 %v439, %v569
        %v602 = vsub.f32 %v440, %v570
        %v603 = vsub.f32 %v441, %v571
        %v604 = vsub.f32 %v442, %v572
        %v605 = vsub.f32 %v443, %v573
        %v606 = vsub.f32 %v444, %v574
        %v607 = vsub.f32 %v445, %v575
        %v608 = vsub.f32 %v446, %v576
        %v609 = vsub.f32 %v447, %v577
        %v610 = vsub.f32 %v448, %v578
        %v611 = vsub.f32 %v449, %v579
        %v612 = vsub.f32 %v450, %v580
        %v613 = vsub.f32 %v451, %v581
        %v614 = vsub.f32 %v452, %v582
        %v615 = vsub.f32 %v453, %v583
        %v616 = vsub.f32 %v454, %v584
        %v617 = vsub.f32 %v455, %v585
        %v618 = vsub.f32 %v456, %v586
        %v619 = vsub.f32 %v457, %v587
        %v620 = vmul.f32 %v588, %v588
        %v621 = vmul.f32 %v589, %v589
        %v622 = vmul.f32 %v590, %v590
        %v623 = vmul.f32 %v591, %v591
        %v624 = vmul.f32 %v592, %v592
        %v625 = vmul.f32 %v593, %v593
        %v626 = vmul.f32 %v594, %v594
        %v627 = vmul.f32 %v595, %v595
        %v628 = vmul.f32 %v596, %v596
        %v629 = vmul.f32 %v597, %v597
        %v630 = vmul.f32 %v598, %v598
        %v631 = vmul.f32 %v599, %v599
        %v632 = vmul.f32 %v600, %v600
        %v633 = vmul.f32 %v601, %v601
        %v634 = vmul.f32 %v602, %v602
        %v635 = vmul.f32 %v603, %v603
        %v636 = vmul.f32 %v604, %v604
        %v637 = vmul.f32 %v605, %v605
        %v638 = vmul.f32 %v606, %v606
        %v639 = vmul.f32 %v607, %v607
        %v640 = vmul.f32 %v608, %v608
        %v641 = vmul.f32 %v609, %v609
        %v642 = vmul.f32 %v610, %v610
        %v643 = vmul.f32 %v611, %v611
        %v644 = vmul.f32 %v612, %v612
        %v645 = vmul.f32 %v613, %v613
        %v646 = vmul.f32 %v614, %v614
        %v647 = vmul.f32 %v615, %v615
        %v648 = vmul.f32 %v616, %v616
        %v649 = vmul.f32 %v617, %v617
        %v650 = vmul.f32 %v618, %v618
        %v651 = vmul.f32 %v619, %v619
        %v652 = vsel %vm458, %v620, 0.0
        %653 = vadd.xlane.f32.xlu0 %v652
        %v654 = vpop.xlane.xlu0 %653
        %v655 = vsel %vm458, %v621, 0.0
        %656 = vadd.xlane.f32.xlu0 %v655
        %v657 = vpop.xlane.xlu0 %656
        %v658 = vsel %vm458, %v622, 0.0
        %659 = vadd.xlane.f32.xlu0 %v658
        %v660 = vpop.xlane.xlu0 %659
        %v661 = vsel %vm458, %v623, 0.0
        %662 = vadd.xlane.f32.xlu0 %v661
        %v663 = vpop.xlane.xlu0 %662
        %v664 = vsel %vm458, %v624, 0.0
        %665 = vadd.xlane.f32.xlu0 %v664
        %v666 = vpop.xlane.xlu0 %665
        %v667 = vsel %vm458, %v625, 0.0
        %668 = vadd.xlane.f32.xlu0 %v667
        %v669 = vpop.xlane.xlu0 %668
        %v670 = vsel %vm458, %v626, 0.0
        %671 = vadd.xlane.f32.xlu0 %v670
        %v672 = vpop.xlane.xlu0 %671
        %v673 = vsel %vm458, %v627, 0.0
        %674 = vadd.xlane.f32.xlu0 %v673
        %v675 = vpop.xlane.xlu0 %674
        %v676 = vsel %vm458, %v628, 0.0
        %677 = vadd.xlane.f32.xlu0 %v676
        %v678 = vpop.xlane.xlu0 %677
        %v679 = vsel %vm458, %v629, 0.0
        %680 = vadd.xlane.f32.xlu0 %v679
        %v681 = vpop.xlane.xlu0 %680
        %v682 = vsel %vm458, %v630, 0.0
        %683 = vadd.xlane.f32.xlu0 %v682
        %v684 = vpop.xlane.xlu0 %683
        %v685 = vsel %vm458, %v631, 0.0
        %686 = vadd.xlane.f32.xlu0 %v685
        %v687 = vpop.xlane.xlu0 %686
        %v688 = vsel %vm458, %v632, 0.0
        %689 = vadd.xlane.f32.xlu0 %v688
        %v690 = vpop.xlane.xlu0 %689
        %v691 = vsel %vm458, %v633, 0.0
        %692 = vadd.xlane.f32.xlu0 %v691
        %v693 = vpop.xlane.xlu0 %692
        %v694 = vsel %vm458, %v634, 0.0
        %695 = vadd.xlane.f32.xlu0 %v694
        %v696 = vpop.xlane.xlu0 %695
        %v697 = vsel %vm458, %v635, 0.0
        %698 = vadd.xlane.f32.xlu0 %v697
        %v699 = vpop.xlane.xlu0 %698
        %v700 = vsel %vm458, %v636, 0.0
        %701 = vadd.xlane.f32.xlu0 %v700
        %v702 = vpop.xlane.xlu0 %701
        %v703 = vsel %vm458, %v637, 0.0
        %704 = vadd.xlane.f32.xlu0 %v703
        %v705 = vpop.xlane.xlu0 %704
        %v706 = vsel %vm458, %v638, 0.0
        %707 = vadd.xlane.f32.xlu0 %v706
        %v708 = vpop.xlane.xlu0 %707
        %v709 = vsel %vm458, %v639, 0.0
        %710 = vadd.xlane.f32.xlu0 %v709
        %v711 = vpop.xlane.xlu0 %710
        %v712 = vsel %vm458, %v640, 0.0
        %713 = vadd.xlane.f32.xlu0 %v712
        %v714 = vpop.xlane.xlu0 %713
        %v715 = vsel %vm458, %v641, 0.0
        %716 = vadd.xlane.f32.xlu0 %v715
        %v717 = vpop.xlane.xlu0 %716
        %v718 = vsel %vm458, %v642, 0.0
        %719 = vadd.xlane.f32.xlu0 %v718
        %v720 = vpop.xlane.xlu0 %719
        %v721 = vsel %vm458, %v643, 0.0
        %722 = vadd.xlane.f32.xlu0 %v721
        %v723 = vpop.xlane.xlu0 %722
        %v724 = vsel %vm458, %v644, 0.0
        %725 = vadd.xlane.f32.xlu0 %v724
        %v726 = vpop.xlane.xlu0 %725
        %v727 = vsel %vm458, %v645, 0.0
        %728 = vadd.xlane.f32.xlu0 %v727
        %v729 = vpop.xlane.xlu0 %728
        %v730 = vsel %vm458, %v646, 0.0
        %731 = vadd.xlane.f32.xlu0 %v730
        %v732 = vpop.xlane.xlu0 %731
        %v733 = vsel %vm458, %v647, 0.0
        %734 = vadd.xlane.f32.xlu0 %v733
        %v735 = vpop.xlane.xlu0 %734
        %v736 = vsel %vm458, %v648, 0.0
        %737 = vadd.xlane.f32.xlu0 %v736
        %v738 = vpop.xlane.xlu0 %737
        %v739 = vsel %vm458, %v649, 0.0
        %740 = vadd.xlane.f32.xlu0 %v739
        %v741 = vpop.xlane.xlu0 %740
        %v742 = vsel %vm458, %v650, 0.0
        %743 = vadd.xlane.f32.xlu0 %v742
        %v744 = vpop.xlane.xlu0 %743
        %v745 = vsel %vm458, %v651, 0.0
        %746 = vadd.xlane.f32.xlu0 %v745
        %v747 = vpop.xlane.xlu0 %746
        %v748 = vmul.f32 %v654, %v555
        %v749 = vmul.f32 %v657, %v555
        %v750 = vmul.f32 %v660, %v555
        %v751 = vmul.f32 %v663, %v555
        %v752 = vmul.f32 %v666, %v555
        %v753 = vmul.f32 %v669, %v555
        %v754 = vmul.f32 %v672, %v555
        %v755 = vmul.f32 %v675, %v555
        %v756 = vmul.f32 %v678, %v555
        %v757 = vmul.f32 %v681, %v555
        %v758 = vmul.f32 %v684, %v555
        %v759 = vmul.f32 %v687, %v555
        %v760 = vmul.f32 %v690, %v555
        %v761 = vmul.f32 %v693, %v555
        %v762 = vmul.f32 %v696, %v555
        %v763 = vmul.f32 %v699, %v555
        %v764 = vmul.f32 %v702, %v555
        %v765 = vmul.f32 %v705, %v555
        %v766 = vmul.f32 %v708, %v555
        %v767 = vmul.f32 %v711, %v555
        %v768 = vmul.f32 %v714, %v555
        %v769 = vmul.f32 %v717, %v555
        %v770 = vmul.f32 %v720, %v555
        %v771 = vmul.f32 %v723, %v555
        %v772 = vmul.f32 %v726, %v555
        %v773 = vmul.f32 %v729, %v555
        %v774 = vmul.f32 %v732, %v555
        %v775 = vmul.f32 %v735, %v555
        %v776 = vmul.f32 %v738, %v555
        %v777 = vmul.f32 %v741, %v555
        %v778 = vmul.f32 %v744, %v555
        %v779 = vmul.f32 %v747, %v555
        %v780 = vadd.f32 %v748, 1e-05
        %v781 = vadd.f32 %v749, 1e-05
        %v782 = vadd.f32 %v750, 1e-05
        %v783 = vadd.f32 %v751, 1e-05
        %v784 = vadd.f32 %v752, 1e-05
        %v785 = vadd.f32 %v753, 1e-05
        %v786 = vadd.f32 %v754, 1e-05
        %v787 = vadd.f32 %v755, 1e-05
        %v788 = vadd.f32 %v756, 1e-05
        %v789 = vadd.f32 %v757, 1e-05
        %v790 = vadd.f32 %v758, 1e-05
        %v791 = vadd.f32 %v759, 1e-05
        %v792 = vadd.f32 %v760, 1e-05
        %v793 = vadd.f32 %v761, 1e-05
        %v794 = vadd.f32 %v762, 1e-05
        %v795 = vadd.f32 %v763, 1e-05
        %v796 = vadd.f32 %v764, 1e-05
        %v797 = vadd.f32 %v765, 1e-05
        %v798 = vadd.f32 %v766, 1e-05
        %v799 = vadd.f32 %v767, 1e-05
        %v800 = vadd.f32 %v768, 1e-05
        %v801 = vadd.f32 %v769, 1e-05
        %v802 = vadd.f32 %v770, 1e-05
        %v803 = vadd.f32 %v771, 1e-05
        %v804 = vadd.f32 %v772, 1e-05
        %v805 = vadd.f32 %v773, 1e-05
        %v806 = vadd.f32 %v774, 1e-05
        %v807 = vadd.f32 %v775, 1e-05
        %v808 = vadd.f32 %v776, 1e-05
        %v809 = vadd.f32 %v777, 1e-05
        %v810 = vadd.f32 %v778, 1e-05
        %v811 = vadd.f32 %v779, 1e-05
        %v812 = vrsqrt.pop %v780
        %v813 = vrsqrt.pop %v781
        %v814 = vrsqrt.pop %v782
        %v815 = vrsqrt.pop %v783
        %v816 = vrsqrt.pop %v784
        %v817 = vrsqrt.pop %v785
        %v818 = vrsqrt.pop %v786
        %v819 = vrsqrt.pop %v787
        %v820 = vrsqrt.pop %v788
        %v821 = vrsqrt.pop %v789
        %v822 = vrsqrt.pop %v790
        %v823 = vrsqrt.pop %v791
        %v824 = vrsqrt.pop %v792
        %v825 = vrsqrt.pop %v793
        %v826 = vrsqrt.pop %v794
        %v827 = vrsqrt.pop %v795
        %v828 = vrsqrt.pop %v796
        %v829 = vrsqrt.pop %v797
        %v830 = vrsqrt.pop %v798
        %v831 = vrsqrt.pop %v799
        %v832 = vrsqrt.pop %v800
        %v833 = vrsqrt.pop %v801
        %v834 = vrsqrt.pop %v802
        %v835 = vrsqrt.pop %v803
        %v836 = vrsqrt.pop %v804
        %v837 = vrsqrt.pop %v805
        %v838 = vrsqrt.pop %v806
        %v839 = vrsqrt.pop %v807
        %v840 = vrsqrt.pop %v808
        %v841 = vrsqrt.pop %v809
        %v842 = vrsqrt.pop %v810
        %v843 = vrsqrt.pop %v811
        %v844 = vmul.f32 %v588, %v812
        %v845 = vmul.f32 %v589, %v813
        %v846 = vmul.f32 %v590, %v814
        %v847 = vmul.f32 %v591, %v815
        %v848 = vmul.f32 %v592, %v816
        %v849 = vmul.f32 %v593, %v817
        %v850 = vmul.f32 %v594, %v818
        %v851 = vmul.f32 %v595, %v819
        %v852 = vmul.f32 %v596, %v820
        %v853 = vmul.f32 %v597, %v821
        %v854 = vmul.f32 %v598, %v822
        %v855 = vmul.f32 %v599, %v823
        %v856 = vmul.f32 %v600, %v824
        %v857 = vmul.f32 %v601, %v825
        %v858 = vmul.f32 %v602, %v826
        %v859 = vmul.f32 %v603, %v827
        %v860 = vmul.f32 %v604, %v828
        %v861 = vmul.f32 %v605, %v829
        %v862 = vmul.f32 %v606, %v830
        %v863 = vmul.f32 %v607, %v831
        %v864 = vmul.f32 %v608, %v832
        %v865 = vmul.f32 %v609, %v833
        %v866 = vmul.f32 %v610, %v834
        %v867 = vmul.f32 %v611, %v835
        %v868 = vmul.f32 %v612, %v836
        %v869 = vmul.f32 %v613, %v837
        %v870 = vmul.f32 %v614, %v838
        %v871 = vmul.f32 %v615, %v839
        %v872 = vmul.f32 %v616, %v840
        %v873 = vmul.f32 %v617, %v841
        %v874 = vmul.f32 %v618, %v842
        %v875 = vmul.f32 %v619, %v843
        %v876 = vld [vmem:[%s1] sm:$0x1]
        %v878 = vlaneseq
        %v879 = vshrl.u32 %v878, 7
        %v880 = vsub.s32 0, %v879
        %v881 = vrot.slane %v876, %v880
        %v883 = vmul.f32 %v844, %v881
        %v884 = vmul.f32 %v845, %v881
        %v885 = vmul.f32 %v846, %v881
        %v886 = vmul.f32 %v847, %v881
        %v887 = vmul.f32 %v848, %v881
        %v888 = vmul.f32 %v849, %v881
        %v889 = vmul.f32 %v850, %v881
        %v890 = vmul.f32 %v851, %v881
        %v891 = vmul.f32 %v852, %v881
        %v892 = vmul.f32 %v853, %v881
        %v893 = vmul.f32 %v854, %v881
        %v894 = vmul.f32 %v855, %v881
        %v895 = vmul.f32 %v856, %v881
        %v896 = vmul.f32 %v857, %v881
        %v897 = vmul.f32 %v858, %v881
        %v898 = vmul.f32 %v859, %v881
        %v899 = vmul.f32 %v860, %v881
        %v900 = vmul.f32 %v861, %v881
        %v901 = vmul.f32 %v862, %v881
        %v902 = vmul.f32 %v863, %v881
        %v903 = vmul.f32 %v864, %v881
        %v904 = vmul.f32 %v865, %v881
        %v905 = vmul.f32 %v866, %v881
        %v906 = vmul.f32 %v867, %v881
        %v907 = vmul.f32 %v868, %v881
        %v908 = vmul.f32 %v869, %v881
        %v909 = vmul.f32 %v870, %v881
        %v910 = vmul.f32 %v871, %v881
        %v911 = vmul.f32 %v872, %v881
        %v912 = vmul.f32 %v873, %v881
        %v913 = vmul.f32 %v874, %v881
        %v914 = vmul.f32 %v875, %v881
        %v915 = vld [vmem:[%s2] sm:$0x1]
        %v917 = vlaneseq
        %v918 = vshrl.u32 %v917, 7
        %v919 = vsub.s32 0, %v918
        %v920 = vrot.slane %v915, %v919
        %v922 = vadd.f32 %v883, %v920
        %v923 = vadd.f32 %v884, %v920
        %v924 = vadd.f32 %v885, %v920
        %v925 = vadd.f32 %v886, %v920
        %v926 = vadd.f32 %v887, %v920
        %v927 = vadd.f32 %v888, %v920
        %v928 = vadd.f32 %v889, %v920
        %v929 = vadd.f32 %v890, %v920
        %v930 = vadd.f32 %v891, %v920
        %v931 = vadd.f32 %v892, %v920
        %v932 = vadd.f32 %v893, %v920
        %v933 = vadd.f32 %v894, %v920
        %v934 = vadd.f32 %v895, %v920
        %v935 = vadd.f32 %v896, %v920
        %v936 = vadd.f32 %v897, %v920
        %v937 = vadd.f32 %v898, %v920
        %v938 = vadd.f32 %v899, %v920
        %v939 = vadd.f32 %v900, %v920
        %v940 = vadd.f32 %v901, %v920
        %v941 = vadd.f32 %v902, %v920
        %v942 = vadd.f32 %v903, %v920
        %v943 = vadd.f32 %v904, %v920
        %v944 = vadd.f32 %v905, %v920
        %v945 = vadd.f32 %v906, %v920
        %v946 = vadd.f32 %v907, %v920
        %v947 = vadd.f32 %v908, %v920
        %v948 = vadd.f32 %v909, %v920
        %v949 = vadd.f32 %v910, %v920
        %v950 = vadd.f32 %v911, %v920
        %v951 = vadd.f32 %v912, %v920
        %v952 = vadd.f32 %v913, %v920
        %v953 = vadd.f32 %v914, %v920
        %954 = vst.msk [vmem:[#allocation2] sm:$0xff] %vm458, 0.0
        %955 = vst.msk [vmem:[#allocation2 + $0x8] sm:$0xff] %vm458, 0.0
        %vm956 = vcmask 256000
        %957 = vst.msk [vmem:[#allocation2 + $0x10] sm:$0x7] %vm956, 0.0
        %958 = vst.msk [vmem:[#allocation2 + $0x18] sm:$0xff] %vm458, 0.0
        %959 = vst.msk [vmem:[#allocation2 + $0x20] sm:$0xff] %vm458, 0.0
        %960 = vst.msk [vmem:[#allocation2 + $0x28] sm:$0x7] %vm956, 0.0
        %961 = vst.msk [vmem:[#allocation2 + $0x30] sm:$0xff] %vm458, 0.0
        %962 = vst.msk [vmem:[#allocation2 + $0x38] sm:$0xff] %vm458, 0.0
        %963 = vst.msk [vmem:[#allocation2 + $0x40] sm:$0x7] %vm956, 0.0
        %964 = vst.msk [vmem:[#allocation2 + $0x48] sm:$0xff] %vm458, 0.0
        %965 = vst.msk [vmem:[#allocation2 + $0x50] sm:$0xff] %vm458, 0.0
        %966 = vst.msk [vmem:[#allocation2 + $0x58] sm:$0x7] %vm956, 0.0
        %967 = vst.msk [vmem:[#allocation2 + $0x60] sm:$0xff] %vm458, 0.0
        %968 = vst.msk [vmem:[#allocation2 + $0x68] sm:$0xff] %vm458, 0.0
        %969 = vst.msk [vmem:[#allocation2 + $0x70] sm:$0x7] %vm956, 0.0
        %970 = vst.msk [vmem:[#allocation2 + $0x78] sm:$0xff] %vm458, 0.0
        %971 = vst.msk [vmem:[#allocation2 + $0x80] sm:$0xff] %vm458, 0.0
        %972 = vst.msk [vmem:[#allocation2 + $0x88] sm:$0x7] %vm956, 0.0
        %973 = vst.msk [vmem:[#allocation2 + $0x90] sm:$0xff] %vm458, 0.0
        %974 = vst.msk [vmem:[#allocation2 + $0x98] sm:$0xff] %vm458, 0.0
        %975 = vst.msk [vmem:[#allocation2 + $0xa0] sm:$0x7] %vm956, 0.0
        %976 = vst.msk [vmem:[#allocation2 + $0xa8] sm:$0xff] %vm458, 0.0
        %977 = vst.msk [vmem:[#allocation2 + $0xb0] sm:$0xff] %vm458, 0.0
        %978 = vst.msk [vmem:[#allocation2 + $0xb8] sm:$0x7] %vm956, 0.0
        %979 = vst.msk [vmem:[#allocation2 + $0xc0] sm:$0xff] %vm458, 0.0
        %980 = vst.msk [vmem:[#allocation2 + $0xc8] sm:$0xff] %vm458, 0.0
        %981 = vst.msk [vmem:[#allocation2 + $0xd0] sm:$0x7] %vm956, 0.0
        %982 = vst.msk [vmem:[#allocation2 + $0xd8] sm:$0xff] %vm458, 0.0
        %983 = vst.msk [vmem:[#allocation2 + $0xe0] sm:$0xff] %vm458, 0.0
        %984 = vst.msk [vmem:[#allocation2 + $0xe8] sm:$0x7] %vm956, 0.0
        %985 = vst.msk [vmem:[#allocation2 + $0xf0] sm:$0xff] %vm458, 0.0
        %986 = vst.msk [vmem:[#allocation2 + $0xf8] sm:$0xff] %vm458, 0.0
        %987 = vst.msk [vmem:[#allocation2 + $0x100] sm:$0x7] %vm956, 0.0
        %988 = vst.msk [vmem:[#allocation2 + $0x108] sm:$0xff] %vm458, 0.0
        %989 = vst.msk [vmem:[#allocation2 + $0x110] sm:$0xff] %vm458, 0.0
        %990 = vst.msk [vmem:[#allocation2 + $0x118] sm:$0x7] %vm956, 0.0
        %991 = vst.msk [vmem:[#allocation2 + $0x120] sm:$0xff] %vm458, 0.0
        %992 = vst.msk [vmem:[#allocation2 + $0x128] sm:$0xff] %vm458, 0.0
        %993 = vst.msk [vmem:[#allocation2 + $0x130] sm:$0x7] %vm956, 0.0
        %994 = vst.msk [vmem:[#allocation2 + $0x138] sm:$0xff] %vm458, 0.0
        %995 = vst.msk [vmem:[#allocation2 + $0x140] sm:$0xff] %vm458, 0.0
        %996 = vst.msk [vmem:[#allocation2 + $0x148] sm:$0x7] %vm956, 0.0
        %997 = vst.msk [vmem:[#allocation2 + $0x150] sm:$0xff] %vm458, 0.0
        %998 = vst.msk [vmem:[#allocation2 + $0x158] sm:$0xff] %vm458, 0.0
        %999 = vst.msk [vmem:[#allocation2 + $0x160] sm:$0x7] %vm956, 0.0
        %1000 = vst.msk [vmem:[#allocation2 + $0x168] sm:$0xff] %vm458, 0.0
        %1001 = vst.msk [vmem:[#allocation2 + $0x170] sm:$0xff] %vm458, 0.0
        %1002 = vst.msk [vmem:[#allocation2 + $0x178] sm:$0x7] %vm956, 0.0
        %1003 = vst.msk [vmem:[#allocation2 + $0x180] sm:$0xff] %vm458, 0.0
        %1004 = vst.msk [vmem:[#allocation2 + $0x188] sm:$0xff] %vm458, 0.0
        %1005 = vst.msk [vmem:[#allocation2 + $0x190] sm:$0x7] %vm956, 0.0
        %1006 = vst.msk [vmem:[#allocation2 + $0x198] sm:$0xff] %vm458, 0.0
        %1007 = vst.msk [vmem:[#allocation2 + $0x1a0] sm:$0xff] %vm458, 0.0
        %1008 = vst.msk [vmem:[#allocation2 + $0x1a8] sm:$0x7] %vm956, 0.0
        %1009 = vst.msk [vmem:[#allocation2 + $0x1b0] sm:$0xff] %vm458, 0.0
        %1010 = vst.msk [vmem:[#allocation2 + $0x1b8] sm:$0xff] %vm458, 0.0
        %1011 = vst.msk [vmem:[#allocation2 + $0x1c0] sm:$0x7] %vm956, 0.0
        %s1012 = scalar_lea.vmem [#allocation2], 24
        %1013 = vst.msk [vmem:[%s1012 + $0x1] sm:$0xff] %vm458, %v922
        %1014 = vst.msk [vmem:[%s1012 + $0x9] sm:$0xff] %vm458, %v923
        %s1015 = scalar_lea.vmem [#allocation2], 48
        %1016 = vst.msk [vmem:[%s1015 + $0x1] sm:$0xff] %vm458, %v924
        %1017 = vst.msk [vmem:[%s1015 + $0x9] sm:$0xff] %vm458, %v925
        %s1018 = scalar_lea.vmem [#allocation2], 72
        %1019 = vst.msk [vmem:[%s1018 + $0x1] sm:$0xff] %vm458, %v926
        %1020 = vst.msk [vmem:[%s1018 + $0x9] sm:$0xff] %vm458, %v927
        %s1021 = scalar_lea.vmem [#allocation2], 96
        %1022 = vst.msk [vmem:[%s1021 + $0x1] sm:$0xff] %vm458, %v928
        %1023 = vst.msk [vmem:[%s1021 + $0x9] sm:$0xff] %vm458, %v929
        %s1024 = scalar_lea.vmem [#allocation2], 120
        %1025 = vst.msk [vmem:[%s1024 + $0x1] sm:$0xff] %vm458, %v930
        %1026 = vst.msk [vmem:[%s1024 + $0x9] sm:$0xff] %vm458, %v931
        %s1027 = scalar_lea.vmem [#allocation2], 144
        %1028 = vst.msk [vmem:[%s1027 + $0x1] sm:$0xff] %vm458, %v932
        %1029 = vst.msk [vmem:[%s1027 + $0x9] sm:$0xff] %vm458, %v933
        %s1030 = scalar_lea.vmem [#allocation2], 168
        %1031 = vst.msk [vmem:[%s1030 + $0x1] sm:$0xff] %vm458, %v934
        %1032 = vst.msk [vmem:[%s1030 + $0x9] sm:$0xff] %vm458, %v935
        %s1033 = scalar_lea.vmem [#allocation2], 192
        %1034 = vst.msk [vmem:[%s1033 + $0x1] sm:$0xff] %vm458, %v936
        %1035 = vst.msk [vmem:[%s1033 + $0x9] sm:$0xff] %vm458, %v937
        %s1036 = scalar_lea.vmem [#allocation2], 216
        %1037 = vst.msk [vmem:[%s1036 + $0x1] sm:$0xff] %vm458, %v938
        %1038 = vst.msk [vmem:[%s1036 + $0x9] sm:$0xff] %vm458, %v939
        %s1039 = scalar_lea.vmem [#allocation2], 240
        %1040 = vst.msk [vmem:[%s1039 + $0x1] sm:$0xff] %vm458, %v940
        %1041 = vst.msk [vmem:[%s1039 + $0x9] sm:$0xff] %vm458, %v941
        %s1042 = scalar_lea.vmem [#allocation2], 264
        %1043 = vst.msk [vmem:[%s1042 + $0x1] sm:$0xff] %vm458, %v942
        %1044 = vst.msk [vmem:[%s1042 + $0x9] sm:$0xff] %vm458, %v943
        %s1045 = scalar_lea.vmem [#allocation2], 288
        %1046 = vst.msk [vmem:[%s1045 + $0x1] sm:$0xff] %vm458, %v944
        %1047 = vst.msk [vmem:[%s1045 + $0x9] sm:$0xff] %vm458, %v945
        %s1048 = scalar_lea.vmem [#allocation2], 312
        %1049 = vst.msk [vmem:[%s1048 + $0x1] sm:$0xff] %vm458, %v946
        %1050 = vst.msk [vmem:[%s1048 + $0x9] sm:$0xff] %vm458, %v947
        %s1051 = scalar_lea.vmem [#allocation2], 336
        %1052 = vst.msk [vmem:[%s1051 + $0x1] sm:$0xff] %vm458, %v948
        %1053 = vst.msk [vmem:[%s1051 + $0x9] sm:$0xff] %vm458, %v949
        %s1054 = scalar_lea.vmem [#allocation2], 360
        %1055 = vst.msk [vmem:[%s1054 + $0x1] sm:$0xff] %vm458, %v950
        %1056 = vst.msk [vmem:[%s1054 + $0x9] sm:$0xff] %vm458, %v951
        %s1057 = scalar_lea.vmem [#allocation2], 384
        %1058 = vst.msk [vmem:[%s1057 + $0x1] sm:$0xff] %vm458, %v952
        %1059 = vst.msk [vmem:[%s1057 + $0x9] sm:$0xff] %vm458, %v953
        %v1060 = vlaneseq
        %v1061 = vand.u32 %v1060, 127
        %v1062 = vlaneseq
        %v1063 = vshrl.u32 %v1062, 7
        %v1064 = vmul.u32 %v1063, 2
        %vm1065 = vcmp.eq.s32.totalorder %v1061, %v1064
        %v1066 = vsel %vm1065, 1, 0
        %v1067 = vcvt.s32.f32 %v1066
        %v1068 = vadd.s32 %v1063, 8
        %v1069 = vmul.u32 %v1068, 2
        %v1070 = vsub.s32 %v1061, %v1064
        %v1071 = vsub.s32 %v1061, %v1069
        %vm1072 = vcmp.ge.s32.totalorder %v1070, 0
        %vm1073 = vcmp.ge.s32.totalorder %v1071, 0
        %vm1074 = vcmp.lt.s32.totalorder %v1070, 3
        %vm1075 = vcmp.lt.s32.totalorder %v1071, 3
        %vm1076 = vmand %vm1072, %vm1074
        %vm1077 = vmand %vm1073, %vm1075
        %v1078 = vsel %vm1076, 1, 0
        %v1079 = vsel %vm1077, 1, 0
        %v1080 = vcvt.s32.f32 %v1078
        %v1081 = vcvt.s32.f32 %v1079
        %v1082 = vld [vmem:[#allocation2] sm:$0xff]
        %v1083 = vld [vmem:[#allocation2 + $0x8] sm:$0x7f]
        %v1084 = vld [vmem:[%s3] sm:$0x1]
        %v1085 = vlaneseq
        %v1086 = vshrl.u32 %v1085, 7
        %v1087 = vsub.s32 0, %v1086
        %v1088 = vrot.slane %v1084, %v1087
        %v1089 = vmul.f32 %v1082, %v1088
        %v1090 = vmul.f32 %v1083, %v1088
        %v1091 = vadd.f32 %v1089, 0.0
        %v1092 = vadd.f32 %v1090, 0.0
        %v1093 = vld [vmem:[#allocation2 + $0x1] sm:$0xff]
        %v1094 = vld [vmem:[#allocation2 + $0x9] sm:$0x7f]
        %v1095 = vld [vmem:[%s3 + $0x1] sm:$0x1]
        %v1096 = vlaneseq
        %v1097 = vshrl.u32 %v1096, 7
        %v1098 = vsub.s32 0, %v1097
        %v1099 = vrot.slane %v1095, %v1098
        %v1100 = vmul.f32 %v1093, %v1099
        %v1101 = vmul.f32 %v1094, %v1099
        %v1102 = vadd.f32 %v1091, %v1100
        %v1103 = vadd.f32 %v1092, %v1101
        %v1104 = vld [vmem:[#allocation2 + $0x2] sm:$0xff]
        %v1105 = vld [vmem:[#allocation2 + $0xa] sm:$0x7f]
        %v1106 = vld [vmem:[%s3 + $0x2] sm:$0x1]
        %v1107 = vlaneseq
        %v1108 = vshrl.u32 %v1107, 7
        %v1109 = vsub.s32 0, %v1108
        %v1110 = vrot.slane %v1106, %v1109
        %v1111 = vmul.f32 %v1104, %v1110
        %v1112 = vmul.f32 %v1105, %v1110
        %v1113 = vadd.f32 %v1102, %v1111
        %v1114 = vadd.f32 %v1103, %v1112
        %v1115 = vld [vmem:[%s1012] sm:$0xff]
        %v1116 = vld [vmem:[%s1012 + $0x8] sm:$0x7f]
        %v1117 = vld [vmem:[%s3 + $0x3] sm:$0x1]
        %v1118 = vlaneseq
        %v1119 = vshrl.u32 %v1118, 7
        %v1120 = vsub.s32 0, %v1119
        %v1121 = vrot.slane %v1117, %v1120
        %v1122 = vmul.f32 %v1115, %v1121
        %v1123 = vmul.f32 %v1116, %v1121
        %v1124 = vadd.f32 %v1113, %v1122
        %v1125 = vadd.f32 %v1114, %v1123
        %v1126 = vld [vmem:[%s1012 + $0x1] sm:$0xff]
        %v1127 = vld [vmem:[%s1012 + $0x9] sm:$0x7f]
        %v1128 = vld [vmem:[%s3 + $0x4] sm:$0x1]
        %v1129 = vlaneseq
        %v1130 = vshrl.u32 %v1129, 7
        %v1131 = vsub.s32 0, %v1130
        %v1132 = vrot.slane %v1128, %v1131
        %v1133 = vmul.f32 %v1126, %v1132
        %v1134 = vmul.f32 %v1127, %v1132
        %v1135 = vadd.f32 %v1124, %v1133
        %v1136 = vadd.f32 %v1125, %v1134
        %v1137 = vld [vmem:[%s1012 + $0x2] sm:$0xff]
        %v1138 = vld [vmem:[%s1012 + $0xa] sm:$0x7f]
        %v1139 = vld [vmem:[%s3 + $0x5] sm:$0x1]
        %v1140 = vlaneseq
        %v1141 = vshrl.u32 %v1140, 7
        %v1142 = vsub.s32 0, %v1141
        %v1143 = vrot.slane %v1139, %v1142
        %v1144 = vmul.f32 %v1137, %v1143
        %v1145 = vmul.f32 %v1138, %v1143
        %v1146 = vadd.f32 %v1135, %v1144
        %v1147 = vadd.f32 %v1136, %v1145
        %v1148 = vld [vmem:[%s1015] sm:$0xff]
        %v1149 = vld [vmem:[%s1015 + $0x8] sm:$0x7f]
        %v1150 = vld [vmem:[%s3 + $0x6] sm:$0x1]
        %v1151 = vlaneseq
        %v1152 = vshrl.u32 %v1151, 7
        %v1153 = vsub.s32 0, %v1152
        %v1154 = vrot.slane %v1150, %v1153
        %v1155 = vmul.f32 %v1148, %v1154
        %v1156 = vmul.f32 %v1149, %v1154
        %v1157 = vadd.f32 %v1146, %v1155
        %v1158 = vadd.f32 %v1147, %v1156
        %v1159 = vld [vmem:[%s1015 + $0x1] sm:$0xff]
        %v1160 = vld [vmem:[%s1015 + $0x9] sm:$0x7f]
        %v1161 = vld [vmem:[%s3 + $0x7] sm:$0x1]
        %v1162 = vlaneseq
        %v1163 = vshrl.u32 %v1162, 7
        %v1164 = vsub.s32 0, %v1163
        %v1165 = vrot.slane %v1161, %v1164
        %v1166 = vmul.f32 %v1159, %v1165
        %v1167 = vmul.f32 %v1160, %v1165
        %v1168 = vadd.f32 %v1157, %v1166
        %v1169 = vadd.f32 %v1158, %v1167
        %v1170 = vld [vmem:[%s1015 + $0x2] sm:$0xff]
        %v1171 = vld [vmem:[%s1015 + $0xa] sm:$0x7f]
        %v1172 = vld [vmem:[%s3 + $0x8] sm:$0x1]
        %v1173 = vlaneseq
        %v1174 = vshrl.u32 %v1173, 7
        %v1175 = vsub.s32 0, %v1174
        %v1176 = vrot.slane %v1172, %v1175
        %v1177 = vmul.f32 %v1170, %v1176
        %v1178 = vmul.f32 %v1171, %v1176
        %v1179 = vadd.f32 %v1168, %v1177
        %v1180 = vadd.f32 %v1169, %v1178
        %vm1181 = vcmask 121856
        %v1183 = vsel %vm1181, %v1067, 0
        %vm1185 = vcmask 1046528
        %v1187 = vsel %vm1185, %v1180, 0
        %1189 = vmatprep.subr.mxu0 0.0
        %1190 = vmatpush1.msra.mxu0 %v1179
        %1191 = vmatprep.subr.mxu0 0.0
        %1192 = vmatpush1.msra.mxu0 %v1187
        %1193 = vmatprep.subr.mxu0 0.0
        %1194 = vmatpush1.msra.mxu0 0.0
        %1195 = vmatprep.subr.mxu0 0.0
        %1196 = vmatpush1.msra.mxu0 0.0
        %1197 = vmatprep.subr.mxu0 0.0
        %1198 = vmatpush1.msra.mxu0 0.0
        %1199 = vmatprep.subr.mxu0 0.0
        %1200 = vmatpush1.msra.mxu0 0.0
        %1201 = vmatprep.subr.mxu0 0.0
        %1202 = vmatpush1.msra.mxu0 0.0
        %1203 = vmatprep.subr.mxu0 0.0
        %1204 = vmatpush1.msra.mxu0 0.0
        %1205 = vmatprep.subr.mxu0 0.0
        %1206 = vmatpush1.msra.mxu0 0.0
        %1207 = vmatprep.subr.mxu0 0.0
        %1208 = vmatpush1.msra.mxu0 0.0
        %1209 = vmatprep.subr.mxu0 0.0
        %1210 = vmatpush1.msra.mxu0 0.0
        %1211 = vmatprep.subr.mxu0 0.0
        %1212 = vmatpush1.msra.mxu0 0.0
        %1213 = vmatprep.subr.mxu0 0.0
        %1214 = vmatpush1.msra.mxu0 0.0
        %1215 = vmatprep.subr.mxu0 0.0
        %1216 = vmatpush1.msra.mxu0 0.0
        %1217 = vmatprep.subr.mxu0 0.0
        %1218 = vmatpush1.msra.mxu0 0.0
        %1219 = vmatprep.subr.mxu0 0.0
        %1220 = vmatpush1.msra.mxu0 0.0
        %1221 = vmatprep.subr.mxu0 0.0
        %1222 = vmatpush1.msra.mxu0 0.0
        %1223 = vmatprep.subr.mxu0 0.0
        %1224 = vmatpush1.msra.mxu0 0.0
        %1225 = vmatprep.subr.mxu0 0.0
        %1226 = vmatpush1.msra.mxu0 0.0
        %1227 = vmatprep.subr.mxu0 0.0
        %1228 = vmatpush1.msra.mxu0 0.0
        %1229 = vmatprep.subr.mxu0 0.0
        %1230 = vmatpush1.msra.mxu0 0.0
        %1231 = vmatprep.subr.mxu0 0.0
        %1232 = vmatpush1.msra.mxu0 0.0
        %1233 = vmatprep.subr.mxu0 0.0
        %1234 = vmatpush1.msra.mxu0 0.0
        %1235 = vmatprep.subr.mxu0 0.0
        %1236 = vmatpush1.msra.mxu0 0.0
        %1237 = vmatprep.subr.mxu0 0.0
        %1238 = vmatpush1.msra.mxu0 0.0
        %1239 = vmatprep.subr.mxu0 0.0
        %1240 = vmatpush1.msra.mxu0 0.0
        %1241 = vmatprep.subr.mxu0 0.0
        %1242 = vmatpush1.msra.mxu0 0.0
        %1243 = vmatprep.subr.mxu0 0.0
        %1244 = vmatpush1.msra.mxu0 0.0
        %1245 = vmatprep.subr.mxu0 0.0
        %1246 = vmatpush1.msra.mxu0 0.0
        %1247 = vmatprep.subr.mxu0 0.0
        %1248 = vmatpush1.msra.mxu0 0.0
        %1249 = vmatprep.subr.mxu0 0.0
        %1250 = vmatpush1.msra.mxu0 0.0
        %1251 = vmatprep.subr.mxu0 0.0
        %1252 = vmatpush1.msra.mxu0 0.0
        %1253 = vmatprep.mubr.f32.mxu0 0.0
        %1254 = vmatmul.mubr.f32.gmra.mrb[0].mxu0 %v1183
        %v1255 = vpop.f32.mrb[0].mxu0
        %v1256 = vadd.f32 0.0, %v1255
        %v1257 = vpop.f32.mrb[0].mxu0
        %1258 = vdwg.mxu0
        %v1259 = vmul.f32 %v1148, %v1088
        %v1260 = vmul.f32 %v1149, %v1088
        %v1261 = vadd.f32 %v1259, 0.0
        %v1262 = vadd.f32 %v1260, 0.0
        %v1263 = vmul.f32 %v1159, %v1099
        %v1264 = vmul.f32 %v1160, %v1099
        %v1265 = vadd.f32 %v1261, %v1263
        %v1266 = vadd.f32 %v1262, %v1264
        %v1267 = vmul.f32 %v1170, %v1110
        %v1268 = vmul.f32 %v1171, %v1110
        %v1269 = vadd.f32 %v1265, %v1267
        %v1270 = vadd.f32 %v1266, %v1268
        %v1271 = vld [vmem:[%s1018] sm:$0xff]
        %v1272 = vld [vmem:[%s1018 + $0x8] sm:$0x7f]
        %v1273 = vmul.f32 %v1271, %v1121
        %v1274 = vmul.f32 %v1272, %v1121
        %v1275 = vadd.f32 %v1269, %v1273
        %v1276 = vadd.f32 %v1270, %v1274
        %v1277 = vld [vmem:[%s1018 + $0x1] sm:$0xff]
        %v1278 = vld [vmem:[%s1018 + $0x9] sm:$0x7f]
        %v1279 = vmul.f32 %v1277, %v1132
        %v1280 = vmul.f32 %v1278, %v1132
        %v1281 = vadd.f32 %v1275, %v1279
        %v1282 = vadd.f32 %v1276, %v1280
        %v1283 = vld [vmem:[%s1018 + $0x2] sm:$0xff]
        %v1284 = vld [vmem:[%s1018 + $0xa] sm:$0x7f]
        %v1285 = vmul.f32 %v1283, %v1143
        %v1286 = vmul.f32 %v1284, %v1143
        %v1287 = vadd.f32 %v1281, %v1285
        %v1288 = vadd.f32 %v1282, %v1286
        %v1289 = vld [vmem:[%s1021] sm:$0xff]
        %v1290 = vld [vmem:[%s1021 + $0x8] sm:$0x7f]
        %v1291 = vmul.f32 %v1289, %v1154
        %v1292 = vmul.f32 %v1290, %v1154
        %v1293 = vadd.f32 %v1287, %v1291
        %v1294 = vadd.f32 %v1288, %v1292
        %v1295 = vld [vmem:[%s1021 + $0x1] sm:$0xff]
        %v1296 = vld [vmem:[%s1021 + $0x9] sm:$0x7f]
        %v1297 = vmul.f32 %v1295, %v1165
        %v1298 = vmul.f32 %v1296, %v1165
        %v1299 = vadd.f32 %v1293, %v1297
        %v1300 = vadd.f32 %v1294, %v1298
        %v1301 = vld [vmem:[%s1021 + $0x2] sm:$0xff]
        %v1302 = vld [vmem:[%s1021 + $0xa] sm:$0x7f]
        %v1303 = vmul.f32 %v1301, %v1176
        %v1304 = vmul.f32 %v1302, %v1176
        %v1305 = vadd.f32 %v1299, %v1303
        %v1306 = vadd.f32 %v1300, %v1304
        %v1308 = vsel %vm1185, %v1306, 0
        %1310 = vmatprep.subr.mxu0 0.0
        %1311 = vmatpush1.msra.mxu0 %v1305
        %1312 = vmatprep.subr.mxu0 0.0
        %1313 = vmatpush1.msra.mxu0 %v1308
        %1314 = vmatprep.subr.mxu0 0.0
        %1315 = vmatpush1.msra.mxu0 0.0
        %1316 = vmatprep.subr.mxu0 0.0
        %1317 = vmatpush1.msra.mxu0 0.0
        %1318 = vmatprep.subr.mxu0 0.0
        %1319 = vmatpush1.msra.mxu0 0.0
        %1320 = vmatprep.subr.mxu0 0.0
        %1321 = vmatpush1.msra.mxu0 0.0
        %1322 = vmatprep.subr.mxu0 0.0
        %1323 = vmatpush1.msra.mxu0 0.0
        %1324 = vmatprep.subr.mxu0 0.0
        %1325 = vmatpush1.msra.mxu0 0.0
        %1326 = vmatprep.subr.mxu0 0.0
        %1327 = vmatpush1.msra.mxu0 0.0
        %1328 = vmatprep.subr.mxu0 0.0
        %1329 = vmatpush1.msra.mxu0 0.0
        %1330 = vmatprep.subr.mxu0 0.0
        %1331 = vmatpush1.msra.mxu0 0.0
        %1332 = vmatprep.subr.mxu0 0.0
        %1333 = vmatpush1.msra.mxu0 0.0
        %1334 = vmatprep.subr.mxu0 0.0
        %1335 = vmatpush1.msra.mxu0 0.0
        %1336 = vmatprep.subr.mxu0 0.0
        %1337 = vmatpush1.msra.mxu0 0.0
        %1338 = vmatprep.subr.mxu0 0.0
        %1339 = vmatpush1.msra.mxu0 0.0
        %1340 = vmatprep.subr.mxu0 0.0
        %1341 = vmatpush1.msra.mxu0 0.0
        %1342 = vmatprep.subr.mxu0 0.0
        %1343 = vmatpush1.msra.mxu0 0.0
        %1344 = vmatprep.subr.mxu0 0.0
        %1345 = vmatpush1.msra.mxu0 0.0
        %1346 = vmatprep.subr.mxu0 0.0
        %1347 = vmatpush1.msra.mxu0 0.0
        %1348 = vmatprep.subr.mxu0 0.0
        %1349 = vmatpush1.msra.mxu0 0.0
        %1350 = vmatprep.subr.mxu0 0.0
        %1351 = vmatpush1.msra.mxu0 0.0
        %1352 = vmatprep.subr.mxu0 0.0
        %1353 = vmatpush1.msra.mxu0 0.0
        %1354 = vmatprep.subr.mxu0 0.0
        %1355 = vmatpush1.msra.mxu0 0.0
        %1356 = vmatprep.subr.mxu0 0.0
        %1357 = vmatpush1.msra.mxu0 0.0
        %1358 = vmatprep.subr.mxu0 0.0
        %1359 = vmatpush1.msra.mxu0 0.0
        %1360 = vmatprep.subr.mxu0 0.0
        %1361 = vmatpush1.msra.mxu0 0.0
        %1362 = vmatprep.subr.mxu0 0.0
        %1363 = vmatpush1.msra.mxu0 0.0
        %1364 = vmatprep.subr.mxu0 0.0
        %1365 = vmatpush1.msra.mxu0 0.0
        %1366 = vmatprep.subr.mxu0 0.0
        %1367 = vmatpush1.msra.mxu0 0.0
        %1368 = vmatprep.subr.mxu0 0.0
        %1369 = vmatpush1.msra.mxu0 0.0
        %1370 = vmatprep.subr.mxu0 0.0
        %1371 = vmatpush1.msra.mxu0 0.0
        %1372 = vmatprep.subr.mxu0 0.0
        %1373 = vmatpush1.msra.mxu0 0.0
        %1374 = vmatprep.mubr.f32.mxu0 0.0
        %1375 = vmatmul.mubr.f32.gmra.mrb[0].mxu0 %v1183
        %v1376 = vpop.f32.mrb[0].mxu0
        %v1377 = vadd.f32 0.0, %v1376
        %v1378 = vpop.f32.mrb[0].mxu0
        %1379 = vdwg.mxu0
        %v1380 = vmul.f32 %v1289, %v1088
        %v1381 = vmul.f32 %v1290, %v1088
        %v1382 = vadd.f32 %v1380, 0.0
        %v1383 = vadd.f32 %v1381, 0.0
        %v1384 = vmul.f32 %v1295, %v1099
        %v1385 = vmul.f32 %v1296, %v1099
        %v1386 = vadd.f32 %v1382, %v1384
        %v1387 = vadd.f32 %v1383, %v1385
        %v1388 = vmul.f32 %v1301, %v1110
        %v1389 = vmul.f32 %v1302, %v1110
        %v1390 = vadd.f32 %v1386, %v1388
        %v1391 = vadd.f32 %v1387, %v1389
        %v1392 = vld [vmem:[%s1024] sm:$0xff]
        %v1393 = vld [vmem:[%s1024 + $0x8] sm:$0x7f]
        %v1394 = vmul.f32 %v1392, %v1121
        %v1395 = vmul.f32 %v1393, %v1121
        %v1396 = vadd.f32 %v1390, %v1394
        %v1397 = vadd.f32 %v1391, %v1395
        %v1398 = vld [vmem:[%s1024 + $0x1] sm:$0xff]
        %v1399 = vld [vmem:[%s1024 + $0x9] sm:$0x7f]
        %v1400 = vmul.f32 %v1398, %v1132
        %v1401 = vmul.f32 %v1399, %v1132
        %v1402 = vadd.f32 %v1396, %v1400
        %v1403 = vadd.f32 %v1397, %v1401
        %v1404 = vld [vmem:[%s1024 + $0x2] sm:$0xff]
        %v1405 = vld [vmem:[%s1024 + $0xa] sm:$0x7f]
        %v1406 = vmul.f32 %v1404, %v1143
        %v1407 = vmul.f32 %v1405, %v1143
        %v1408 = vadd.f32 %v1402, %v1406
        %v1409 = vadd.f32 %v1403, %v1407
        %v1410 = vld [vmem:[%s1027] sm:$0xff]
        %v1411 = vld [vmem:[%s1027 + $0x8] sm:$0x7f]
        %v1412 = vmul.f32 %v1410, %v1154
        %v1413 = vmul.f32 %v1411, %v1154
        %v1414 = vadd.f32 %v1408, %v1412
        %v1415 = vadd.f32 %v1409, %v1413
        %v1416 = vld [vmem:[%s1027 + $0x1] sm:$0xff]
        %v1417 = vld [vmem:[%s1027 + $0x9] sm:$0x7f]
        %v1418 = vmul.f32 %v1416, %v1165
        %v1419 = vmul.f32 %v1417, %v1165
        %v1420 = vadd.f32 %v1414, %v1418
        %v1421 = vadd.f32 %v1415, %v1419
        %v1422 = vld [vmem:[%s1027 + $0x2] sm:$0xff]
        %v1423 = vld [vmem:[%s1027 + $0xa] sm:$0x7f]
        %v1424 = vmul.f32 %v1422, %v1176
        %v1425 = vmul.f32 %v1423, %v1176
        %v1426 = vadd.f32 %v1420, %v1424
        %v1427 = vadd.f32 %v1421, %v1425
        %v1429 = vsel %vm1185, %v1427, 0
        %1431 = vmatprep.subr.mxu0 0.0
        %1432 = vmatpush1.msra.mxu0 %v1426
        %1433 = vmatprep.subr.mxu0 0.0
        %1434 = vmatpush1.msra.mxu0 %v1429
        %1435 = vmatprep.subr.mxu0 0.0
        %1436 = vmatpush1.msra.mxu0 0.0
        %1437 = vmatprep.subr.mxu0 0.0
        %1438 = vmatpush1.msra.mxu0 0.0
        %1439 = vmatprep.subr.mxu0 0.0
        %1440 = vmatpush1.msra.mxu0 0.0
        %1441 = vmatprep.subr.mxu0 0.0
        %1442 = vmatpush1.msra.mxu0 0.0
        %1443 = vmatprep.subr.mxu0 0.0
        %1444 = vmatpush1.msra.mxu0 0.0
        %1445 = vmatprep.subr.mxu0 0.0
        %1446 = vmatpush1.msra.mxu0 0.0
        %1447 = vmatprep.subr.mxu0 0.0
        %1448 = vmatpush1.msra.mxu0 0.0
        %1449 = vmatprep.subr.mxu0 0.0
        %1450 = vmatpush1.msra.mxu0 0.0
        %1451 = vmatprep.subr.mxu0 0.0
        %1452 = vmatpush1.msra.mxu0 0.0
        %1453 = vmatprep.subr.mxu0 0.0
        %1454 = vmatpush1.msra.mxu0 0.0
        %1455 = vmatprep.subr.mxu0 0.0
        %1456 = vmatpush1.msra.mxu0 0.0
        %1457 = vmatprep.subr.mxu0 0.0
        %1458 = vmatpush1.msra.mxu0 0.0
        %1459 = vmatprep.subr.mxu0 0.0
        %1460 = vmatpush1.msra.mxu0 0.0
        %1461 = vmatprep.subr.mxu0 0.0
        %1462 = vmatpush1.msra.mxu0 0.0
        %1463 = vmatprep.subr.mxu0 0.0
        %1464 = vmatpush1.msra.mxu0 0.0
        %1465 = vmatprep.subr.mxu0 0.0
        %1466 = vmatpush1.msra.mxu0 0.0
        %1467 = vmatprep.subr.mxu0 0.0
        %1468 = vmatpush1.msra.mxu0 0.0
        %1469 = vmatprep.subr.mxu0 0.0
        %1470 = vmatpush1.msra.mxu0 0.0
        %1471 = vmatprep.subr.mxu0 0.0
        %1472 = vmatpush1.msra.mxu0 0.0
        %1473 = vmatprep.subr.mxu0 0.0
        %1474 = vmatpush1.msra.mxu0 0.0
        %1475 = vmatprep.subr.mxu0 0.0
        %1476 = vmatpush1.msra.mxu0 0.0
        %1477 = vmatprep.subr.mxu0 0.0
        %1478 = vmatpush1.msra.mxu0 0.0
        %1479 = vmatprep.subr.mxu0 0.0
        %1480 = vmatpush1.msra.mxu0 0.0
        %1481 = vmatprep.subr.mxu0 0.0
        %1482 = vmatpush1.msra.mxu0 0.0
        %1483 = vmatprep.subr.mxu0 0.0
        %1484 = vmatpush1.msra.mxu0 0.0
        %1485 = vmatprep.subr.mxu0 0.0
        %1486 = vmatpush1.msra.mxu0 0.0
        %1487 = vmatprep.subr.mxu0 0.0
        %1488 = vmatpush1.msra.mxu0 0.0
        %1489 = vmatprep.subr.mxu0 0.0
        %1490 = vmatpush1.msra.mxu0 0.0
        %1491 = vmatprep.subr.mxu0 0.0
        %1492 = vmatpush1.msra.mxu0 0.0
        %1493 = vmatprep.subr.mxu0 0.0
        %1494 = vmatpush1.msra.mxu0 0.0
        %1495 = vmatprep.mubr.f32.mxu0 0.0
        %1496 = vmatmul.mubr.f32.gmra.mrb[0].mxu0 %v1183
        %v1497 = vpop.f32.mrb[0].mxu0
        %v1498 = vadd.f32 0.0, %v1497
        %v1499 = vpop.f32.mrb[0].mxu0
        %1500 = vdwg.mxu0
        %v1501 = vmul.f32 %v1410, %v1088
        %v1502 = vmul.f32 %v1411, %v1088
        %v1503 = vadd.f32 %v1501, 0.0
        %v1504 = vadd.f32 %v1502, 0.0
        %v1505 = vmul.f32 %v1416, %v1099
        %v1506 = vmul.f32 %v1417, %v1099
        %v1507 = vadd.f32 %v1503, %v1505
        %v1508 = vadd.f32 %v1504, %v1506
        %v1509 = vmul.f32 %v1422, %v1110
        %v1510 = vmul.f32 %v1423, %v1110
        %v1511 = vadd.f32 %v1507, %v1509
        %v1512 = vadd.f32 %v1508, %v1510
        %v1513 = vld [vmem:[%s1030] sm:$0xff]
        %v1514 = vld [vmem:[%s1030 + $0x8] sm:$0x7f]
        %v1515 = vmul.f32 %v1513, %v1121
        %v1516 = vmul.f32 %v1514, %v1121
        %v1517 = vadd.f32 %v1511, %v1515
        %v1518 = vadd.f32 %v1512, %v1516
        %v1519 = vld [vmem:[%s1030 + $0x1] sm:$0xff]
        %v1520 = vld [vmem:[%s1030 + $0x9] sm:$0x7f]
        %v1521 = vmul.f32 %v1519, %v1132
        %v1522 = vmul.f32 %v1520, %v1132
        %v1523 = vadd.f32 %v1517, %v1521
        %v1524 = vadd.f32 %v1518, %v1522
        %v1525 = vld [vmem:[%s1030 + $0x2] sm:$0xff]
        %v1526 = vld [vmem:[%s1030 + $0xa] sm:$0x7f]
        %v1527 = vmul.f32 %v1525, %v1143
        %v1528 = vmul.f32 %v1526, %v1143
        %v1529 = vadd.f32 %v1523, %v1527
        %v1530 = vadd.f32 %v1524, %v1528
        %v1531 = vld [vmem:[%s1033] sm:$0xff]
        %v1532 = vld [vmem:[%s1033 + $0x8] sm:$0x7f]
        %v1533 = vmul.f32 %v1531, %v1154
        %v1534 = vmul.f32 %v1532, %v1154
        %v1535 = vadd.f32 %v1529, %v1533
        %v1536 = vadd.f32 %v1530, %v1534
        %v1537 = vld [vmem:[%s1033 + $0x1] sm:$0xff]
        %v1538 = vld [vmem:[%s1033 + $0x9] sm:$0x7f]
        %v1539 = vmul.f32 %v1537, %v1165
        %v1540 = vmul.f32 %v1538, %v1165
        %v1541 = vadd.f32 %v1535, %v1539
        %v1542 = vadd.f32 %v1536, %v1540
        %v1543 = vld [vmem:[%s1033 + $0x2] sm:$0xff]
        %v1544 = vld [vmem:[%s1033 + $0xa] sm:$0x7f]
        %v1545 = vmul.f32 %v1543, %v1176
        %v1546 = vmul.f32 %v1544, %v1176
        %v1547 = vadd.f32 %v1541, %v1545
        %v1548 = vadd.f32 %v1542, %v1546
        %v1550 = vsel %vm1185, %v1548, 0
        %1552 = vmatprep.subr.mxu0 0.0
        %1553 = vmatpush1.msra.mxu0 %v1547
        %1554 = vmatprep.subr.mxu0 0.0
        %1555 = vmatpush1.msra.mxu0 %v1550
        %1556 = vmatprep.subr.mxu0 0.0
        %1557 = vmatpush1.msra.mxu0 0.0
        %1558 = vmatprep.subr.mxu0 0.0
        %1559 = vmatpush1.msra.mxu0 0.0
        %1560 = vmatprep.subr.mxu0 0.0
        %1561 = vmatpush1.msra.mxu0 0.0
        %1562 = vmatprep.subr.mxu0 0.0
        %1563 = vmatpush1.msra.mxu0 0.0
        %1564 = vmatprep.subr.mxu0 0.0
        %1565 = vmatpush1.msra.mxu0 0.0
        %1566 = vmatprep.subr.mxu0 0.0
        %1567 = vmatpush1.msra.mxu0 0.0
        %1568 = vmatprep.subr.mxu0 0.0
        %1569 = vmatpush1.msra.mxu0 0.0
        %1570 = vmatprep.subr.mxu0 0.0
        %1571 = vmatpush1.msra.mxu0 0.0
        %1572 = vmatprep.subr.mxu0 0.0
        %1573 = vmatpush1.msra.mxu0 0.0
        %1574 = vmatprep.subr.mxu0 0.0
        %1575 = vmatpush1.msra.mxu0 0.0
        %1576 = vmatprep.subr.mxu0 0.0
        %1577 = vmatpush1.msra.mxu0 0.0
        %1578 = vmatprep.subr.mxu0 0.0
        %1579 = vmatpush1.msra.mxu0 0.0
        %1580 = vmatprep.subr.mxu0 0.0
        %1581 = vmatpush1.msra.mxu0 0.0
        %1582 = vmatprep.subr.mxu0 0.0
        %1583 = vmatpush1.msra.mxu0 0.0
        %1584 = vmatprep.subr.mxu0 0.0
        %1585 = vmatpush1.msra.mxu0 0.0
        %1586 = vmatprep.subr.mxu0 0.0
        %1587 = vmatpush1.msra.mxu0 0.0
        %1588 = vmatprep.subr.mxu0 0.0
        %1589 = vmatpush1.msra.mxu0 0.0
        %1590 = vmatprep.subr.mxu0 0.0
        %1591 = vmatpush1.msra.mxu0 0.0
        %1592 = vmatprep.subr.mxu0 0.0
        %1593 = vmatpush1.msra.mxu0 0.0
        %1594 = vmatprep.subr.mxu0 0.0
        %1595 = vmatpush1.msra.mxu0 0.0
        %1596 = vmatprep.subr.mxu0 0.0
        %1597 = vmatpush1.msra.mxu0 0.0
        %1598 = vmatprep.subr.mxu0 0.0
        %1599 = vmatpush1.msra.mxu0 0.0
        %1600 = vmatprep.subr.mxu0 0.0
        %1601 = vmatpush1.msra.mxu0 0.0
        %1602 = vmatprep.subr.mxu0 0.0
        %1603 = vmatpush1.msra.mxu0 0.0
        %1604 = vmatprep.subr.mxu0 0.0
        %1605 = vmatpush1.msra.mxu0 0.0
        %1606 = vmatprep.subr.mxu0 0.0
        %1607 = vmatpush1.msra.mxu0 0.0
        %1608 = vmatprep.subr.mxu0 0.0
        %1609 = vmatpush1.msra.mxu0 0.0
        %1610 = vmatprep.subr.mxu0 0.0
        %1611 = vmatpush1.msra.mxu0 0.0
        %1612 = vmatprep.subr.mxu0 0.0
        %1613 = vmatpush1.msra.mxu0 0.0
        %1614 = vmatprep.subr.mxu0 0.0
        %1615 = vmatpush1.msra.mxu0 0.0
        %1616 = vmatprep.mubr.f32.mxu0 0.0
        %1617 = vmatmul.mubr.f32.gmra.mrb[0].mxu0 %v1183
        %v1618 = vpop.f32.mrb[0].mxu0
        %v1619 = vadd.f32 0.0, %v1618
        %v1620 = vpop.f32.mrb[0].mxu0
        %1621 = vdwg.mxu0
        %v1622 = vmul.f32 %v1531, %v1088
        %v1623 = vmul.f32 %v1532, %v1088
        %v1624 = vadd.f32 %v1622, 0.0
        %v1625 = vadd.f32 %v1623, 0.0
        %v1626 = vmul.f32 %v1537, %v1099
        %v1627 = vmul.f32 %v1538, %v1099
        %v1628 = vadd.f32 %v1624, %v1626
        %v1629 = vadd.f32 %v1625, %v1627
        %v1630 = vmul.f32 %v1543, %v1110
        %v1631 = vmul.f32 %v1544, %v1110
        %v1632 = vadd.f32 %v1628, %v1630
        %v1633 = vadd.f32 %v1629, %v1631
        %v1634 = vld [vmem:[%s1036] sm:$0xff]
        %v1635 = vld [vmem:[%s1036 + $0x8] sm:$0x7f]
        %v1636 = vmul.f32 %v1634, %v1121
        %v1637 = vmul.f32 %v1635, %v1121
        %v1638 = vadd.f32 %v1632, %v1636
        %v1639 = vadd.f32 %v1633, %v1637
        %v1640 = vld [vmem:[%s1036 + $0x1] sm:$0xff]
        %v1641 = vld [vmem:[%s1036 + $0x9] sm:$0x7f]
        %v1642 = vmul.f32 %v1640, %v1132
        %v1643 = vmul.f32 %v1641, %v1132
        %v1644 = vadd.f32 %v1638, %v1642
        %v1645 = vadd.f32 %v1639, %v1643
        %v1646 = vld [vmem:[%s1036 + $0x2] sm:$0xff]
        %v1647 = vld [vmem:[%s1036 + $0xa] sm:$0x7f]
        %v1648 = vmul.f32 %v1646, %v1143
        %v1649 = vmul.f32 %v1647, %v1143
        %v1650 = vadd.f32 %v1644, %v1648
        %v1651 = vadd.f32 %v1645, %v1649
        %v1652 = vld [vmem:[%s1039] sm:$0xff]
        %v1653 = vld [vmem:[%s1039 + $0x8] sm:$0x7f]
        %v1654 = vmul.f32 %v1652, %v1154
        %v1655 = vmul.f32 %v1653, %v1154
        %v1656 = vadd.f32 %v1650, %v1654
        %v1657 = vadd.f32 %v1651, %v1655
        %v1658 = vld [vmem:[%s1039 + $0x1] sm:$0xff]
        %v1659 = vld [vmem:[%s1039 + $0x9] sm:$0x7f]
        %v1660 = vmul.f32 %v1658, %v1165
        %v1661 = vmul.f32 %v1659, %v1165
        %v1662 = vadd.f32 %v1656, %v1660
        %v1663 = vadd.f32 %v1657, %v1661
        %v1664 = vld [vmem:[%s1039 + $0x2] sm:$0xff]
        %v1665 = vld [vmem:[%s1039 + $0xa] sm:$0x7f]
        %v1666 = vmul.f32 %v1664, %v1176
        %v1667 = vmul.f32 %v1665, %v1176
        %v1668 = vadd.f32 %v1662, %v1666
        %v1669 = vadd.f32 %v1663, %v1667
        %v1671 = vsel %vm1185, %v1669, 0
        %1673 = vmatprep.subr.mxu0 0.0
        %1674 = vmatpush1.msra.mxu0 %v1668
        %1675 = vmatprep.subr.mxu0 0.0
        %1676 = vmatpush1.msra.mxu0 %v1671
        %1677 = vmatprep.subr.mxu0 0.0
        %1678 = vmatpush1.msra.mxu0 0.0
        %1679 = vmatprep.subr.mxu0 0.0
        %1680 = vmatpush1.msra.mxu0 0.0
        %1681 = vmatprep.subr.mxu0 0.0
        %1682 = vmatpush1.msra.mxu0 0.0
        %1683 = vmatprep.subr.mxu0 0.0
        %1684 = vmatpush1.msra.mxu0 0.0
        %1685 = vmatprep.subr.mxu0 0.0
        %1686 = vmatpush1.msra.mxu0 0.0
        %1687 = vmatprep.subr.mxu0 0.0
        %1688 = vmatpush1.msra.mxu0 0.0
        %1689 = vmatprep.subr.mxu0 0.0
        %1690 = vmatpush1.msra.mxu0 0.0
        %1691 = vmatprep.subr.mxu0 0.0
        %1692 = vmatpush1.msra.mxu0 0.0
        %1693 = vmatprep.subr.mxu0 0.0
        %1694 = vmatpush1.msra.mxu0 0.0
        %1695 = vmatprep.subr.mxu0 0.0
        %1696 = vmatpush1.msra.mxu0 0.0
        %1697 = vmatprep.subr.mxu0 0.0
        %1698 = vmatpush1.msra.mxu0 0.0
        %1699 = vmatprep.subr.mxu0 0.0
        %1700 = vmatpush1.msra.mxu0 0.0
        %1701 = vmatprep.subr.mxu0 0.0
        %1702 = vmatpush1.msra.mxu0 0.0
        %1703 = vmatprep.subr.mxu0 0.0
        %1704 = vmatpush1.msra.mxu0 0.0
        %1705 = vmatprep.subr.mxu0 0.0
        %1706 = vmatpush1.msra.mxu0 0.0
        %1707 = vmatprep.subr.mxu0 0.0
        %1708 = vmatpush1.msra.mxu0 0.0
        %1709 = vmatprep.subr.mxu0 0.0
        %1710 = vmatpush1.msra.mxu0 0.0
        %1711 = vmatprep.subr.mxu0 0.0
        %1712 = vmatpush1.msra.mxu0 0.0
        %1713 = vmatprep.subr.mxu0 0.0
        %1714 = vmatpush1.msra.mxu0 0.0
        %1715 = vmatprep.subr.mxu0 0.0
        %1716 = vmatpush1.msra.mxu0 0.0
        %1717 = vmatprep.subr.mxu0 0.0
        %1718 = vmatpush1.msra.mxu0 0.0
        %1719 = vmatprep.subr.mxu0 0.0
        %1720 = vmatpush1.msra.mxu0 0.0
        %1721 = vmatprep.subr.mxu0 0.0
        %1722 = vmatpush1.msra.mxu0 0.0
        %1723 = vmatprep.subr.mxu0 0.0
        %1724 = vmatpush1.msra.mxu0 0.0
        %1725 = vmatprep.subr.mxu0 0.0
        %1726 = vmatpush1.msra.mxu0 0.0
        %1727 = vmatprep.subr.mxu0 0.0
        %1728 = vmatpush1.msra.mxu0 0.0
        %1729 = vmatprep.subr.mxu0 0.0
        %1730 = vmatpush1.msra.mxu0 0.0
        %1731 = vmatprep.subr.mxu0 0.0
        %1732 = vmatpush1.msra.mxu0 0.0
        %1733 = vmatprep.subr.mxu0 0.0
        %1734 = vmatpush1.msra.mxu0 0.0
        %1735 = vmatprep.subr.mxu0 0.0
        %1736 = vmatpush1.msra.mxu0 0.0
        %1737 = vmatprep.mubr.f32.mxu0 0.0
        %1738 = vmatmul.mubr.f32.gmra.mrb[0].mxu0 %v1183
        %v1739 = vpop.f32.mrb[0].mxu0
        %v1740 = vadd.f32 0.0, %v1739
        %v1741 = vpop.f32.mrb[0].mxu0
        %1742 = vdwg.mxu0
        %v1743 = vmul.f32 %v1652, %v1088
        %v1744 = vmul.f32 %v1653, %v1088
        %v1745 = vadd.f32 %v1743, 0.0
        %v1746 = vadd.f32 %v1744, 0.0
        %v1747 = vmul.f32 %v1658, %v1099
        %v1748 = vmul.f32 %v1659, %v1099
        %v1749 = vadd.f32 %v1745, %v1747
        %v1750 = vadd.f32 %v1746, %v1748
        %v1751 = vmul.f32 %v1664, %v1110
        %v1752 = vmul.f32 %v1665, %v1110
        %v1753 = vadd.f32 %v1749, %v1751
        %v1754 = vadd.f32 %v1750, %v1752
        %v1755 = vld [vmem:[%s1042] sm:$0xff]
        %v1756 = vld [vmem:[%s1042 + $0x8] sm:$0x7f]
        %v1757 = vmul.f32 %v1755, %v1121
        %v1758 = vmul.f32 %v1756, %v1121
        %v1759 = vadd.f32 %v1753, %v1757
        %v1760 = vadd.f32 %v1754, %v1758
        %v1761 = vld [vmem:[%s1042 + $0x1] sm:$0xff]
        %v1762 = vld [vmem:[%s1042 + $0x9] sm:$0x7f]
        %v1763 = vmul.f32 %v1761, %v1132
        %v1764 = vmul.f32 %v1762, %v1132
        %v1765 = vadd.f32 %v1759, %v1763
        %v1766 = vadd.f32 %v1760, %v1764
        %v1767 = vld [vmem:[%s1042 + $0x2] sm:$0xff]
        %v1768 = vld [vmem:[%s1042 + $0xa] sm:$0x7f]
        %v1769 = vmul.f32 %v1767, %v1143
        %v1770 = vmul.f32 %v1768, %v1143
        %v1771 = vadd.f32 %v1765, %v1769
        %v1772 = vadd.f32 %v1766, %v1770
        %v1773 = vld [vmem:[%s1045] sm:$0xff]
        %v1774 = vld [vmem:[%s1045 + $0x8] sm:$0x7f]
        %v1775 = vmul.f32 %v1773, %v1154
        %v1776 = vmul.f32 %v1774, %v1154
        %v1777 = vadd.f32 %v1771, %v1775
        %v1778 = vadd.f32 %v1772, %v1776
        %v1779 = vld [vmem:[%s1045 + $0x1] sm:$0xff]
        %v1780 = vld [vmem:[%s1045 + $0x9] sm:$0x7f]
        %v1781 = vmul.f32 %v1779, %v1165
        %v1782 = vmul.f32 %v1780, %v1165
        %v1783 = vadd.f32 %v1777, %v1781
        %v1784 = vadd.f32 %v1778, %v1782
        %v1785 = vld [vmem:[%s1045 + $0x2] sm:$0xff]
        %v1786 = vld [vmem:[%s1045 + $0xa] sm:$0x7f]
        %v1787 = vmul.f32 %v1785, %v1176
        %v1788 = vmul.f32 %v1786, %v1176
        %v1789 = vadd.f32 %v1783, %v1787
        %v1790 = vadd.f32 %v1784, %v1788
        %v1792 = vsel %vm1185, %v1790, 0
        %1794 = vmatprep.subr.mxu0 0.0
        %1795 = vmatpush1.msra.mxu0 %v1789
        %1796 = vmatprep.subr.mxu0 0.0
        %1797 = vmatpush1.msra.mxu0 %v1792
        %1798 = vmatprep.subr.mxu0 0.0
        %1799 = vmatpush1.msra.mxu0 0.0
        %1800 = vmatprep.subr.mxu0 0.0
        %1801 = vmatpush1.msra.mxu0 0.0
        %1802 = vmatprep.subr.mxu0 0.0
        %1803 = vmatpush1.msra.mxu0 0.0
        %1804 = vmatprep.subr.mxu0 0.0
        %1805 = vmatpush1.msra.mxu0 0.0
        %1806 = vmatprep.subr.mxu0 0.0
        %1807 = vmatpush1.msra.mxu0 0.0
        %1808 = vmatprep.subr.mxu0 0.0
        %1809 = vmatpush1.msra.mxu0 0.0
        %1810 = vmatprep.subr.mxu0 0.0
        %1811 = vmatpush1.msra.mxu0 0.0
        %1812 = vmatprep.subr.mxu0 0.0
        %1813 = vmatpush1.msra.mxu0 0.0
        %1814 = vmatprep.subr.mxu0 0.0
        %1815 = vmatpush1.msra.mxu0 0.0
        %1816 = vmatprep.subr.mxu0 0.0
        %1817 = vmatpush1.msra.mxu0 0.0
        %1818 = vmatprep.subr.mxu0 0.0
        %1819 = vmatpush1.msra.mxu0 0.0
        %1820 = vmatprep.subr.mxu0 0.0
        %1821 = vmatpush1.msra.mxu0 0.0
        %1822 = vmatprep.subr.mxu0 0.0
        %1823 = vmatpush1.msra.mxu0 0.0
        %1824 = vmatprep.subr.mxu0 0.0
        %1825 = vmatpush1.msra.mxu0 0.0
        %1826 = vmatprep.subr.mxu0 0.0
        %1827 = vmatpush1.msra.mxu0 0.0
        %1828 = vmatprep.subr.mxu0 0.0
        %1829 = vmatpush1.msra.mxu0 0.0
        %1830 = vmatprep.subr.mxu0 0.0
        %1831 = vmatpush1.msra.mxu0 0.0
        %1832 = vmatprep.subr.mxu0 0.0
        %1833 = vmatpush1.msra.mxu0 0.0
        %1834 = vmatprep.subr.mxu0 0.0
        %1835 = vmatpush1.msra.mxu0 0.0
        %1836 = vmatprep.subr.mxu0 0.0
        %1837 = vmatpush1.msra.mxu0 0.0
        %1838 = vmatprep.subr.mxu0 0.0
        %1839 = vmatpush1.msra.mxu0 0.0
        %1840 = vmatprep.subr.mxu0 0.0
        %1841 = vmatpush1.msra.mxu0 0.0
        %1842 = vmatprep.subr.mxu0 0.0
        %1843 = vmatpush1.msra.mxu0 0.0
        %1844 = vmatprep.subr.mxu0 0.0
        %1845 = vmatpush1.msra.mxu0 0.0
        %1846 = vmatprep.subr.mxu0 0.0
        %1847 = vmatpush1.msra.mxu0 0.0
        %1848 = vmatprep.subr.mxu0 0.0
        %1849 = vmatpush1.msra.mxu0 0.0
        %1850 = vmatprep.subr.mxu0 0.0
        %1851 = vmatpush1.msra.mxu0 0.0
        %1852 = vmatprep.subr.mxu0 0.0
        %1853 = vmatpush1.msra.mxu0 0.0
        %1854 = vmatprep.subr.mxu0 0.0
        %1855 = vmatpush1.msra.mxu0 0.0
        %1856 = vmatprep.subr.mxu0 0.0
        %1857 = vmatpush1.msra.mxu0 0.0
        %1858 = vmatprep.mubr.f32.mxu0 0.0
        %1859 = vmatmul.mubr.f32.gmra.mrb[0].mxu0 %v1183
        %v1860 = vpop.f32.mrb[0].mxu0
        %v1861 = vadd.f32 0.0, %v1860
        %v1862 = vpop.f32.mrb[0].mxu0
        %1863 = vdwg.mxu0
        %v1864 = vmul.f32 %v1773, %v1088
        %v1865 = vmul.f32 %v1774, %v1088
        %v1866 = vadd.f32 %v1864, 0.0
        %v1867 = vadd.f32 %v1865, 0.0
        %v1868 = vmul.f32 %v1779, %v1099
        %v1869 = vmul.f32 %v1780, %v1099
        %v1870 = vadd.f32 %v1866, %v1868
        %v1871 = vadd.f32 %v1867, %v1869
        %v1872 = vmul.f32 %v1785, %v1110
        %v1873 = vmul.f32 %v1786, %v1110
        %v1874 = vadd.f32 %v1870, %v1872
        %v1875 = vadd.f32 %v1871, %v1873
        %v1876 = vld [vmem:[%s1048] sm:$0xff]
        %v1877 = vld [vmem:[%s1048 + $0x8] sm:$0x7f]
        %v1878 = vmul.f32 %v1876, %v1121
        %v1879 = vmul.f32 %v1877, %v1121
        %v1880 = vadd.f32 %v1874, %v1878
        %v1881 = vadd.f32 %v1875, %v1879
        %v1882 = vld [vmem:[%s1048 + $0x1] sm:$0xff]
        %v1883 = vld [vmem:[%s1048 + $0x9] sm:$0x7f]
        %v1884 = vmul.f32 %v1882, %v1132
        %v1885 = vmul.f32 %v1883, %v1132
        %v1886 = vadd.f32 %v1880, %v1884
        %v1887 = vadd.f32 %v1881, %v1885
        %v1888 = vld [vmem:[%s1048 + $0x2] sm:$0xff]
        %v1889 = vld [vmem:[%s1048 + $0xa] sm:$0x7f]
        %v1890 = vmul.f32 %v1888, %v1143
        %v1891 = vmul.f32 %v1889, %v1143
        %v1892 = vadd.f32 %v1886, %v1890
        %v1893 = vadd.f32 %v1887, %v1891
        %v1894 = vld [vmem:[%s1051] sm:$0xff]
        %v1895 = vld [vmem:[%s1051 + $0x8] sm:$0x7f]
        %v1896 = vmul.f32 %v1894, %v1154
        %v1897 = vmul.f32 %v1895, %v1154
        %v1898 = vadd.f32 %v1892, %v1896
        %v1899 = vadd.f32 %v1893, %v1897
        %v1900 = vld [vmem:[%s1051 + $0x1] sm:$0xff]
        %v1901 = vld [vmem:[%s1051 + $0x9] sm:$0x7f]
        %v1902 = vmul.f32 %v1900, %v1165
        %v1903 = vmul.f32 %v1901, %v1165
        %v1904 = vadd.f32 %v1898, %v1902
        %v1905 = vadd.f32 %v1899, %v1903
        %v1906 = vld [vmem:[%s1051 + $0x2] sm:$0xff]
        %v1907 = vld [vmem:[%s1051 + $0xa] sm:$0x7f]
        %v1908 = vmul.f32 %v1906, %v1176
        %v1909 = vmul.f32 %v1907, %v1176
        %v1910 = vadd.f32 %v1904, %v1908
        %v1911 = vadd.f32 %v1905, %v1909
        %v1913 = vsel %vm1185, %v1911, 0
        %1915 = vmatprep.subr.mxu0 0.0
        %1916 = vmatpush1.msra.mxu0 %v1910
        %1917 = vmatprep.subr.mxu0 0.0
        %1918 = vmatpush1.msra.mxu0 %v1913
        %1919 = vmatprep.subr.mxu0 0.0
        %1920 = vmatpush1.msra.mxu0 0.0
        %1921 = vmatprep.subr.mxu0 0.0
        %1922 = vmatpush1.msra.mxu0 0.0
        %1923 = vmatprep.subr.mxu0 0.0
        %1924 = vmatpush1.msra.mxu0 0.0
        %1925 = vmatprep.subr.mxu0 0.0
        %1926 = vmatpush1.msra.mxu0 0.0
        %1927 = vmatprep.subr.mxu0 0.0
        %1928 = vmatpush1.msra.mxu0 0.0
        %1929 = vmatprep.subr.mxu0 0.0
        %1930 = vmatpush1.msra.mxu0 0.0
        %1931 = vmatprep.subr.mxu0 0.0
        %1932 = vmatpush1.msra.mxu0 0.0
        %1933 = vmatprep.subr.mxu0 0.0
        %1934 = vmatpush1.msra.mxu0 0.0
        %1935 = vmatprep.subr.mxu0 0.0
        %1936 = vmatpush1.msra.mxu0 0.0
        %1937 = vmatprep.subr.mxu0 0.0
        %1938 = vmatpush1.msra.mxu0 0.0
        %1939 = vmatprep.subr.mxu0 0.0
        %1940 = vmatpush1.msra.mxu0 0.0
        %1941 = vmatprep.subr.mxu0 0.0
        %1942 = vmatpush1.msra.mxu0 0.0
        %1943 = vmatprep.subr.mxu0 0.0
        %1944 = vmatpush1.msra.mxu0 0.0
        %1945 = vmatprep.subr.mxu0 0.0
        %1946 = vmatpush1.msra.mxu0 0.0
        %1947 = vmatprep.subr.mxu0 0.0
        %1948 = vmatpush1.msra.mxu0 0.0
        %1949 = vmatprep.subr.mxu0 0.0
        %1950 = vmatpush1.msra.mxu0 0.0
        %1951 = vmatprep.subr.mxu0 0.0
        %1952 = vmatpush1.msra.mxu0 0.0
        %1953 = vmatprep.subr.mxu0 0.0
        %1954 = vmatpush1.msra.mxu0 0.0
        %1955 = vmatprep.subr.mxu0 0.0
        %1956 = vmatpush1.msra.mxu0 0.0
        %1957 = vmatprep.subr.mxu0 0.0
        %1958 = vmatpush1.msra.mxu0 0.0
        %1959 = vmatprep.subr.mxu0 0.0
        %1960 = vmatpush1.msra.mxu0 0.0
        %1961 = vmatprep.subr.mxu0 0.0
        %1962 = vmatpush1.msra.mxu0 0.0
        %1963 = vmatprep.subr.mxu0 0.0
        %1964 = vmatpush1.msra.mxu0 0.0
        %1965 = vmatprep.subr.mxu0 0.0
        %1966 = vmatpush1.msra.mxu0 0.0
        %1967 = vmatprep.subr.mxu0 0.0
        %1968 = vmatpush1.msra.mxu0 0.0
        %1969 = vmatprep.subr.mxu0 0.0
        %1970 = vmatpush1.msra.mxu0 0.0
        %1971 = vmatprep.subr.mxu0 0.0
        %1972 = vmatpush1.msra.mxu0 0.0
        %1973 = vmatprep.subr.mxu0 0.0
        %1974 = vmatpush1.msra.mxu0 0.0
        %1975 = vmatprep.subr.mxu0 0.0
        %1976 = vmatpush1.msra.mxu0 0.0
        %1977 = vmatprep.subr.mxu0 0.0
        %1978 = vmatpush1.msra.mxu0 0.0
        %1979 = vmatprep.mubr.f32.mxu0 0.0
        %1980 = vmatmul.mubr.f32.gmra.mrb[0].mxu0 %v1183
        %v1981 = vpop.f32.mrb[0].mxu0
        %v1982 = vadd.f32 0.0, %v1981
        %v1983 = vpop.f32.mrb[0].mxu0
        %1984 = vdwg.mxu0
        %v1985 = vmul.f32 %v1894, %v1088
        %v1986 = vmul.f32 %v1895, %v1088
        %v1987 = vadd.f32 %v1985, 0.0
        %v1988 = vadd.f32 %v1986, 0.0
        %v1989 = vmul.f32 %v1900, %v1099
        %v1990 = vmul.f32 %v1901, %v1099
        %v1991 = vadd.f32 %v1987, %v1989
        %v1992 = vadd.f32 %v1988, %v1990
        %v1993 = vmul.f32 %v1906, %v1110
        %v1994 = vmul.f32 %v1907, %v1110
        %v1995 = vadd.f32 %v1991, %v1993
        %v1996 = vadd.f32 %v1992, %v1994
        %v1997 = vld [vmem:[%s1054] sm:$0xff]
        %v1998 = vld [vmem:[%s1054 + $0x8] sm:$0x7f]
        %v1999 = vmul.f32 %v1997, %v1121
        %v2000 = vmul.f32 %v1998, %v1121
        %v2001 = vadd.f32 %v1995, %v1999
        %v2002 = vadd.f32 %v1996, %v2000
        %v2003 = vld [vmem:[%s1054 + $0x1] sm:$0xff]
        %v2004 = vld [vmem:[%s1054 + $0x9] sm:$0x7f]
        %v2005 = vmul.f32 %v2003, %v1132
        %v2006 = vmul.f32 %v2004, %v1132
        %v2007 = vadd.f32 %v2001, %v2005
        %v2008 = vadd.f32 %v2002, %v2006
        %v2009 = vld [vmem:[%s1054 + $0x2] sm:$0xff]
        %v2010 = vld [vmem:[%s1054 + $0xa] sm:$0x7f]
        %v2011 = vmul.f32 %v2009, %v1143
        %v2012 = vmul.f32 %v2010, %v1143
        %v2013 = vadd.f32 %v2007, %v2011
        %v2014 = vadd.f32 %v2008, %v2012
        %v2015 = vld [vmem:[%s1057] sm:$0xff]
        %v2016 = vld [vmem:[%s1057 + $0x8] sm:$0x7f]
        %v2017 = vmul.f32 %v2015, %v1154
        %v2018 = vmul.f32 %v2016, %v1154
        %v2019 = vadd.f32 %v2013, %v2017
        %v2020 = vadd.f32 %v2014, %v2018
        %v2021 = vld [vmem:[%s1057 + $0x1] sm:$0xff]
        %v2022 = vld [vmem:[%s1057 + $0x9] sm:$0x7f]
        %v2023 = vmul.f32 %v2021, %v1165
        %v2024 = vmul.f32 %v2022, %v1165
        %v2025 = vadd.f32 %v2019, %v2023
        %v2026 = vadd.f32 %v2020, %v2024
        %v2027 = vld [vmem:[%s1057 + $0x2] sm:$0xff]
        %v2028 = vld [vmem:[%s1057 + $0xa] sm:$0x7f]
        %v2029 = vmul.f32 %v2027, %v1176
        %v2030 = vmul.f32 %v2028, %v1176
        %v2031 = vadd.f32 %v2025, %v2029
        %v2032 = vadd.f32 %v2026, %v2030
        %v2034 = vsel %vm1185, %v2032, 0
        %2036 = vmatprep.subr.mxu0 0.0
        %2037 = vmatpush1.msra.mxu0 %v2031
        %2038 = vmatprep.subr.mxu0 0.0
        %2039 = vmatpush1.msra.mxu0 %v2034
        %2040 = vmatprep.subr.mxu0 0.0
        %2041 = vmatpush1.msra.mxu0 0.0
        %2042 = vmatprep.subr.mxu0 0.0
        %2043 = vmatpush1.msra.mxu0 0.0
        %2044 = vmatprep.subr.mxu0 0.0
        %2045 = vmatpush1.msra.mxu0 0.0
        %2046 = vmatprep.subr.mxu0 0.0
        %2047 = vmatpush1.msra.mxu0 0.0
        %2048 = vmatprep.subr.mxu0 0.0
        %2049 = vmatpush1.msra.mxu0 0.0
        %2050 = vmatprep.subr.mxu0 0.0
        %2051 = vmatpush1.msra.mxu0 0.0
        %2052 = vmatprep.subr.mxu0 0.0
        %2053 = vmatpush1.msra.mxu0 0.0
        %2054 = vmatprep.subr.mxu0 0.0
        %2055 = vmatpush1.msra.mxu0 0.0
        %2056 = vmatprep.subr.mxu0 0.0
        %2057 = vmatpush1.msra.mxu0 0.0
        %2058 = vmatprep.subr.mxu0 0.0
        %2059 = vmatpush1.msra.mxu0 0.0
        %2060 = vmatprep.subr.mxu0 0.0
        %2061 = vmatpush1.msra.mxu0 0.0
        %2062 = vmatprep.subr.mxu0 0.0
        %2063 = vmatpush1.msra.mxu0 0.0
        %2064 = vmatprep.subr.mxu0 0.0
        %2065 = vmatpush1.msra.mxu0 0.0
        %2066 = vmatprep.subr.mxu0 0.0
        %2067 = vmatpush1.msra.mxu0 0.0
        %2068 = vmatprep.subr.mxu0 0.0
        %2069 = vmatpush1.msra.mxu0 0.0
        %2070 = vmatprep.subr.mxu0 0.0
        %2071 = vmatpush1.msra.mxu0 0.0
        %2072 = vmatprep.subr.mxu0 0.0
        %2073 = vmatpush1.msra.mxu0 0.0
        %2074 = vmatprep.subr.mxu0 0.0
        %2075 = vmatpush1.msra.mxu0 0.0
        %2076 = vmatprep.subr.mxu0 0.0
        %2077 = vmatpush1.msra.mxu0 0.0
        %2078 = vmatprep.subr.mxu0 0.0
        %2079 = vmatpush1.msra.mxu0 0.0
        %2080 = vmatprep.subr.mxu0 0.0
        %2081 = vmatpush1.msra.mxu0 0.0
        %2082 = vmatprep.subr.mxu0 0.0
        %2083 = vmatpush1.msra.mxu0 0.0
        %2084 = vmatprep.subr.mxu0 0.0
        %2085 = vmatpush1.msra.mxu0 0.0
        %2086 = vmatprep.subr.mxu0 0.0
        %2087 = vmatpush1.msra.mxu0 0.0
        %2088 = vmatprep.subr.mxu0 0.0
        %2089 = vmatpush1.msra.mxu0 0.0
        %2090 = vmatprep.subr.mxu0 0.0
        %2091 = vmatpush1.msra.mxu0 0.0
        %2092 = vmatprep.subr.mxu0 0.0
        %2093 = vmatpush1.msra.mxu0 0.0
        %2094 = vmatprep.subr.mxu0 0.0
        %2095 = vmatpush1.msra.mxu0 0.0
        %2096 = vmatprep.subr.mxu0 0.0
        %2097 = vmatpush1.msra.mxu0 0.0
        %2098 = vmatprep.subr.mxu0 0.0
        %2099 = vmatpush1.msra.mxu0 0.0
        %2100 = vmatprep.mubr.f32.mxu0 0.0
        %2101 = vmatmul.mubr.f32.gmra.mrb[0].mxu0 %v1183
        %v2102 = vpop.f32.mrb[0].mxu0
        %v2103 = vadd.f32 0.0, %v2102
        %v2104 = vpop.f32.mrb[0].mxu0
        %2105 = vdwg.mxu0
        %2106 = vst.msk [vmem:[#allocation3] sm:$0xff] %vm458, 0.0
        %2107 = vst.msk [vmem:[#allocation3 + $0x8] sm:$0xff] %vm458, 0.0
        %2108 = vst.msk [vmem:[#allocation3 + $0x10] sm:$0xff] %vm458, 0.0
        %2109 = vst.msk [vmem:[#allocation3 + $0x18] sm:$0xff] %vm458, 0.0
        %2110 = vst.msk [vmem:[#allocation3 + $0x20] sm:$0xff] %vm458, 0.0
        %2111 = vst.msk [vmem:[#allocation3 + $0x28] sm:$0xff] %vm458, 0.0
        %2112 = vst.msk [vmem:[#allocation3 + $0x30] sm:$0xff] %vm458, 0.0
        %2113 = vst.msk [vmem:[#allocation3 + $0x38] sm:$0xff] %vm458, 0.0
        %2114 = vst.msk [vmem:[#allocation3 + $0x40] sm:$0xff] %vm458, 0.0
        %2115 = vst.msk [vmem:[#allocation3 + $0x48] sm:$0xff] %vm458, 0.0
        %2116 = vst.msk [vmem:[#allocation3 + $0x50] sm:$0xff] %vm458, 0.0
        %2117 = vst.msk [vmem:[#allocation3 + $0x58] sm:$0xff] %vm458, 0.0
        %2118 = vst.msk [vmem:[#allocation3 + $0x60] sm:$0xff] %vm458, 0.0
        %2119 = vst.msk [vmem:[#allocation3 + $0x68] sm:$0xff] %vm458, 0.0
        %2120 = vst.msk [vmem:[#allocation3 + $0x70] sm:$0xff] %vm458, 0.0
        %2121 = vst.msk [vmem:[#allocation3 + $0x78] sm:$0xff] %vm458, 0.0
        %v2122 = vld [vmem:[#allocation2] sm:$0xff]
        %v2123 = vld [vmem:[#allocation2 + $0x8] sm:$0xff]
        %v2124 = vld [vmem:[#allocation2 + $0x10] sm:$0x7]
        %v2125 = vadd.f32 %v2122, 0.0
        %v2126 = vadd.f32 %v2123, 0.0
        %v2127 = vadd.f32 %v2124, 0.0
        %v2128 = vld [vmem:[%s1012] sm:$0xff]
        %v2129 = vld [vmem:[%s1012 + $0x8] sm:$0xff]
        %v2130 = vld [vmem:[%s1012 + $0x10] sm:$0x7]
        %v2131 = vadd.f32 %v2125, %v2128
        %v2132 = vadd.f32 %v2126, %v2129
        %v2133 = vadd.f32 %v2127, %v2130
        %v2134 = vld [vmem:[%s1015] sm:$0xff]
        %v2135 = vld [vmem:[%s1015 + $0x8] sm:$0xff]
        %v2136 = vld [vmem:[%s1015 + $0x10] sm:$0x7]
        %v2137 = vadd.f32 %v2131, %v2134
        %v2138 = vadd.f32 %v2132, %v2135
        %v2139 = vadd.f32 %v2133, %v2136
        %vm2140 = vcmask 154624
        %v2142 = vsel %vm2140, %v1080, 0
        %v2145 = vsel %vm2140, %v1081, 0
        %vm2147 = vcmask 1042432
        %v2149 = vsel %vm2147, %v2139, 0
        %2151 = vmatprep.subr.mxu0 0.0
        %2152 = vmatpush1.msra.mxu0 %v2137
        %2153 = vmatprep.subr.mxu0 0.0
        %2154 = vmatpush1.msra.mxu0 %v2138
        %2155 = vmatprep.subr.mxu0 0.0
        %2156 = vmatpush1.msra.mxu0 %v2149
        %2157 = vmatprep.subr.mxu0 0.0
        %2158 = vmatpush1.msra.mxu0 0.0
        %2159 = vmatprep.subr.mxu0 0.0
        %2160 = vmatpush1.msra.mxu0 0.0
        %2161 = vmatprep.subr.mxu0 0.0
        %2162 = vmatpush1.msra.mxu0 0.0
        %2163 = vmatprep.subr.mxu0 0.0
        %2164 = vmatpush1.msra.mxu0 0.0
        %2165 = vmatprep.subr.mxu0 0.0
        %2166 = vmatpush1.msra.mxu0 0.0
        %2167 = vmatprep.subr.mxu0 0.0
        %2168 = vmatpush1.msra.mxu0 0.0
        %2169 = vmatprep.subr.mxu0 0.0
        %2170 = vmatpush1.msra.mxu0 0.0
        %2171 = vmatprep.subr.mxu0 0.0
        %2172 = vmatpush1.msra.mxu0 0.0
        %2173 = vmatprep.subr.mxu0 0.0
        %2174 = vmatpush1.msra.mxu0 0.0
        %2175 = vmatprep.subr.mxu0 0.0
        %2176 = vmatpush1.msra.mxu0 0.0
        %2177 = vmatprep.subr.mxu0 0.0
        %2178 = vmatpush1.msra.mxu0 0.0
        %2179 = vmatprep.subr.mxu0 0.0
        %2180 = vmatpush1.msra.mxu0 0.0
        %2181 = vmatprep.subr.mxu0 0.0
        %2182 = vmatpush1.msra.mxu0 0.0
        %2183 = vmatprep.subr.mxu0 0.0
        %2184 = vmatpush1.msra.mxu0 0.0
        %2185 = vmatprep.subr.mxu0 0.0
        %2186 = vmatpush1.msra.mxu0 0.0
        %2187 = vmatprep.subr.mxu0 0.0
        %2188 = vmatpush1.msra.mxu0 0.0
        %2189 = vmatprep.subr.mxu0 0.0
        %2190 = vmatpush1.msra.mxu0 0.0
        %2191 = vmatprep.subr.mxu0 0.0
        %2192 = vmatpush1.msra.mxu0 0.0
        %2193 = vmatprep.subr.mxu0 0.0
        %2194 = vmatpush1.msra.mxu0 0.0
        %2195 = vmatprep.subr.mxu0 0.0
        %2196 = vmatpush1.msra.mxu0 0.0
        %2197 = vmatprep.subr.mxu0 0.0
        %2198 = vmatpush1.msra.mxu0 0.0
        %2199 = vmatprep.subr.mxu0 0.0
        %2200 = vmatpush1.msra.mxu0 0.0
        %2201 = vmatprep.subr.mxu0 0.0
        %2202 = vmatpush1.msra.mxu0 0.0
        %2203 = vmatprep.subr.mxu0 0.0
        %2204 = vmatpush1.msra.mxu0 0.0
        %2205 = vmatprep.subr.mxu0 0.0
        %2206 = vmatpush1.msra.mxu0 0.0
        %2207 = vmatprep.subr.mxu0 0.0
        %2208 = vmatpush1.msra.mxu0 0.0
        %2209 = vmatprep.subr.mxu0 0.0
        %2210 = vmatpush1.msra.mxu0 0.0
        %2211 = vmatprep.subr.mxu0 0.0
        %2212 = vmatpush1.msra.mxu0 0.0
        %2213 = vmatprep.subr.mxu0 0.0
        %2214 = vmatpush1.msra.mxu0 0.0
        %2215 = vmatprep.mubr.f32.mxu0 0.0
        %2216 = vmatmul.mubr.f32.gmra.mrb[0].mxu0 %v2142
        %v2217 = vpop.f32.mrb[0].mxu0
        %v2218 = vadd.f32 0.0, %v2217
        %v2219 = vpop.f32.mrb[0].mxu0
        %2220 = vmatprep.mubr.f32.mxu0 0.0
        %2221 = vmatmul.mubr.f32.gmra.mrb[0].mxu0 %v2145
        %v2222 = vpop.f32.mrb[0].mxu0
        %v2223 = vadd.f32 0.0, %v2222
        %v2224 = vpop.f32.mrb[0].mxu0
        %2225 = vdwg.mxu0
        %2226 = vst.msk [vmem:[#allocation3] sm:$0xff] %vm458, %v2218
        %vm2227 = vcmask 253952
        %2228 = vst.msk [vmem:[#allocation3 + $0x8] sm:$0x1] %vm2227, %v2223
        %v2229 = vld [vmem:[%s1015] sm:$0xff]
        %v2230 = vld [vmem:[%s1015 + $0x8] sm:$0xff]
        %v2231 = vld [vmem:[%s1015 + $0x10] sm:$0x7]
        %v2232 = vadd.f32 %v2229, 0.0
        %v2233 = vadd.f32 %v2230, 0.0
        %v2234 = vadd.f32 %v2231, 0.0
        %v2235 = vld [vmem:[%s1018] sm:$0xff]
        %v2236 = vld [vmem:[%s1018 + $0x8] sm:$0xff]
        %v2237 = vld [vmem:[%s1018 + $0x10] sm:$0x7]
        %v2238 = vadd.f32 %v2232, %v2235
        %v2239 = vadd.f32 %v2233, %v2236
        %v2240 = vadd.f32 %v2234, %v2237
        %v2241 = vld [vmem:[%s1021] sm:$0xff]
        %v2242 = vld [vmem:[%s1021 + $0x8] sm:$0xff]
        %v2243 = vld [vmem:[%s1021 + $0x10] sm:$0x7]
        %v2244 = vadd.f32 %v2238, %v2241
        %v2245 = vadd.f32 %v2239, %v2242
        %v2246 = vadd.f32 %v2240, %v2243
        %v2248 = vsel %vm2147, %v2246, 0
        %2250 = vmatprep.subr.mxu0 0.0
        %2251 = vmatpush1.msra.mxu0 %v2244
        %2252 = vmatprep.subr.mxu0 0.0
        %2253 = vmatpush1.msra.mxu0 %v2245
        %2254 = vmatprep.subr.mxu0 0.0
        %2255 = vmatpush1.msra.mxu0 %v2248
        %2256 = vmatprep.subr.mxu0 0.0
        %2257 = vmatpush1.msra.mxu0 0.0
        %2258 = vmatprep.subr.mxu0 0.0
        %2259 = vmatpush1.msra.mxu0 0.0
        %2260 = vmatprep.subr.mxu0 0.0
        %2261 = vmatpush1.msra.mxu0 0.0
        %2262 = vmatprep.subr.mxu0 0.0
        %2263 = vmatpush1.msra.mxu0 0.0
        %2264 = vmatprep.subr.mxu0 0.0
        %2265 = vmatpush1.msra.mxu0 0.0
        %2266 = vmatprep.subr.mxu0 0.0
        %2267 = vmatpush1.msra.mxu0 0.0
        %2268 = vmatprep.subr.mxu0 0.0
        %2269 = vmatpush1.msra.mxu0 0.0
        %2270 = vmatprep.subr.mxu0 0.0
        %2271 = vmatpush1.msra.mxu0 0.0
        %2272 = vmatprep.subr.mxu0 0.0
        %2273 = vmatpush1.msra.mxu0 0.0
        %2274 = vmatprep.subr.mxu0 0.0
        %2275 = vmatpush1.msra.mxu0 0.0
        %2276 = vmatprep.subr.mxu0 0.0
        %2277 = vmatpush1.msra.mxu0 0.0
        %2278 = vmatprep.subr.mxu0 0.0
        %2279 = vmatpush1.msra.mxu0 0.0
        %2280 = vmatprep.subr.mxu0 0.0
        %2281 = vmatpush1.msra.mxu0 0.0
        %2282 = vmatprep.subr.mxu0 0.0
        %2283 = vmatpush1.msra.mxu0 0.0
        %2284 = vmatprep.subr.mxu0 0.0
        %2285 = vmatpush1.msra.mxu0 0.0
        %2286 = vmatprep.subr.mxu0 0.0
        %2287 = vmatpush1.msra.mxu0 0.0
        %2288 = vmatprep.subr.mxu0 0.0
        %2289 = vmatpush1.msra.mxu0 0.0
        %2290 = vmatprep.subr.mxu0 0.0
        %2291 = vmatpush1.msra.mxu0 0.0
        %2292 = vmatprep.subr.mxu0 0.0
        %2293 = vmatpush1.msra.mxu0 0.0
        %2294 = vmatprep.subr.mxu0 0.0
        %2295 = vmatpush1.msra.mxu0 0.0
        %2296 = vmatprep.subr.mxu0 0.0
        %2297 = vmatpush1.msra.mxu0 0.0
        %2298 = vmatprep.subr.mxu0 0.0
        %2299 = vmatpush1.msra.mxu0 0.0
        %2300 = vmatprep.subr.mxu0 0.0
        %2301 = vmatpush1.msra.mxu0 0.0
        %2302 = vmatprep.subr.mxu0 0.0
        %2303 = vmatpush1.msra.mxu0 0.0
        %2304 = vmatprep.subr.mxu0 0.0
        %2305 = vmatpush1.msra.mxu0 0.0
        %2306 = vmatprep.subr.mxu0 0.0
        %2307 = vmatpush1.msra.mxu0 0.0
        %2308 = vmatprep.subr.mxu0 0.0
        %2309 = vmatpush1.msra.mxu0 0.0
        %2310 = vmatprep.subr.mxu0 0.0
        %2311 = vmatpush1.msra.mxu0 0.0
        %2312 = vmatprep.subr.mxu0 0.0
        %2313 = vmatpush1.msra.mxu0 0.0
        %2314 = vmatprep.mubr.f32.mxu0 0.0
        %2315 = vmatmul.mubr.f32.gmra.mrb[0].mxu0 %v2142
        %v2316 = vpop.f32.mrb[0].mxu0
        %v2317 = vadd.f32 0.0, %v2316
        %v2318 = vpop.f32.mrb[0].mxu0
        %2319 = vmatprep.mubr.f32.mxu0 0.0
        %2320 = vmatmul.mubr.f32.gmra.mrb[0].mxu0 %v2145
        %v2321 = vpop.f32.mrb[0].mxu0
        %v2322 = vadd.f32 0.0, %v2321
        %v2323 = vpop.f32.mrb[0].mxu0
        %2324 = vdwg.mxu0
        %2325 = vst.msk [vmem:[#allocation3 + $0x9] sm:$0xff] %vm458, %v2317
        %2326 = vst.msk [vmem:[#allocation3 + $0x11] sm:$0x1] %vm2227, %v2322
        %v2327 = vld [vmem:[%s1021] sm:$0xff]
        %v2328 = vld [vmem:[%s1021 + $0x8] sm:$0xff]
        %v2329 = vld [vmem:[%s1021 + $0x10] sm:$0x7]
        %v2330 = vadd.f32 %v2327, 0.0
        %v2331 = vadd.f32 %v2328, 0.0
        %v2332 = vadd.f32 %v2329, 0.0
        %v2333 = vld [vmem:[%s1024] sm:$0xff]
        %v2334 = vld [vmem:[%s1024 + $0x8] sm:$0xff]
        %v2335 = vld [vmem:[%s1024 + $0x10] sm:$0x7]
        %v2336 = vadd.f32 %v2330, %v2333
        %v2337 = vadd.f32 %v2331, %v2334
        %v2338 = vadd.f32 %v2332, %v2335
        %v2339 = vld [vmem:[%s1027] sm:$0xff]
        %v2340 = vld [vmem:[%s1027 + $0x8] sm:$0xff]
        %v2341 = vld [vmem:[%s1027 + $0x10] sm:$0x7]
        %v2342 = vadd.f32 %v2336, %v2339
        %v2343 = vadd.f32 %v2337, %v2340
        %v2344 = vadd.f32 %v2338, %v2341
        %v2346 = vsel %vm2147, %v2344, 0
        %2348 = vmatprep.subr.mxu0 0.0
        %2349 = vmatpush1.msra.mxu0 %v2342
        %2350 = vmatprep.subr.mxu0 0.0
        %2351 = vmatpush1.msra.mxu0 %v2343
        %2352 = vmatprep.subr.mxu0 0.0
        %2353 = vmatpush1.msra.mxu0 %v2346
        %2354 = vmatprep.subr.mxu0 0.0
        %2355 = vmatpush1.msra.mxu0 0.0
        %2356 = vmatprep.subr.mxu0 0.0
        %2357 = vmatpush1.msra.mxu0 0.0
        %2358 = vmatprep.subr.mxu0 0.0
        %2359 = vmatpush1.msra.mxu0 0.0
        %2360 = vmatprep.subr.mxu0 0.0
        %2361 = vmatpush1.msra.mxu0 0.0
        %2362 = vmatprep.subr.mxu0 0.0
        %2363 = vmatpush1.msra.mxu0 0.0
        %2364 = vmatprep.subr.mxu0 0.0
        %2365 = vmatpush1.msra.mxu0 0.0
        %2366 = vmatprep.subr.mxu0 0.0
        %2367 = vmatpush1.msra.mxu0 0.0
        %2368 = vmatprep.subr.mxu0 0.0
        %2369 = vmatpush1.msra.mxu0 0.0
        %2370 = vmatprep.subr.mxu0 0.0
        %2371 = vmatpush1.msra.mxu0 0.0
        %2372 = vmatprep.subr.mxu0 0.0
        %2373 = vmatpush1.msra.mxu0 0.0
        %2374 = vmatprep.subr.mxu0 0.0
        %2375 = vmatpush1.msra.mxu0 0.0
        %2376 = vmatprep.subr.mxu0 0.0
        %2377 = vmatpush1.msra.mxu0 0.0
        %2378 = vmatprep.subr.mxu0 0.0
        %2379 = vmatpush1.msra.mxu0 0.0
        %2380 = vmatprep.subr.mxu0 0.0
        %2381 = vmatpush1.msra.mxu0 0.0
        %2382 = vmatprep.subr.mxu0 0.0
        %2383 = vmatpush1.msra.mxu0 0.0
        %2384 = vmatprep.subr.mxu0 0.0
        %2385 = vmatpush1.msra.mxu0 0.0
        %2386 = vmatprep.subr.mxu0 0.0
        %2387 = vmatpush1.msra.mxu0 0.0
        %2388 = vmatprep.subr.mxu0 0.0
        %2389 = vmatpush1.msra.mxu0 0.0
        %2390 = vmatprep.subr.mxu0 0.0
        %2391 = vmatpush1.msra.mxu0 0.0
        %2392 = vmatprep.subr.mxu0 0.0
        %2393 = vmatpush1.msra.mxu0 0.0
        %2394 = vmatprep.subr.mxu0 0.0
        %2395 = vmatpush1.msra.mxu0 0.0
        %2396 = vmatprep.subr.mxu0 0.0
        %2397 = vmatpush1.msra.mxu0 0.0
        %2398 = vmatprep.subr.mxu0 0.0
        %2399 = vmatpush1.msra.mxu0 0.0
        %2400 = vmatprep.subr.mxu0 0.0
        %2401 = vmatpush1.msra.mxu0 0.0
        %2402 = vmatprep.subr.mxu0 0.0
        %2403 = vmatpush1.msra.mxu0 0.0
        %2404 = vmatprep.subr.mxu0 0.0
        %2405 = vmatpush1.msra.mxu0 0.0
        %2406 = vmatprep.subr.mxu0 0.0
        %2407 = vmatpush1.msra.mxu0 0.0
        %2408 = vmatprep.subr.mxu0 0.0
        %2409 = vmatpush1.msra.mxu0 0.0
        %2410 = vmatprep.subr.mxu0 0.0
        %2411 = vmatpush1.msra.mxu0 0.0
        %2412 = vmatprep.mubr.f32.mxu0 0.0
        %2413 = vmatmul.mubr.f32.gmra.mrb[0].mxu0 %v2142
        %v2414 = vpop.f32.mrb[0].mxu0
        %v2415 = vadd.f32 0.0, %v2414
        %v2416 = vpop.f32.mrb[0].mxu0
        %2417 = vmatprep.mubr.f32.mxu0 0.0
        %2418 = vmatmul.mubr.f32.gmra.mrb[0].mxu0 %v2145
        %v2419 = vpop.f32.mrb[0].mxu0
        %v2420 = vadd.f32 0.0, %v2419
        %v2421 = vpop.f32.mrb[0].mxu0
        %2422 = vdwg.mxu0
        %2423 = vst.msk [vmem:[#allocation3 + $0x12] sm:$0xff] %vm458, %v2415
        %2424 = vst.msk [vmem:[#allocation3 + $0x1a] sm:$0x1] %vm2227, %v2420
        %v2425 = vld [vmem:[%s1027] sm:$0xff]
        %v2426 = vld [vmem:[%s1027 + $0x8] sm:$0xff]
        %v2427 = vld [vmem:[%s1027 + $0x10] sm:$0x7]
        %v2428 = vadd.f32 %v2425, 0.0
        %v2429 = vadd.f32 %v2426, 0.0
        %v2430 = vadd.f32 %v2427, 0.0
        %v2431 = vld [vmem:[%s1030] sm:$0xff]
        %v2432 = vld [vmem:[%s1030 + $0x8] sm:$0xff]
        %v2433 = vld [vmem:[%s1030 + $0x10] sm:$0x7]
        %v2434 = vadd.f32 %v2428, %v2431
        %v2435 = vadd.f32 %v2429, %v2432
        %v2436 = vadd.f32 %v2430, %v2433
        %v2437 = vld [vmem:[%s1033] sm:$0xff]
        %v2438 = vld [vmem:[%s1033 + $0x8] sm:$0xff]
        %v2439 = vld [vmem:[%s1033 + $0x10] sm:$0x7]
        %v2440 = vadd.f32 %v2434, %v2437
        %v2441 = vadd.f32 %v2435, %v2438
        %v2442 = vadd.f32 %v2436, %v2439
        %v2444 = vsel %vm2147, %v2442, 0
        %2446 = vmatprep.subr.mxu0 0.0
        %2447 = vmatpush1.msra.mxu0 %v2440
        %2448 = vmatprep.subr.mxu0 0.0
        %2449 = vmatpush1.msra.mxu0 %v2441
        %2450 = vmatprep.subr.mxu0 0.0
        %2451 = vmatpush1.msra.mxu0 %v2444
        %2452 = vmatprep.subr.mxu0 0.0
        %2453 = vmatpush1.msra.mxu0 0.0
        %2454 = vmatprep.subr.mxu0 0.0
        %2455 = vmatpush1.msra.mxu0 0.0
        %2456 = vmatprep.subr.mxu0 0.0
        %2457 = vmatpush1.msra.mxu0 0.0
        %2458 = vmatprep.subr.mxu0 0.0
        %2459 = vmatpush1.msra.mxu0 0.0
        %2460 = vmatprep.subr.mxu0 0.0
        %2461 = vmatpush1.msra.mxu0 0.0
        %2462 = vmatprep.subr.mxu0 0.0
        %2463 = vmatpush1.msra.mxu0 0.0
        %2464 = vmatprep.subr.mxu0 0.0
        %2465 = vmatpush1.msra.mxu0 0.0
        %2466 = vmatprep.subr.mxu0 0.0
        %2467 = vmatpush1.msra.mxu0 0.0
        %2468 = vmatprep.subr.mxu0 0.0
        %2469 = vmatpush1.msra.mxu0 0.0
        %2470 = vmatprep.subr.mxu0 0.0
        %2471 = vmatpush1.msra.mxu0 0.0
        %2472 = vmatprep.subr.mxu0 0.0
        %2473 = vmatpush1.msra.mxu0 0.0
        %2474 = vmatprep.subr.mxu0 0.0
        %2475 = vmatpush1.msra.mxu0 0.0
        %2476 = vmatprep.subr.mxu0 0.0
        %2477 = vmatpush1.msra.mxu0 0.0
        %2478 = vmatprep.subr.mxu0 0.0
        %2479 = vmatpush1.msra.mxu0 0.0
        %2480 = vmatprep.subr.mxu0 0.0
        %2481 = vmatpush1.msra.mxu0 0.0
        %2482 = vmatprep.subr.mxu0 0.0
        %2483 = vmatpush1.msra.mxu0 0.0
        %2484 = vmatprep.subr.mxu0 0.0
        %2485 = vmatpush1.msra.mxu0 0.0
        %2486 = vmatprep.subr.mxu0 0.0
        %2487 = vmatpush1.msra.mxu0 0.0
        %2488 = vmatprep.subr.mxu0 0.0
        %2489 = vmatpush1.msra.mxu0 0.0
        %2490 = vmatprep.subr.mxu0 0.0
        %2491 = vmatpush1.msra.mxu0 0.0
        %2492 = vmatprep.subr.mxu0 0.0
        %2493 = vmatpush1.msra.mxu0 0.0
        %2494 = vmatprep.subr.mxu0 0.0
        %2495 = vmatpush1.msra.mxu0 0.0
        %2496 = vmatprep.subr.mxu0 0.0
        %2497 = vmatpush1.msra.mxu0 0.0
        %2498 = vmatprep.subr.mxu0 0.0
        %2499 = vmatpush1.msra.mxu0 0.0
        %2500 = vmatprep.subr.mxu0 0.0
        %2501 = vmatpush1.msra.mxu0 0.0
        %2502 = vmatprep.subr.mxu0 0.0
        %2503 = vmatpush1.msra.mxu0 0.0
        %2504 = vmatprep.subr.mxu0 0.0
        %2505 = vmatpush1.msra.mxu0 0.0
        %2506 = vmatprep.subr.mxu0 0.0
        %2507 = vmatpush1.msra.mxu0 0.0
        %2508 = vmatprep.subr.mxu0 0.0
        %2509 = vmatpush1.msra.mxu0 0.0
        %2510 = vmatprep.mubr.f32.mxu0 0.0
        %2511 = vmatmul.mubr.f32.gmra.mrb[0].mxu0 %v2142
        %v2512 = vpop.f32.mrb[0].mxu0
        %v2513 = vadd.f32 0.0, %v2512
        %v2514 = vpop.f32.mrb[0].mxu0
        %2515 = vmatprep.mubr.f32.mxu0 0.0
        %2516 = vmatmul.mubr.f32.gmra.mrb[0].mxu0 %v2145
        %v2517 = vpop.f32.mrb[0].mxu0
        %v2518 = vadd.f32 0.0, %v2517
        %v2519 = vpop.f32.mrb[0].mxu0
        %2520 = vdwg.mxu0
        %2521 = vst.msk [vmem:[#allocation3 + $0x1b] sm:$0xff] %vm458, %v2513
        %2522 = vst.msk [vmem:[#allocation3 + $0x23] sm:$0x1] %vm2227, %v2518
        %v2523 = vld [vmem:[%s1033] sm:$0xff]
        %v2524 = vld [vmem:[%s1033 + $0x8] sm:$0xff]
        %v2525 = vld [vmem:[%s1033 + $0x10] sm:$0x7]
        %v2526 = vadd.f32 %v2523, 0.0
        %v2527 = vadd.f32 %v2524, 0.0
        %v2528 = vadd.f32 %v2525, 0.0
        %v2529 = vld [vmem:[%s1036] sm:$0xff]
        %v2530 = vld [vmem:[%s1036 + $0x8] sm:$0xff]
        %v2531 = vld [vmem:[%s1036 + $0x10] sm:$0x7]
        %v2532 = vadd.f32 %v2526, %v2529
        %v2533 = vadd.f32 %v2527, %v2530
        %v2534 = vadd.f32 %v2528, %v2531
        %v2535 = vld [vmem:[%s1039] sm:$0xff]
        %v2536 = vld [vmem:[%s1039 + $0x8] sm:$0xff]
        %v2537 = vld [vmem:[%s1039 + $0x10] sm:$0x7]
        %v2538 = vadd.f32 %v2532, %v2535
        %v2539 = vadd.f32 %v2533, %v2536
        %v2540 = vadd.f32 %v2534, %v2537
        %v2542 = vsel %vm2147, %v2540, 0
        %2544 = vmatprep.subr.mxu0 0.0
        %2545 = vmatpush1.msra.mxu0 %v2538
        %2546 = vmatprep.subr.mxu0 0.0
        %2547 = vmatpush1.msra.mxu0 %v2539
        %2548 = vmatprep.subr.mxu0 0.0
        %2549 = vmatpush1.msra.mxu0 %v2542
        %2550 = vmatprep.subr.mxu0 0.0
        %2551 = vmatpush1.msra.mxu0 0.0
        %2552 = vmatprep.subr.mxu0 0.0
        %2553 = vmatpush1.msra.mxu0 0.0
        %2554 = vmatprep.subr.mxu0 0.0
        %2555 = vmatpush1.msra.mxu0 0.0
        %2556 = vmatprep.subr.mxu0 0.0
        %2557 = vmatpush1.msra.mxu0 0.0
        %2558 = vmatprep.subr.mxu0 0.0
        %2559 = vmatpush1.msra.mxu0 0.0
        %2560 = vmatprep.subr.mxu0 0.0
        %2561 = vmatpush1.msra.mxu0 0.0
        %2562 = vmatprep.subr.mxu0 0.0
        %2563 = vmatpush1.msra.mxu0 0.0
        %2564 = vmatprep.subr.mxu0 0.0
        %2565 = vmatpush1.msra.mxu0 0.0
        %2566 = vmatprep.subr.mxu0 0.0
        %2567 = vmatpush1.msra.mxu0 0.0
        %2568 = vmatprep.subr.mxu0 0.0
        %2569 = vmatpush1.msra.mxu0 0.0
        %2570 = vmatprep.subr.mxu0 0.0
        %2571 = vmatpush1.msra.mxu0 0.0
        %2572 = vmatprep.subr.mxu0 0.0
        %2573 = vmatpush1.msra.mxu0 0.0
        %2574 = vmatprep.subr.mxu0 0.0
        %2575 = vmatpush1.msra.mxu0 0.0
        %2576 = vmatprep.subr.mxu0 0.0
        %2577 = vmatpush1.msra.mxu0 0.0
        %2578 = vmatprep.subr.mxu0 0.0
        %2579 = vmatpush1.msra.mxu0 0.0
        %2580 = vmatprep.subr.mxu0 0.0
        %2581 = vmatpush1.msra.mxu0 0.0
        %2582 = vmatprep.subr.mxu0 0.0
        %2583 = vmatpush1.msra.mxu0 0.0
        %2584 = vmatprep.subr.mxu0 0.0
        %2585 = vmatpush1.msra.mxu0 0.0
        %2586 = vmatprep.subr.mxu0 0.0
        %2587 = vmatpush1.msra.mxu0 0.0
        %2588 = vmatprep.subr.mxu0 0.0
        %2589 = vmatpush1.msra.mxu0 0.0
        %2590 = vmatprep.subr.mxu0 0.0
        %2591 = vmatpush1.msra.mxu0 0.0
        %2592 = vmatprep.subr.mxu0 0.0
        %2593 = vmatpush1.msra.mxu0 0.0
        %2594 = vmatprep.subr.mxu0 0.0
        %2595 = vmatpush1.msra.mxu0 0.0
        %2596 = vmatprep.subr.mxu0 0.0
        %2597 = vmatpush1.msra.mxu0 0.0
        %2598 = vmatprep.subr.mxu0 0.0
        %2599 = vmatpush1.msra.mxu0 0.0
        %2600 = vmatprep.subr.mxu0 0.0
        %2601 = vmatpush1.msra.mxu0 0.0
        %2602 = vmatprep.subr.mxu0 0.0
        %2603 = vmatpush1.msra.mxu0 0.0
        %2604 = vmatprep.subr.mxu0 0.0
        %2605 = vmatpush1.msra.mxu0 0.0
        %2606 = vmatprep.subr.mxu0 0.0
        %2607 = vmatpush1.msra.mxu0 0.0
        %2608 = vmatprep.mubr.f32.mxu0 0.0
        %2609 = vmatmul.mubr.f32.gmra.mrb[0].mxu0 %v2142
        %v2610 = vpop.f32.mrb[0].mxu0
        %v2611 = vadd.f32 0.0, %v2610
        %v2612 = vpop.f32.mrb[0].mxu0
        %2613 = vmatprep.mubr.f32.mxu0 0.0
        %2614 = vmatmul.mubr.f32.gmra.mrb[0].mxu0 %v2145
        %v2615 = vpop.f32.mrb[0].mxu0
        %v2616 = vadd.f32 0.0, %v2615
        %v2617 = vpop.f32.mrb[0].mxu0
        %2618 = vdwg.mxu0
        %2619 = vst.msk [vmem:[#allocation3 + $0x24] sm:$0xff] %vm458, %v2611
        %2620 = vst.msk [vmem:[#allocation3 + $0x2c] sm:$0x1] %vm2227, %v2616
        %v2621 = vld [vmem:[%s1039] sm:$0xff]
        %v2622 = vld [vmem:[%s1039 + $0x8] sm:$0xff]
        %v2623 = vld [vmem:[%s1039 + $0x10] sm:$0x7]
        %v2624 = vadd.f32 %v2621, 0.0
        %v2625 = vadd.f32 %v2622, 0.0
        %v2626 = vadd.f32 %v2623, 0.0
        %v2627 = vld [vmem:[%s1042] sm:$0xff]
        %v2628 = vld [vmem:[%s1042 + $0x8] sm:$0xff]
        %v2629 = vld [vmem:[%s1042 + $0x10] sm:$0x7]
        %v2630 = vadd.f32 %v2624, %v2627
        %v2631 = vadd.f32 %v2625, %v2628
        %v2632 = vadd.f32 %v2626, %v2629
        %v2633 = vld [vmem:[%s1045] sm:$0xff]
        %v2634 = vld [vmem:[%s1045 + $0x8] sm:$0xff]
        %v2635 = vld [vmem:[%s1045 + $0x10] sm:$0x7]
        %v2636 = vadd.f32 %v2630, %v2633
        %v2637 = vadd.f32 %v2631, %v2634
        %v2638 = vadd.f32 %v2632, %v2635
        %v2640 = vsel %vm2147, %v2638, 0
        %2642 = vmatprep.subr.mxu0 0.0
        %2643 = vmatpush1.msra.mxu0 %v2636
        %2644 = vmatprep.subr.mxu0 0.0
        %2645 = vmatpush1.msra.mxu0 %v2637
        %2646 = vmatprep.subr.mxu0 0.0
        %2647 = vmatpush1.msra.mxu0 %v2640
        %2648 = vmatprep.subr.mxu0 0.0
        %2649 = vmatpush1.msra.mxu0 0.0
        %2650 = vmatprep.subr.mxu0 0.0
        %2651 = vmatpush1.msra.mxu0 0.0
        %2652 = vmatprep.subr.mxu0 0.0
        %2653 = vmatpush1.msra.mxu0 0.0
        %2654 = vmatprep.subr.mxu0 0.0
        %2655 = vmatpush1.msra.mxu0 0.0
        %2656 = vmatprep.subr.mxu0 0.0
        %2657 = vmatpush1.msra.mxu0 0.0
        %2658 = vmatprep.subr.mxu0 0.0
        %2659 = vmatpush1.msra.mxu0 0.0
        %2660 = vmatprep.subr.mxu0 0.0
        %2661 = vmatpush1.msra.mxu0 0.0
        %2662 = vmatprep.subr.mxu0 0.0
        %2663 = vmatpush1.msra.mxu0 0.0
        %2664 = vmatprep.subr.mxu0 0.0
        %2665 = vmatpush1.msra.mxu0 0.0
        %2666 = vmatprep.subr.mxu0 0.0
        %2667 = vmatpush1.msra.mxu0 0.0
        %2668 = vmatprep.subr.mxu0 0.0
        %2669 = vmatpush1.msra.mxu0 0.0
        %2670 = vmatprep.subr.mxu0 0.0
        %2671 = vmatpush1.msra.mxu0 0.0
        %2672 = vmatprep.subr.mxu0 0.0
        %2673 = vmatpush1.msra.mxu0 0.0
        %2674 = vmatprep.subr.mxu0 0.0
        %2675 = vmatpush1.msra.mxu0 0.0
        %2676 = vmatprep.subr.mxu0 0.0
        %2677 = vmatpush1.msra.mxu0 0.0
        %2678 = vmatprep.subr.mxu0 0.0
        %2679 = vmatpush1.msra.mxu0 0.0
        %2680 = vmatprep.subr.mxu0 0.0
        %2681 = vmatpush1.msra.mxu0 0.0
        %2682 = vmatprep.subr.mxu0 0.0
        %2683 = vmatpush1.msra.mxu0 0.0
        %2684 = vmatprep.subr.mxu0 0.0
        %2685 = vmatpush1.msra.mxu0 0.0
        %2686 = vmatprep.subr.mxu0 0.0
        %2687 = vmatpush1.msra.mxu0 0.0
        %2688 = vmatprep.subr.mxu0 0.0
        %2689 = vmatpush1.msra.mxu0 0.0
        %2690 = vmatprep.subr.mxu0 0.0
        %2691 = vmatpush1.msra.mxu0 0.0
        %2692 = vmatprep.subr.mxu0 0.0
        %2693 = vmatpush1.msra.mxu0 0.0
        %2694 = vmatprep.subr.mxu0 0.0
        %2695 = vmatpush1.msra.mxu0 0.0
        %2696 = vmatprep.subr.mxu0 0.0
        %2697 = vmatpush1.msra.mxu0 0.0
        %2698 = vmatprep.subr.mxu0 0.0
        %2699 = vmatpush1.msra.mxu0 0.0
        %2700 = vmatprep.subr.mxu0 0.0
        %2701 = vmatpush1.msra.mxu0 0.0
        %2702 = vmatprep.subr.mxu0 0.0
        %2703 = vmatpush1.msra.mxu0 0.0
        %2704 = vmatprep.subr.mxu0 0.0
        %2705 = vmatpush1.msra.mxu0 0.0
        %2706 = vmatprep.mubr.f32.mxu0 0.0
        %2707 = vmatmul.mubr.f32.gmra.mrb[0].mxu0 %v2142
        %v2708 = vpop.f32.mrb[0].mxu0
        %v2709 = vadd.f32 0.0, %v2708
        %v2710 = vpop.f32.mrb[0].mxu0
        %2711 = vmatprep.mubr.f32.mxu0 0.0
        %2712 = vmatmul.mubr.f32.gmra.mrb[0].mxu0 %v2145
        %v2713 = vpop.f32.mrb[0].mxu0
        %v2714 = vadd.f32 0.0, %v2713
        %v2715 = vpop.f32.mrb[0].mxu0
        %2716 = vdwg.mxu0
        %2717 = vst.msk [vmem:[#allocation3 + $0x2d] sm:$0xff] %vm458, %v2709
        %2718 = vst.msk [vmem:[#allocation3 + $0x35] sm:$0x1] %vm2227, %v2714
        %v2719 = vld [vmem:[%s1045] sm:$0xff]
        %v2720 = vld [vmem:[%s1045 + $0x8] sm:$0xff]
        %v2721 = vld [vmem:[%s1045 + $0x10] sm:$0x7]
        %v2722 = vadd.f32 %v2719, 0.0
        %v2723 = vadd.f32 %v2720, 0.0
        %v2724 = vadd.f32 %v2721, 0.0
        %v2725 = vld [vmem:[%s1048] sm:$0xff]
        %v2726 = vld [vmem:[%s1048 + $0x8] sm:$0xff]
        %v2727 = vld [vmem:[%s1048 + $0x10] sm:$0x7]
        %v2728 = vadd.f32 %v2722, %v2725
        %v2729 = vadd.f32 %v2723, %v2726
        %v2730 = vadd.f32 %v2724, %v2727
        %v2731 = vld [vmem:[%s1051] sm:$0xff]
        %v2732 = vld [vmem:[%s1051 + $0x8] sm:$0xff]
        %v2733 = vld [vmem:[%s1051 + $0x10] sm:$0x7]
        %v2734 = vadd.f32 %v2728, %v2731
        %v2735 = vadd.f32 %v2729, %v2732
        %v2736 = vadd.f32 %v2730, %v2733
        %v2738 = vsel %vm2147, %v2736, 0
        %2740 = vmatprep.subr.mxu0 0.0
        %2741 = vmatpush1.msra.mxu0 %v2734
        %2742 = vmatprep.subr.mxu0 0.0
        %2743 = vmatpush1.msra.mxu0 %v2735
        %2744 = vmatprep.subr.mxu0 0.0
        %2745 = vmatpush1.msra.mxu0 %v2738
        %2746 = vmatprep.subr.mxu0 0.0
        %2747 = vmatpush1.msra.mxu0 0.0
        %2748 = vmatprep.subr.mxu0 0.0
        %2749 = vmatpush1.msra.mxu0 0.0
        %2750 = vmatprep.subr.mxu0 0.0
        %2751 = vmatpush1.msra.mxu0 0.0
        %2752 = vmatprep.subr.mxu0 0.0
        %2753 = vmatpush1.msra.mxu0 0.0
        %2754 = vmatprep.subr.mxu0 0.0
        %2755 = vmatpush1.msra.mxu0 0.0
        %2756 = vmatprep.subr.mxu0 0.0
        %2757 = vmatpush1.msra.mxu0 0.0
        %2758 = vmatprep.subr.mxu0 0.0
        %2759 = vmatpush1.msra.mxu0 0.0
        %2760 = vmatprep.subr.mxu0 0.0
        %2761 = vmatpush1.msra.mxu0 0.0
        %2762 = vmatprep.subr.mxu0 0.0
        %2763 = vmatpush1.msra.mxu0 0.0
        %2764 = vmatprep.subr.mxu0 0.0
        %2765 = vmatpush1.msra.mxu0 0.0
        %2766 = vmatprep.subr.mxu0 0.0
        %2767 = vmatpush1.msra.mxu0 0.0
        %2768 = vmatprep.subr.mxu0 0.0
        %2769 = vmatpush1.msra.mxu0 0.0
        %2770 = vmatprep.subr.mxu0 0.0
        %2771 = vmatpush1.msra.mxu0 0.0
        %2772 = vmatprep.subr.mxu0 0.0
        %2773 = vmatpush1.msra.mxu0 0.0
        %2774 = vmatprep.subr.mxu0 0.0
        %2775 = vmatpush1.msra.mxu0 0.0
        %2776 = vmatprep.subr.mxu0 0.0
        %2777 = vmatpush1.msra.mxu0 0.0
        %2778 = vmatprep.subr.mxu0 0.0
        %2779 = vmatpush1.msra.mxu0 0.0
        %2780 = vmatprep.subr.mxu0 0.0
        %2781 = vmatpush1.msra.mxu0 0.0
        %2782 = vmatprep.subr.mxu0 0.0
        %2783 = vmatpush1.msra.mxu0 0.0
        %2784 = vmatprep.subr.mxu0 0.0
        %2785 = vmatpush1.msra.mxu0 0.0
        %2786 = vmatprep.subr.mxu0 0.0
        %2787 = vmatpush1.msra.mxu0 0.0
        %2788 = vmatprep.subr.mxu0 0.0
        %2789 = vmatpush1.msra.mxu0 0.0
        %2790 = vmatprep.subr.mxu0 0.0
        %2791 = vmatpush1.msra.mxu0 0.0
        %2792 = vmatprep.subr.mxu0 0.0
        %2793 = vmatpush1.msra.mxu0 0.0
        %2794 = vmatprep.subr.mxu0 0.0
        %2795 = vmatpush1.msra.mxu0 0.0
        %2796 = vmatprep.subr.mxu0 0.0
        %2797 = vmatpush1.msra.mxu0 0.0
        %2798 = vmatprep.subr.mxu0 0.0
        %2799 = vmatpush1.msra.mxu0 0.0
        %2800 = vmatprep.subr.mxu0 0.0
        %2801 = vmatpush1.msra.mxu0 0.0
        %2802 = vmatprep.subr.mxu0 0.0
        %2803 = vmatpush1.msra.mxu0 0.0
        %2804 = vmatprep.mubr.f32.mxu0 0.0
        %2805 = vmatmul.mubr.f32.gmra.mrb[0].mxu0 %v2142
        %v2806 = vpop.f32.mrb[0].mxu0
        %v2807 = vadd.f32 0.0, %v2806
        %v2808 = vpop.f32.mrb[0].mxu0
        %2809 = vmatprep.mubr.f32.mxu0 0.0
        %2810 = vmatmul.mubr.f32.gmra.mrb[0].mxu0 %v2145
        %v2811 = vpop.f32.mrb[0].mxu0
        %v2812 = vadd.f32 0.0, %v2811
        %v2813 = vpop.f32.mrb[0].mxu0
        %2814 = vdwg.mxu0
        %2815 = vst.msk [vmem:[#allocation3 + $0x36] sm:$0xff] %vm458, %v2807
        %2816 = vst.msk [vmem:[#allocation3 + $0x3e] sm:$0x1] %vm2227, %v2812
        %v2817 = vld [vmem:[%s1051] sm:$0xff]
        %v2818 = vld [vmem:[%s1051 + $0x8] sm:$0xff]
        %v2819 = vld [vmem:[%s1051 + $0x10] sm:$0x7]
        %v2820 = vadd.f32 %v2817, 0.0
        %v2821 = vadd.f32 %v2818, 0.0
        %v2822 = vadd.f32 %v2819, 0.0
        %v2823 = vld [vmem:[%s1054] sm:$0xff]
        %v2824 = vld [vmem:[%s1054 + $0x8] sm:$0xff]
        %v2825 = vld [vmem:[%s1054 + $0x10] sm:$0x7]
        %v2826 = vadd.f32 %v2820, %v2823
        %v2827 = vadd.f32 %v2821, %v2824
        %v2828 = vadd.f32 %v2822, %v2825
        %v2829 = vld [vmem:[%s1057] sm:$0xff]
        %v2830 = vld [vmem:[%s1057 + $0x8] sm:$0xff]
        %v2831 = vld [vmem:[%s1057 + $0x10] sm:$0x7]
        %v2832 = vadd.f32 %v2826, %v2829
        %v2833 = vadd.f32 %v2827, %v2830
        %v2834 = vadd.f32 %v2828, %v2831
        %v2836 = vsel %vm2147, %v2834, 0
        %2838 = vmatprep.subr.mxu0 0.0
        %2839 = vmatpush1.msra.mxu0 %v2832
        %2840 = vmatprep.subr.mxu0 0.0
        %2841 = vmatpush1.msra.mxu0 %v2833
        %2842 = vmatprep.subr.mxu0 0.0
        %2843 = vmatpush1.msra.mxu0 %v2836
        %2844 = vmatprep.subr.mxu0 0.0
        %2845 = vmatpush1.msra.mxu0 0.0
        %2846 = vmatprep.subr.mxu0 0.0
        %2847 = vmatpush1.msra.mxu0 0.0
        %2848 = vmatprep.subr.mxu0 0.0
        %2849 = vmatpush1.msra.mxu0 0.0
        %2850 = vmatprep.subr.mxu0 0.0
        %2851 = vmatpush1.msra.mxu0 0.0
        %2852 = vmatprep.subr.mxu0 0.0
        %2853 = vmatpush1.msra.mxu0 0.0
        %2854 = vmatprep.subr.mxu0 0.0
        %2855 = vmatpush1.msra.mxu0 0.0
        %2856 = vmatprep.subr.mxu0 0.0
        %2857 = vmatpush1.msra.mxu0 0.0
        %2858 = vmatprep.subr.mxu0 0.0
        %2859 = vmatpush1.msra.mxu0 0.0
        %2860 = vmatprep.subr.mxu0 0.0
        %2861 = vmatpush1.msra.mxu0 0.0
        %2862 = vmatprep.subr.mxu0 0.0
        %2863 = vmatpush1.msra.mxu0 0.0
        %2864 = vmatprep.subr.mxu0 0.0
        %2865 = vmatpush1.msra.mxu0 0.0
        %2866 = vmatprep.subr.mxu0 0.0
        %2867 = vmatpush1.msra.mxu0 0.0
        %2868 = vmatprep.subr.mxu0 0.0
        %2869 = vmatpush1.msra.mxu0 0.0
        %2870 = vmatprep.subr.mxu0 0.0
        %2871 = vmatpush1.msra.mxu0 0.0
        %2872 = vmatprep.subr.mxu0 0.0
        %2873 = vmatpush1.msra.mxu0 0.0
        %2874 = vmatprep.subr.mxu0 0.0
        %2875 = vmatpush1.msra.mxu0 0.0
        %2876 = vmatprep.subr.mxu0 0.0
        %2877 = vmatpush1.msra.mxu0 0.0
        %2878 = vmatprep.subr.mxu0 0.0
        %2879 = vmatpush1.msra.mxu0 0.0
        %2880 = vmatprep.subr.mxu0 0.0
        %2881 = vmatpush1.msra.mxu0 0.0
        %2882 = vmatprep.subr.mxu0 0.0
        %2883 = vmatpush1.msra.mxu0 0.0
        %2884 = vmatprep.subr.mxu0 0.0
        %2885 = vmatpush1.msra.mxu0 0.0
        %2886 = vmatprep.subr.mxu0 0.0
        %2887 = vmatpush1.msra.mxu0 0.0
        %2888 = vmatprep.subr.mxu0 0.0
        %2889 = vmatpush1.msra.mxu0 0.0
        %2890 = vmatprep.subr.mxu0 0.0
        %2891 = vmatpush1.msra.mxu0 0.0
        %2892 = vmatprep.subr.mxu0 0.0
        %2893 = vmatpush1.msra.mxu0 0.0
        %2894 = vmatprep.subr.mxu0 0.0
        %2895 = vmatpush1.msra.mxu0 0.0
        %2896 = vmatprep.subr.mxu0 0.0
        %2897 = vmatpush1.msra.mxu0 0.0
        %2898 = vmatprep.subr.mxu0 0.0
        %2899 = vmatpush1.msra.mxu0 0.0
        %2900 = vmatprep.subr.mxu0 0.0
        %2901 = vmatpush1.msra.mxu0 0.0
        %2902 = vmatprep.mubr.f32.mxu0 0.0
        %2903 = vmatmul.mubr.f32.gmra.mrb[0].mxu0 %v2142
        %v2904 = vpop.f32.mrb[0].mxu0
        %v2905 = vadd.f32 0.0, %v2904
        %v2906 = vpop.f32.mrb[0].mxu0
        %2907 = vmatprep.mubr.f32.mxu0 0.0
        %2908 = vmatmul.mubr.f32.gmra.mrb[0].mxu0 %v2145
        %v2909 = vpop.f32.mrb[0].mxu0
        %v2910 = vadd.f32 0.0, %v2909
        %v2911 = vpop.f32.mrb[0].mxu0
        %2912 = vdwg.mxu0
        %2913 = vst.msk [vmem:[#allocation3 + $0x3f] sm:$0xff] %vm458, %v2905
        %2914 = vst.msk [vmem:[#allocation3 + $0x47] sm:$0x1] %vm2227, %v2910
        %v2915 = vld [vmem:[%s1057] sm:$0xff]
        %v2916 = vld [vmem:[%s1057 + $0x8] sm:$0xff]
        %v2917 = vld [vmem:[%s1057 + $0x10] sm:$0x7]
        %v2918 = vadd.f32 %v2915, 0.0
        %v2919 = vadd.f32 %v2916, 0.0
        %v2920 = vadd.f32 %v2917, 0.0
        %s2921 = scalar_lea.vmem [#allocation2], 408
        %v2922 = vld [vmem:[%s2921] sm:$0xff]
        %v2923 = vld [vmem:[%s2921 + $0x8] sm:$0xff]
        %v2924 = vld [vmem:[%s2921 + $0x10] sm:$0x7]
        %v2925 = vadd.f32 %v2918, %v2922
        %v2926 = vadd.f32 %v2919, %v2923
        %v2927 = vadd.f32 %v2920, %v2924
        %s2928 = scalar_lea.vmem [#allocation2], 432
        %v2929 = vld [vmem:[%s2928] sm:$0xff]
        %v2930 = vld [vmem:[%s2928 + $0x8] sm:$0xff]
        %v2931 = vld [vmem:[%s2928 + $0x10] sm:$0x7]
        %v2932 = vadd.f32 %v2925, %v2929
        %v2933 = vadd.f32 %v2926, %v2930
        %v2934 = vadd.f32 %v2927, %v2931
        %v2936 = vsel %vm2147, %v2934, 0
        %2938 = vmatprep.subr.mxu0 0.0
        %2939 = vmatpush1.msra.mxu0 %v2932
        %2940 = vmatprep.subr.mxu0 0.0
        %2941 = vmatpush1.msra.mxu0 %v2933
        %2942 = vmatprep.subr.mxu0 0.0
        %2943 = vmatpush1.msra.mxu0 %v2936
        %2944 = vmatprep.subr.mxu0 0.0
        %2945 = vmatpush1.msra.mxu0 0.0
        %2946 = vmatprep.subr.mxu0 0.0
        %2947 = vmatpush1.msra.mxu0 0.0
        %2948 = vmatprep.subr.mxu0 0.0
        %2949 = vmatpush1.msra.mxu0 0.0
        %2950 = vmatprep.subr.mxu0 0.0
        %2951 = vmatpush1.msra.mxu0 0.0
        %2952 = vmatprep.subr.mxu0 0.0
        %2953 = vmatpush1.msra.mxu0 0.0
        %2954 = vmatprep.subr.mxu0 0.0
        %2955 = vmatpush1.msra.mxu0 0.0
        %2956 = vmatprep.subr.mxu0 0.0
        %2957 = vmatpush1.msra.mxu0 0.0
        %2958 = vmatprep.subr.mxu0 0.0
        %2959 = vmatpush1.msra.mxu0 0.0
        %2960 = vmatprep.subr.mxu0 0.0
        %2961 = vmatpush1.msra.mxu0 0.0
        %2962 = vmatprep.subr.mxu0 0.0
        %2963 = vmatpush1.msra.mxu0 0.0
        %2964 = vmatprep.subr.mxu0 0.0
        %2965 = vmatpush1.msra.mxu0 0.0
        %2966 = vmatprep.subr.mxu0 0.0
        %2967 = vmatpush1.msra.mxu0 0.0
        %2968 = vmatprep.subr.mxu0 0.0
        %2969 = vmatpush1.msra.mxu0 0.0
        %2970 = vmatprep.subr.mxu0 0.0
        %2971 = vmatpush1.msra.mxu0 0.0
        %2972 = vmatprep.subr.mxu0 0.0
        %2973 = vmatpush1.msra.mxu0 0.0
        %2974 = vmatprep.subr.mxu0 0.0
        %2975 = vmatpush1.msra.mxu0 0.0
        %2976 = vmatprep.subr.mxu0 0.0
        %2977 = vmatpush1.msra.mxu0 0.0
        %2978 = vmatprep.subr.mxu0 0.0
        %2979 = vmatpush1.msra.mxu0 0.0
        %2980 = vmatprep.subr.mxu0 0.0
        %2981 = vmatpush1.msra.mxu0 0.0
        %2982 = vmatprep.subr.mxu0 0.0
        %2983 = vmatpush1.msra.mxu0 0.0
        %2984 = vmatprep.subr.mxu0 0.0
        %2985 = vmatpush1.msra.mxu0 0.0
        %2986 = vmatprep.subr.mxu0 0.0
        %2987 = vmatpush1.msra.mxu0 0.0
        %2988 = vmatprep.subr.mxu0 0.0
        %2989 = vmatpush1.msra.mxu0 0.0
        %2990 = vmatprep.subr.mxu0 0.0
        %2991 = vmatpush1.msra.mxu0 0.0
        %2992 = vmatprep.subr.mxu0 0.0
        %2993 = vmatpush1.msra.mxu0 0.0
        %2994 = vmatprep.subr.mxu0 0.0
        %2995 = vmatpush1.msra.mxu0 0.0
        %2996 = vmatprep.subr.mxu0 0.0
        %2997 = vmatpush1.msra.mxu0 0.0
        %2998 = vmatprep.subr.mxu0 0.0
        %2999 = vmatpush1.msra.mxu0 0.0
        %3000 = vmatprep.subr.mxu0 0.0
        %3001 = vmatpush1.msra.mxu0 0.0
        %3002 = vmatprep.mubr.f32.mxu0 0.0
        %3003 = vmatmul.mubr.f32.gmra.mrb[0].mxu0 %v2142
        %v3004 = vpop.f32.mrb[0].mxu0
        %v3005 = vadd.f32 0.0, %v3004
        %v3006 = vpop.f32.mrb[0].mxu0
        %3007 = vmatprep.mubr.f32.mxu0 0.0
        %3008 = vmatmul.mubr.f32.gmra.mrb[0].mxu0 %v2145
        %v3009 = vpop.f32.mrb[0].mxu0
        %v3010 = vadd.f32 0.0, %v3009
        %v3011 = vpop.f32.mrb[0].mxu0
        %3012 = vdwg.mxu0
        %3013 = vst.msk [vmem:[#allocation3 + $0x48] sm:$0xff] %vm458, %v3005
        %3014 = vst.msk [vmem:[#allocation3 + $0x50] sm:$0x1] %vm2227, %v3010
        %v3015 = vld [vmem:[#allocation3] sm:$0xff]
        %v3016 = vld [vmem:[#allocation3 + $0x8] sm:$0xff]
        %v3017 = vld [vmem:[#allocation3 + $0x10] sm:$0xff]
        %v3018 = vld [vmem:[#allocation3 + $0x18] sm:$0xff]
        %v3019 = vld [vmem:[#allocation3 + $0x20] sm:$0xff]
        %v3020 = vld [vmem:[#allocation3 + $0x28] sm:$0xff]
        %v3021 = vld [vmem:[#allocation3 + $0x30] sm:$0xff]
        %v3022 = vld [vmem:[#allocation3 + $0x38] sm:$0xff]
        %v3023 = vld [vmem:[#allocation3 + $0x40] sm:$0xff]
        %v3024 = vld [vmem:[#allocation3 + $0x48] sm:$0xff]
        %v3025 = vld [vmem:[#allocation3 + $0x50] sm:$0xff]
        %v3026 = vld [vmem:[#allocation3 + $0x58] sm:$0xff]
        %v3027 = vld [vmem:[#allocation3 + $0x60] sm:$0xff]
        %v3028 = vld [vmem:[#allocation3 + $0x68] sm:$0xff]
        %v3029 = vld [vmem:[#allocation3 + $0x70] sm:$0xff]
        %v3030 = vld [vmem:[#allocation3 + $0x78] sm:$0xff]
        %v3031 = vld [vmem:[%s4] sm:$0xff]
        %v3032 = vld [vmem:[%s4 + $0x8] sm:$0xff]
        %v3033 = vld [vmem:[%s4 + $0x10] sm:$0xff]
        %v3034 = vld [vmem:[%s4 + $0x18] sm:$0xff]
        %v3035 = vld [vmem:[%s4 + $0x20] sm:$0xff]
        %v3036 = vld [vmem:[%s4 + $0x28] sm:$0xff]
        %v3037 = vld [vmem:[%s4 + $0x30] sm:$0xff]
        %v3038 = vld [vmem:[%s4 + $0x38] sm:$0xff]
        %v3039 = vld [vmem:[%s4 + $0x40] sm:$0xff]
        %v3040 = vld [vmem:[%s4 + $0x48] sm:$0xff]
        %v3041 = vld [vmem:[%s4 + $0x50] sm:$0xff]
        %v3042 = vld [vmem:[%s4 + $0x58] sm:$0xff]
        %v3043 = vld [vmem:[%s4 + $0x60] sm:$0xff]
        %v3044 = vld [vmem:[%s4 + $0x68] sm:$0xff]
        %v3045 = vld [vmem:[%s4 + $0x70] sm:$0xff]
        %v3046 = vld [vmem:[%s4 + $0x78] sm:$0xff]
        %v3047 = vmul.f32 %v3015, %v3031
        %v3048 = vmul.f32 %v3016, %v3032
        %v3049 = vmul.f32 %v3017, %v3033
        %v3050 = vmul.f32 %v3018, %v3034
        %v3051 = vmul.f32 %v3019, %v3035
        %v3052 = vmul.f32 %v3020, %v3036
        %v3053 = vmul.f32 %v3021, %v3037
        %v3054 = vmul.f32 %v3022, %v3038
        %v3055 = vmul.f32 %v3023, %v3039
        %v3056 = vmul.f32 %v3024, %v3040
        %v3057 = vmul.f32 %v3025, %v3041
        %v3058 = vmul.f32 %v3026, %v3042
        %v3059 = vmul.f32 %v3027, %v3043
        %v3060 = vmul.f32 %v3028, %v3044
        %v3061 = vmul.f32 %v3029, %v3045
        %v3062 = vmul.f32 %v3030, %v3046
        %v3063 = vpack.c.bf16 %v1377, %v1256
        %v3064 = vpack.c.bf16 %v1619, %v1498
        %v3065 = vpack.c.bf16 %v1861, %v1740
        %v3066 = vpack.c.bf16 %v2103, %v1982
        %v3067 = vld [vmem:[%s5] sm:$0xf]
        %v3068 = vld [vmem:[%s5 + $0x4] sm:$0xf]
        %v3069 = vld [vmem:[%s5 + $0x8] sm:$0xf]
        %v3070 = vld [vmem:[%s5 + $0xc] sm:$0xf]
        %v3071 = vld [vmem:[%s6] sm:$0x1]
        %v3073 = vlaneseq
        %v3074 = vshrl.u32 %v3073, 7
        %v3075 = vsub.s32 0, %v3074
        %v3076 = vrot.slane %v3071, %v3075
        %v3082 = vunpack.c.l.b16 %v3067
        %v3083 = vunpack.c.l.b16 %v3068
        %v3084 = vunpack.c.l.b16 %v3069
        %v3085 = vunpack.c.l.b16 %v3070
        %v3086 = vpack.c.b16 %v3083, %v3082
        %v3087 = vpack.c.b16 %v3085, %v3084
        %v3091 = vsel %vm458, %v3063, 0
        %v3094 = vsel %vm458, %v3064, 0
        %v3097 = vsel %vm458, %v3065, 0
        %v3100 = vsel %vm458, %v3066, 0
        %3102 = vmatprep.subr.bf16.mxu0 0
        %3103 = vmatpush1.bf16.msra.mxu0 %v3086
        %3104 = vmatprep.subr.bf16.mxu0 0
        %3105 = vmatpush1.bf16.msra.mxu0 %v3087
        %3106 = vmatprep.subr.bf16.mxu0 0
        %3107 = vmatpush1.bf16.msra.mxu0 0
        %3108 = vmatprep.subr.bf16.mxu0 0
        %3109 = vmatpush1.bf16.msra.mxu0 0
        %3110 = vmatprep.subr.bf16.mxu0 0
        %3111 = vmatpush1.bf16.msra.mxu0 0
        %3112 = vmatprep.subr.bf16.mxu0 0
        %3113 = vmatpush1.bf16.msra.mxu0 0
        %3114 = vmatprep.subr.bf16.mxu0 0
        %3115 = vmatpush1.bf16.msra.mxu0 0
        %3116 = vmatprep.subr.bf16.mxu0 0
        %3117 = vmatpush1.bf16.msra.mxu0 0
        %3118 = vmatprep.subr.bf16.mxu0 0
        %3119 = vmatpush1.bf16.msra.mxu0 0
        %3120 = vmatprep.subr.bf16.mxu0 0
        %3121 = vmatpush1.bf16.msra.mxu0 0
        %3122 = vmatprep.subr.bf16.mxu0 0
        %3123 = vmatpush1.bf16.msra.mxu0 0
        %3124 = vmatprep.subr.bf16.mxu0 0
        %3125 = vmatpush1.bf16.msra.mxu0 0
        %3126 = vmatprep.subr.bf16.mxu0 0
        %3127 = vmatpush1.bf16.msra.mxu0 0
        %3128 = vmatprep.subr.bf16.mxu0 0
        %3129 = vmatpush1.bf16.msra.mxu0 0
        %3130 = vmatprep.subr.bf16.mxu0 0
        %3131 = vmatpush1.bf16.msra.mxu0 0
        %3132 = vmatprep.subr.bf16.mxu0 0
        %3133 = vmatpush1.bf16.msra.mxu0 0
        %3134 = vmatprep.mubr.bf16.mxu0 0
        %3135 = vmatmul.mubr.bf16.gmra.mrb[0].mxu0 %v3091
        %v3136 = vpop.f32.mrb[0].mxu0
        %v3137 = vadd.f32 %v3076, %v3136
        %v3138 = vpop.f32.mrb[0].mxu0
        %v3139 = vpop.f32.mrb[0].mxu0
        %v3140 = vadd.f32 %v3076, %v3139
        %v3141 = vpop.f32.mrb[0].mxu0
        %3142 = vmatprep.mubr.bf16.mxu0 0
        %3143 = vmatmul.mubr.bf16.gmra.mrb[0].mxu0 %v3094
        %v3144 = vpop.f32.mrb[0].mxu0
        %v3145 = vadd.f32 %v3076, %v3144
        %v3146 = vpop.f32.mrb[0].mxu0
        %v3147 = vpop.f32.mrb[0].mxu0
        %v3148 = vadd.f32 %v3076, %v3147
        %v3149 = vpop.f32.mrb[0].mxu0
        %3150 = vmatprep.mubr.bf16.mxu0 0
        %3151 = vmatmul.mubr.bf16.gmra.mrb[0].mxu0 %v3097
        %v3152 = vpop.f32.mrb[0].mxu0
        %v3153 = vadd.f32 %v3076, %v3152
        %v3154 = vpop.f32.mrb[0].mxu0
        %v3155 = vpop.f32.mrb[0].mxu0
        %v3156 = vadd.f32 %v3076, %v3155
        %v3157 = vpop.f32.mrb[0].mxu0
        %3158 = vmatprep.mubr.bf16.mxu0 0
        %3159 = vmatmul.mubr.bf16.gmra.mrb[0].mxu0 %v3100
        %v3160 = vpop.f32.mrb[0].mxu0
        %v3161 = vadd.f32 %v3076, %v3160
        %v3162 = vpop.f32.mrb[0].mxu0
        %v3163 = vpop.f32.mrb[0].mxu0
        %v3164 = vadd.f32 %v3076, %v3163
        %v3165 = vpop.f32.mrb[0].mxu0
        %3166 = vdwg.mxu0
        %v3167 = vpack.c.bf16 %v3048, %v3047
        %v3168 = vpack.c.bf16 %v3050, %v3049
        %v3169 = vpack.c.bf16 %v3052, %v3051
        %v3170 = vpack.c.bf16 %v3054, %v3053
        %v3171 = vpack.c.bf16 %v3056, %v3055
        %v3172 = vpack.c.bf16 %v3058, %v3057
        %v3173 = vpack.c.bf16 %v3060, %v3059
        %v3174 = vpack.c.bf16 %v3062, %v3061
        %v3175 = vld [vmem:[%s7] sm:$0xf]
        %v3176 = vld [vmem:[%s7 + $0x4] sm:$0xf]
        %v3177 = vld [vmem:[%s7 + $0x8] sm:$0xf]
        %v3178 = vld [vmem:[%s7 + $0xc] sm:$0xf]
        %v3179 = vld [vmem:[%s8] sm:$0xff]
        %v3180 = vld [vmem:[%s8 + $0x8] sm:$0xff]
        %v3181 = vld [vmem:[%s8 + $0x10] sm:$0xff]
        %v3182 = vld [vmem:[%s8 + $0x18] sm:$0xff]
        %3184 = vset.pattern.permute.xlu0 0
        %3185 = vperm.xlu0 %3184, %v3179
        %v3186 = vpop.permute.xlu0 %3185
        %3189 = vset.pattern.permute.xlu0 0
        %3190 = vperm.xlu0 %3189, %v3180
        %v3191 = vpop.permute.xlu0 %3190
        %3194 = vset.pattern.permute.xlu0 0
        %3195 = vperm.xlu0 %3194, %v3181
        %v3196 = vpop.permute.xlu0 %3195
        %3199 = vset.pattern.permute.xlu0 0
        %3200 = vperm.xlu0 %3199, %v3182
        %v3201 = vpop.permute.xlu0 %3200
        %v3207 = vunpack.c.l.b16 %v3175
        %v3208 = vunpack.c.l.b16 %v3176
        %v3209 = vunpack.c.l.b16 %v3177
        %v3210 = vunpack.c.l.b16 %v3178
        %v3211 = vpack.c.b16 %v3208, %v3207
        %v3212 = vpack.c.b16 %v3210, %v3209
        %v3214 = vsel %vm458, %v3211, 0
        %v3217 = vsel %vm458, %v3212, 0
        %v3220 = vsel %vm458, %v3167, 0
        %v3223 = vsel %vm458, %v3168, 0
        %v3226 = vsel %vm458, %v3169, 0
        %v3229 = vsel %vm458, %v3170, 0
        %v3232 = vsel %vm458, %v3171, 0
        %v3235 = vsel %vm458, %v3172, 0
        %v3238 = vsel %vm458, %v3173, 0
        %v3241 = vsel %vm458, %v3174, 0
        %3243 = vmatprep.subr.bf16.mxu0 0
        %3244 = vmatpush1.bf16.xpose.msra.mxu0 %v3220
        %3245 = vmatprep.subr.bf16.mxu0 0
        %3246 = vmatpush1.bf16.xpose.msra.mxu0 %v3223
        %3247 = vmatprep.subr.bf16.mxu0 0
        %3248 = vmatpush1.bf16.xpose.msra.mxu0 %v3226
        %3249 = vmatprep.subr.bf16.mxu0 0
        %3250 = vmatpush1.bf16.xpose.msra.mxu0 %v3229
        %3251 = vmatprep.subr.bf16.mxu0 0
        %3252 = vmatpush1.bf16.xpose.msra.mxu0 %v3232
        %3253 = vmatprep.subr.bf16.mxu0 0
        %3254 = vmatpush1.bf16.xpose.msra.mxu0 %v3235
        %3255 = vmatprep.subr.bf16.mxu0 0
        %3256 = vmatpush1.bf16.xpose.msra.mxu0 %v3238
        %3257 = vmatprep.subr.bf16.mxu0 0
        %3258 = vmatpush1.bf16.xpose.msra.mxu0 %v3241
        %3259 = vmatprep.subr.bf16.mxu0 0
        %3260 = vmatpush1.bf16.xpose.msra.mxu0 0
        %3261 = vmatprep.subr.bf16.mxu0 0
        %3262 = vmatpush1.bf16.xpose.msra.mxu0 0
        %3263 = vmatprep.subr.bf16.mxu0 0
        %3264 = vmatpush1.bf16.xpose.msra.mxu0 0
        %3265 = vmatprep.subr.bf16.mxu0 0
        %3266 = vmatpush1.bf16.xpose.msra.mxu0 0
        %3267 = vmatprep.subr.bf16.mxu0 0
        %3268 = vmatpush1.bf16.xpose.msra.mxu0 0
        %3269 = vmatprep.subr.bf16.mxu0 0
        %3270 = vmatpush1.bf16.xpose.msra.mxu0 0
        %3271 = vmatprep.subr.bf16.mxu0 0
        %3272 = vmatpush1.bf16.xpose.msra.mxu0 0
        %3273 = vmatprep.subr.bf16.mxu0 0
        %3274 = vmatpush1.bf16.xpose.msra.mxu0 0
        %3275 = vmatprep.mubr.bf16.mxu0 0
        %3276 = vmatmul.mubr.bf16.gmra.mrb[0].mxu0 %v3214
        %v3277 = vpop.f32.mrb[0].mxu0
        %v3278 = vadd.f32 %v3186, %v3277
        %v3279 = vpop.f32.mrb[0].mxu0
        %v3280 = vpop.f32.mrb[0].mxu0
        %v3281 = vadd.f32 %v3191, %v3280
        %v3282 = vpop.f32.mrb[0].mxu0
        %3283 = vmatprep.mubr.bf16.mxu0 0
        %3284 = vmatmul.mubr.bf16.gmra.mrb[0].mxu0 %v3217
        %v3285 = vpop.f32.mrb[0].mxu0
        %v3286 = vadd.f32 %v3196, %v3285
        %v3287 = vpop.f32.mrb[0].mxu0
        %v3288 = vpop.f32.mrb[0].mxu0
        %v3289 = vadd.f32 %v3201, %v3288
        %v3290 = vpop.f32.mrb[0].mxu0
        %3291 = vdwg.mxu0
        %v3292 = vld [vmem:[%s9] sm:$0xf]
        %v3293 = vld [vmem:[%s9 + $0x4] sm:$0xf]
        %v3294 = vld [vmem:[%s9 + $0x8] sm:$0xf]
        %v3295 = vld [vmem:[%s9 + $0xc] sm:$0xf]
        %v3296 = vld [vmem:[%s10] sm:$0xff]
        %v3297 = vld [vmem:[%s10 + $0x8] sm:$0xff]
        %v3298 = vld [vmem:[%s10 + $0x10] sm:$0xff]
        %v3299 = vld [vmem:[%s10 + $0x18] sm:$0xff]
        %3301 = vset.pattern.permute.xlu0 0
        %3302 = vperm.xlu0 %3301, %v3296
        %v3303 = vpop.permute.xlu0 %3302
        %3306 = vset.pattern.permute.xlu0 0
        %3307 = vperm.xlu0 %3306, %v3297
        %v3308 = vpop.permute.xlu0 %3307
        %3311 = vset.pattern.permute.xlu0 0
        %3312 = vperm.xlu0 %3311, %v3298
        %v3313 = vpop.permute.xlu0 %3312
        %3316 = vset.pattern.permute.xlu0 0
        %3317 = vperm.xlu0 %3316, %v3299
        %v3318 = vpop.permute.xlu0 %3317
        %v3324 = vunpack.c.l.b16 %v3292
        %v3325 = vunpack.c.l.b16 %v3293
        %v3326 = vunpack.c.l.b16 %v3294
        %v3327 = vunpack.c.l.b16 %v3295
        %v3328 = vpack.c.b16 %v3325, %v3324
        %v3329 = vpack.c.b16 %v3327, %v3326
        %v3331 = vsel %vm458, %v3328, 0
        %v3334 = vsel %vm458, %v3329, 0
        %3336 = vmatprep.subr.bf16.mxu0 0
        %3337 = vmatpush1.bf16.xpose.msra.mxu0 %v3220
        %3338 = vmatprep.subr.bf16.mxu0 0
        %3339 = vmatpush1.bf16.xpose.msra.mxu0 %v3223
        %3340 = vmatprep.subr.bf16.mxu0 0
        %3341 = vmatpush1.bf16.xpose.msra.mxu0 %v3226
        %3342 = vmatprep.subr.bf16.mxu0 0
        %3343 = vmatpush1.bf16.xpose.msra.mxu0 %v3229
        %3344 = vmatprep.subr.bf16.mxu0 0
        %3345 = vmatpush1.bf16.xpose.msra.mxu0 %v3232
        %3346 = vmatprep.subr.bf16.mxu0 0
        %3347 = vmatpush1.bf16.xpose.msra.mxu0 %v3235
        %3348 = vmatprep.subr.bf16.mxu0 0
        %3349 = vmatpush1.bf16.xpose.msra.mxu0 %v3238
        %3350 = vmatprep.subr.bf16.mxu0 0
        %3351 = vmatpush1.bf16.xpose.msra.mxu0 %v3241
        %3352 = vmatprep.subr.bf16.mxu0 0
        %3353 = vmatpush1.bf16.xpose.msra.mxu0 0
        %3354 = vmatprep.subr.bf16.mxu0 0
        %3355 = vmatpush1.bf16.xpose.msra.mxu0 0
        %3356 = vmatprep.subr.bf16.mxu0 0
        %3357 = vmatpush1.bf16.xpose.msra.mxu0 0
        %3358 = vmatprep.subr.bf16.mxu0 0
        %3359 = vmatpush1.bf16.xpose.msra.mxu0 0
        %3360 = vmatprep.subr.bf16.mxu0 0
        %3361 = vmatpush1.bf16.xpose.msra.mxu0 0
        %3362 = vmatprep.subr.bf16.mxu0 0
        %3363 = vmatpush1.bf16.xpose.msra.mxu0 0
        %3364 = vmatprep.subr.bf16.mxu0 0
        %3365 = vmatpush1.bf16.xpose.msra.mxu0 0
        %3366 = vmatprep.subr.bf16.mxu0 0
        %3367 = vmatpush1.bf16.xpose.msra.mxu0 0
        %3368 = vmatprep.mubr.bf16.mxu0 0
        %3369 = vmatmul.mubr.bf16.gmra.mrb[0].mxu0 %v3331
        %v3370 = vpop.f32.mrb[0].mxu0
        %v3371 = vadd.f32 %v3303, %v3370
        %v3372 = vpop.f32.mrb[0].mxu0
        %v3373 = vpop.f32.mrb[0].mxu0
        %v3374 = vadd.f32 %v3308, %v3373
        %v3375 = vpop.f32.mrb[0].mxu0
        %3376 = vmatprep.mubr.bf16.mxu0 0
        %3377 = vmatmul.mubr.bf16.gmra.mrb[0].mxu0 %v3334
        %v3378 = vpop.f32.mrb[0].mxu0
        %v3379 = vadd.f32 %v3313, %v3378
        %v3380 = vpop.f32.mrb[0].mxu0
        %v3381 = vpop.f32.mrb[0].mxu0
        %v3382 = vadd.f32 %v3318, %v3381
        %v3383 = vpop.f32.mrb[0].mxu0
        %3384 = vdwg.mxu0
        %3385 = vst [vmem:[%s417] sm:$0xff] %v3371
        %3386 = vst [vmem:[%s417 + $0x8] sm:$0xff] %v3374
        %3387 = vst [vmem:[%s417 + $0x10] sm:$0xff] %v3379
        %3388 = vst [vmem:[%s417 + $0x18] sm:$0xff] %v3382
        %v3389 = vadd.s32 %v1063, 16
        %v3390 = vadd.s32 %v1063, 24
        %v3391 = vpack.c.bf16 %v3281, %v3278
        %v3392 = vpack.c.bf16 %v3289, %v3286
        %vm3393 = vcmp.ge.s32.totalorder %v1063, 0
        %vm3394 = vcmp.ge.s32.totalorder %v1068, 0
        %vm3395 = vcmp.ge.s32.totalorder %v3389, 0
        %vm3396 = vcmp.ge.s32.totalorder %v3390, 0
        %vm3397 = vcmp.lt.s32.totalorder %v1063, 8
        %vm3398 = vcmp.lt.s32.totalorder %v1068, 8
        %vm3399 = vcmp.lt.s32.totalorder %v3389, 8
        %vm3400 = vcmp.lt.s32.totalorder %v3390, 8
        %vm3401 = vmand %vm3393, %vm3397
        %vm3402 = vmand %vm3394, %vm3398
        %vm3403 = vmand %vm3395, %vm3399
        %vm3404 = vmand %vm3396, %vm3400
        %v3405 = vsel %vm3401, 1, 0
        %v3406 = vsel %vm3402, 1, 0
        %v3407 = vsel %vm3403, 1, 0
        %v3408 = vsel %vm3404, 1, 0
        %vm3409 = vcmp.eq.s32.totalorder %v3405, 1
        %vm3410 = vcmp.eq.s32.totalorder %v3406, 1
        %vm3411 = vcmp.eq.s32.totalorder %v3407, 1
        %vm3412 = vcmp.eq.s32.totalorder %v3408, 1
        %vm3413 = vmpackc.low %vm3409, %vm3409
        %vm3414 = vmpackc.low %vm3410, %vm3410
        %vm3415 = vmpackc.low %vm3411, %vm3411
        %vm3416 = vmpackc.low %vm3412, %vm3412
        %v3417 = vsel %vm3413, 65537, 0
        %v3418 = vsel %vm3414, 65537, 0
        %v3419 = vsel %vm3415, 65537, 0
        %v3420 = vsel %vm3416, 65537, 0
        %v3421 = vunpack.c.l.b16 %v3417
        %v3422 = vunpack.c.l.b16 %v3418
        %v3423 = vunpack.c.l.b16 %v3419
        %v3424 = vunpack.c.l.b16 %v3420
        %v3425 = vpack.c.b16 %v3422, %v3421
        %v3426 = vpack.c.b16 %v3424, %v3423
        %vm3427 = vcmp.ne.s16.totalorder %v3425, 0
        %vm3428 = vcmp.ne.s16.totalorder %v3426, 0
        %v3429 = vsel %vm3427, %v3391, 0
        %v3430 = vsel %vm3428, %v3392, 0
        %vm3431 = vcmp.ge.s32.totalorder %v1063, 8
        %vm3432 = vcmp.ge.s32.totalorder %v1068, 8
        %vm3433 = vcmp.ge.s32.totalorder %v3389, 8
        %vm3434 = vcmp.ge.s32.totalorder %v3390, 8
        %vm3435 = vcmp.lt.s32.totalorder %v1063, 16
        %vm3436 = vcmp.lt.s32.totalorder %v1068, 16
        %vm3437 = vcmp.lt.s32.totalorder %v3389, 16
        %vm3438 = vcmp.lt.s32.totalorder %v3390, 16
        %vm3439 = vmand %vm3431, %vm3435
        %vm3440 = vmand %vm3432, %vm3436
        %vm3441 = vmand %vm3433, %vm3437
        %vm3442 = vmand %vm3434, %vm3438
        %v3443 = vsel %vm3439, 1, 0
        %v3444 = vsel %vm3440, 1, 0
        %v3445 = vsel %vm3441, 1, 0
        %v3446 = vsel %vm3442, 1, 0
        %vm3447 = vcmp.eq.s32.totalorder %v3443, 1
        %vm3448 = vcmp.eq.s32.totalorder %v3444, 1
        %vm3449 = vcmp.eq.s32.totalorder %v3445, 1
        %vm3450 = vcmp.eq.s32.totalorder %v3446, 1
        %vm3451 = vmpackc.low %vm3447, %vm3447
        %vm3452 = vmpackc.low %vm3448, %vm3448
        %vm3453 = vmpackc.low %vm3449, %vm3449
        %vm3454 = vmpackc.low %vm3450, %vm3450
        %v3455 = vsel %vm3451, 65537, 0
        %v3456 = vsel %vm3452, 65537, 0
        %v3457 = vsel %vm3453, 65537, 0
        %v3458 = vsel %vm3454, 65537, 0
        %v3459 = vunpack.c.l.b16 %v3455
        %v3460 = vunpack.c.l.b16 %v3456
        %v3461 = vunpack.c.l.b16 %v3457
        %v3462 = vunpack.c.l.b16 %v3458
        %v3463 = vpack.c.b16 %v3460, %v3459
        %v3464 = vpack.c.b16 %v3462, %v3461
        %vm3465 = vcmp.ne.s16.totalorder %v3463, 0
        %vm3466 = vcmp.ne.s16.totalorder %v3464, 0
        %v3467 = vsel %vm3465, %v3391, 0
        %v3468 = vsel %vm3466, %v3392, 0
        %vm3469 = vcmp.ge.s32.totalorder %v1063, 16
        %vm3470 = vcmp.ge.s32.totalorder %v1068, 16
        %vm3471 = vcmp.ge.s32.totalorder %v3389, 16
        %vm3472 = vcmp.ge.s32.totalorder %v3390, 16
        %vm3473 = vcmp.lt.s32.totalorder %v1063, 24
        %vm3474 = vcmp.lt.s32.totalorder %v1068, 24
        %vm3475 = vcmp.lt.s32.totalorder %v3389, 24
        %vm3476 = vcmp.lt.s32.totalorder %v3390, 24
        %vm3477 = vmand %vm3469, %vm3473
        %vm3478 = vmand %vm3470, %vm3474
        %vm3479 = vmand %vm3471, %vm3475
        %vm3480 = vmand %vm3472, %vm3476
        %v3481 = vsel %vm3477, 1, 0
        %v3482 = vsel %vm3478, 1, 0
        %v3483 = vsel %vm3479, 1, 0
        %v3484 = vsel %vm3480, 1, 0
        %vm3485 = vcmp.eq.s32.totalorder %v3481, 1
        %vm3486 = vcmp.eq.s32.totalorder %v3482, 1
        %vm3487 = vcmp.eq.s32.totalorder %v3483, 1
        %vm3488 = vcmp.eq.s32.totalorder %v3484, 1
        %vm3489 = vmpackc.low %vm3485, %vm3485
        %vm3490 = vmpackc.low %vm3486, %vm3486
        %vm3491 = vmpackc.low %vm3487, %vm3487
        %vm3492 = vmpackc.low %vm3488, %vm3488
        %v3493 = vsel %vm3489, 65537, 0
        %v3494 = vsel %vm3490, 65537, 0
        %v3495 = vsel %vm3491, 65537, 0
        %v3496 = vsel %vm3492, 65537, 0
        %v3497 = vunpack.c.l.b16 %v3493
        %v3498 = vunpack.c.l.b16 %v3494
        %v3499 = vunpack.c.l.b16 %v3495
        %v3500 = vunpack.c.l.b16 %v3496
        %v3501 = vpack.c.b16 %v3498, %v3497
        %v3502 = vpack.c.b16 %v3500, %v3499
        %vm3503 = vcmp.ne.s16.totalorder %v3501, 0
        %vm3504 = vcmp.ne.s16.totalorder %v3502, 0
        %v3505 = vsel %vm3503, %v3391, 0
        %v3506 = vsel %vm3504, %v3392, 0
        %vm3507 = vcmp.ge.s32.totalorder %v1063, 24
        %vm3508 = vcmp.ge.s32.totalorder %v1068, 24
        %vm3509 = vcmp.ge.s32.totalorder %v3389, 24
        %vm3510 = vcmp.ge.s32.totalorder %v3390, 24
        %vm3511 = vcmp.lt.s32.totalorder %v1063, 32
        %vm3512 = vcmp.lt.s32.totalorder %v1068, 32
        %vm3513 = vcmp.lt.s32.totalorder %v3389, 32
        %vm3514 = vcmp.lt.s32.totalorder %v3390, 32
        %vm3515 = vmand %vm3507, %vm3511
        %vm3516 = vmand %vm3508, %vm3512
        %vm3517 = vmand %vm3509, %vm3513
        %vm3518 = vmand %vm3510, %vm3514
        %v3519 = vsel %vm3515, 1, 0
        %v3520 = vsel %vm3516, 1, 0
        %v3521 = vsel %vm3517, 1, 0
        %v3522 = vsel %vm3518, 1, 0
        %vm3523 = vcmp.eq.s32.totalorder %v3519, 1
        %vm3524 = vcmp.eq.s32.totalorder %v3520, 1
        %vm3525 = vcmp.eq.s32.totalorder %v3521, 1
        %vm3526 = vcmp.eq.s32.totalorder %v3522, 1
        %vm3527 = vmpackc.low %vm3523, %vm3523
        %vm3528 = vmpackc.low %vm3524, %vm3524
        %vm3529 = vmpackc.low %vm3525, %vm3525
        %vm3530 = vmpackc.low %vm3526, %vm3526
        %v3531 = vsel %vm3527, 65537, 0
        %v3532 = vsel %vm3528, 65537, 0
        %v3533 = vsel %vm3529, 65537, 0
        %v3534 = vsel %vm3530, 65537, 0
        %v3535 = vunpack.c.l.b16 %v3531
        %v3536 = vunpack.c.l.b16 %v3532
        %v3537 = vunpack.c.l.b16 %v3533
        %v3538 = vunpack.c.l.b16 %v3534
        %v3539 = vpack.c.b16 %v3536, %v3535
        %v3540 = vpack.c.b16 %v3538, %v3537
        %vm3541 = vcmp.ne.s16.totalorder %v3539, 0
        %vm3542 = vcmp.ne.s16.totalorder %v3540, 0
        %v3543 = vsel %vm3541, %v3391, 0
        %v3544 = vsel %vm3542, %v3392, 0
        %v3545 = vpack.c.bf16 %v3140, %v3137
        %v3546 = vpack.c.bf16 %v3148, %v3145
        %v3547 = vpack.c.bf16 %v3156, %v3153
        %v3548 = vpack.c.bf16 %v3164, %v3161
        %v3550 = vsel %vm458, %v3545, 0
        %v3553 = vsel %vm458, %v3546, 0
        %v3556 = vsel %vm458, %v3547, 0
        %v3559 = vsel %vm458, %v3548, 0
        %3561 = vmatprep.subr.bf16.mxu0 %v3467
        %3562 = vmatpush1.bf16.msra.mxu0 %v3429
        %3563 = vmatprep.subr.bf16.mxu0 %v3468
        %3564 = vmatpush1.bf16.msra.mxu0 %v3430
        %3565 = vmatprep.subr.bf16.mxu0 0
        %3566 = vmatpush1.bf16.msra.mxu0 0
        %3567 = vmatprep.subr.bf16.mxu0 0
        %3568 = vmatpush1.bf16.msra.mxu0 0
        %3569 = vmatprep.subr.bf16.mxu0 0
        %3570 = vmatpush1.bf16.msra.mxu0 0
        %3571 = vmatprep.subr.bf16.mxu0 0
        %3572 = vmatpush1.bf16.msra.mxu0 0
        %3573 = vmatprep.subr.bf16.mxu0 0
        %3574 = vmatpush1.bf16.msra.mxu0 0
        %3575 = vmatprep.subr.bf16.mxu0 0
        %3576 = vmatpush1.bf16.msra.mxu0 0
        %3577 = vmatprep.subr.bf16.mxu0 0
        %3578 = vmatpush1.bf16.msra.mxu0 0
        %3579 = vmatprep.subr.bf16.mxu0 0
        %3580 = vmatpush1.bf16.msra.mxu0 0
        %3581 = vmatprep.subr.bf16.mxu0 0
        %3582 = vmatpush1.bf16.msra.mxu0 0
        %3583 = vmatprep.subr.bf16.mxu0 0
        %3584 = vmatpush1.bf16.msra.mxu0 0
        %3585 = vmatprep.subr.bf16.mxu0 0
        %3586 = vmatpush1.bf16.msra.mxu0 0
        %3587 = vmatprep.subr.bf16.mxu0 0
        %3588 = vmatpush1.bf16.msra.mxu0 0
        %3589 = vmatprep.subr.bf16.mxu0 0
        %3590 = vmatpush1.bf16.msra.mxu0 0
        %3591 = vmatprep.subr.bf16.mxu0 0
        %3592 = vmatpush1.bf16.msra.mxu0 0
        %3593 = vmatprep.mubr.bf16.mxu0 0
        %3594 = vmatmul.mubr.bf16.gmra.mrb[0].mxu0 %v3550
        %v3595 = vpop.f32.mrb[0].mxu0
        %v3596 = vadd.f32 0.0, %v3595
        %v3597 = vpop.f32.mrb[0].mxu0
        %v3598 = vadd.f32 0.0, %v3597
        %v3599 = vpop.f32.mrb[0].mxu0
        %v3600 = vadd.f32 0.0, %v3599
        %v3601 = vpop.f32.mrb[0].mxu0
        %v3602 = vadd.f32 0.0, %v3601
        %3603 = vmatprep.mubr.bf16.mxu0 0
        %3604 = vmatmul.mubr.bf16.gmra.mrb[0].mxu0 %v3553
        %v3605 = vpop.f32.mrb[0].mxu0
        %v3606 = vadd.f32 0.0, %v3605
        %v3607 = vpop.f32.mrb[0].mxu0
        %v3608 = vadd.f32 0.0, %v3607
        %v3609 = vpop.f32.mrb[0].mxu0
        %v3610 = vadd.f32 0.0, %v3609
        %v3611 = vpop.f32.mrb[0].mxu0
        %v3612 = vadd.f32 0.0, %v3611
        %3613 = vmatprep.mubr.bf16.mxu0 0
        %3614 = vmatmul.mubr.bf16.gmra.mrb[0].mxu0 %v3556
        %v3615 = vpop.f32.mrb[0].mxu0
        %v3616 = vadd.f32 0.0, %v3615
        %v3617 = vpop.f32.mrb[0].mxu0
        %v3618 = vadd.f32 0.0, %v3617
        %v3619 = vpop.f32.mrb[0].mxu0
        %v3620 = vadd.f32 0.0, %v3619
        %v3621 = vpop.f32.mrb[0].mxu0
        %v3622 = vadd.f32 0.0, %v3621
        %3623 = vmatprep.mubr.bf16.mxu0 0
        %3624 = vmatmul.mubr.bf16.gmra.mrb[0].mxu0 %v3559
        %v3625 = vpop.f32.mrb[0].mxu0
        %v3626 = vadd.f32 0.0, %v3625
        %v3627 = vpop.f32.mrb[0].mxu0
        %v3628 = vadd.f32 0.0, %v3627
        %v3629 = vpop.f32.mrb[0].mxu0
        %v3630 = vadd.f32 0.0, %v3629
        %v3631 = vpop.f32.mrb[0].mxu0
        %v3632 = vadd.f32 0.0, %v3631
        %3633 = vdwg.mxu0
        %3634 = vmatprep.subr.bf16.mxu0 %v3543
        %3635 = vmatpush1.bf16.msra.mxu0 %v3505
        %3636 = vmatprep.subr.bf16.mxu0 %v3544
        %3637 = vmatpush1.bf16.msra.mxu0 %v3506
        %3638 = vmatprep.subr.bf16.mxu0 0
        %3639 = vmatpush1.bf16.msra.mxu0 0
        %3640 = vmatprep.subr.bf16.mxu0 0
        %3641 = vmatpush1.bf16.msra.mxu0 0
        %3642 = vmatprep.subr.bf16.mxu0 0
        %3643 = vmatpush1.bf16.msra.mxu0 0
        %3644 = vmatprep.subr.bf16.mxu0 0
        %3645 = vmatpush1.bf16.msra.mxu0 0
        %3646 = vmatprep.subr.bf16.mxu0 0
        %3647 = vmatpush1.bf16.msra.mxu0 0
        %3648 = vmatprep.subr.bf16.mxu0 0
        %3649 = vmatpush1.bf16.msra.mxu0 0
        %3650 = vmatprep.subr.bf16.mxu0 0
        %3651 = vmatpush1.bf16.msra.mxu0 0
        %3652 = vmatprep.subr.bf16.mxu0 0
        %3653 = vmatpush1.bf16.msra.mxu0 0
        %3654 = vmatprep.subr.bf16.mxu0 0
        %3655 = vmatpush1.bf16.msra.mxu0 0
        %3656 = vmatprep.subr.bf16.mxu0 0
        %3657 = vmatpush1.bf16.msra.mxu0 0
        %3658 = vmatprep.subr.bf16.mxu0 0
        %3659 = vmatpush1.bf16.msra.mxu0 0
        %3660 = vmatprep.subr.bf16.mxu0 0
        %3661 = vmatpush1.bf16.msra.mxu0 0
        %3662 = vmatprep.subr.bf16.mxu0 0
        %3663 = vmatpush1.bf16.msra.mxu0 0
        %3664 = vmatprep.subr.bf16.mxu0 0
        %3665 = vmatpush1.bf16.msra.mxu0 0
        %3666 = vmatprep.mubr.bf16.mxu0 0
        %3667 = vmatmul.mubr.bf16.gmra.mrb[0].mxu0 %v3550
        %v3668 = vpop.f32.mrb[0].mxu0
        %v3669 = vadd.f32 0.0, %v3668
        %v3670 = vpop.f32.mrb[0].mxu0
        %v3671 = vadd.f32 0.0, %v3670
        %v3672 = vpop.f32.mrb[0].mxu0
        %v3673 = vadd.f32 0.0, %v3672
        %v3674 = vpop.f32.mrb[0].mxu0
        %v3675 = vadd.f32 0.0, %v3674
        %3676 = vmatprep.mubr.bf16.mxu0 0
        %3677 = vmatmul.mubr.bf16.gmra.mrb[0].mxu0 %v3553
        %v3678 = vpop.f32.mrb[0].mxu0
        %v3679 = vadd.f32 0.0, %v3678
        %v3680 = vpop.f32.mrb[0].mxu0
        %v3681 = vadd.f32 0.0, %v3680
        %v3682 = vpop.f32.mrb[0].mxu0
        %v3683 = vadd.f32 0.0, %v3682
        %v3684 = vpop.f32.mrb[0].mxu0
        %v3685 = vadd.f32 0.0, %v3684
        %3686 = vmatprep.mubr.bf16.mxu0 0
        %3687 = vmatmul.mubr.bf16.gmra.mrb[0].mxu0 %v3556
        %v3688 = vpop.f32.mrb[0].mxu0
        %v3689 = vadd.f32 0.0, %v3688
        %v3690 = vpop.f32.mrb[0].mxu0
        %v3691 = vadd.f32 0.0, %v3690
        %v3692 = vpop.f32.mrb[0].mxu0
        %v3693 = vadd.f32 0.0, %v3692
        %v3694 = vpop.f32.mrb[0].mxu0
        %v3695 = vadd.f32 0.0, %v3694
        %3696 = vmatprep.mubr.bf16.mxu0 0
        %3697 = vmatmul.mubr.bf16.gmra.mrb[0].mxu0 %v3559
        %v3698 = vpop.f32.mrb[0].mxu0
        %v3699 = vadd.f32 0.0, %v3698
        %v3700 = vpop.f32.mrb[0].mxu0
        %v3701 = vadd.f32 0.0, %v3700
        %v3702 = vpop.f32.mrb[0].mxu0
        %v3703 = vadd.f32 0.0, %v3702
        %v3704 = vpop.f32.mrb[0].mxu0
        %v3705 = vadd.f32 0.0, %v3704
        %3706 = vdwg.mxu0
        %3707 = vst [vmem:[%s410] sm:$0xff] %v3596
        %3708 = vst [vmem:[%s410 + $0x8] sm:$0xff] %v3598
        %3709 = vst [vmem:[%s410 + $0x10] sm:$0xff] %v3669
        %3710 = vst [vmem:[%s410 + $0x18] sm:$0xff] %v3671
        %3711 = vst [vmem:[%s410 + $0x20] sm:$0xff] %v3600
        %3712 = vst [vmem:[%s410 + $0x28] sm:$0xff] %v3602
        %3713 = vst [vmem:[%s410 + $0x30] sm:$0xff] %v3673
        %3714 = vst [vmem:[%s410 + $0x38] sm:$0xff] %v3675
        %3715 = vst [vmem:[%s410 + $0x40] sm:$0xff] %v3606
        %3716 = vst [vmem:[%s410 + $0x48] sm:$0xff] %v3608
        %3717 = vst [vmem:[%s410 + $0x50] sm:$0xff] %v3679
        %3718 = vst [vmem:[%s410 + $0x58] sm:$0xff] %v3681
        %3719 = vst [vmem:[%s410 + $0x60] sm:$0xff] %v3610
        %3720 = vst [vmem:[%s410 + $0x68] sm:$0xff] %v3612
        %3721 = vst [vmem:[%s410 + $0x70] sm:$0xff] %v3683
        %3722 = vst [vmem:[%s410 + $0x78] sm:$0xff] %v3685
        %3723 = vst [vmem:[%s410 + $0x80] sm:$0xff] %v3616
        %3724 = vst [vmem:[%s410 + $0x88] sm:$0xff] %v3618
        %3725 = vst [vmem:[%s410 + $0x90] sm:$0xff] %v3689
        %3726 = vst [vmem:[%s410 + $0x98] sm:$0xff] %v3691
        %3727 = vst [vmem:[%s410 + $0xa0] sm:$0xff] %v3620
        %3728 = vst [vmem:[%s410 + $0xa8] sm:$0xff] %v3622
        %3729 = vst [vmem:[%s410 + $0xb0] sm:$0xff] %v3693
        %3730 = vst [vmem:[%s410 + $0xb8] sm:$0xff] %v3695
        %3731 = vst [vmem:[%s410 + $0xc0] sm:$0xff] %v3626
        %3732 = vst [vmem:[%s410 + $0xc8] sm:$0xff] %v3628
        %3733 = vst [vmem:[%s410 + $0xd0] sm:$0xff] %v3699
        %3734 = vst [vmem:[%s410 + $0xd8] sm:$0xff] %v3701
        %3735 = vst [vmem:[%s410 + $0xe0] sm:$0xff] %v3630
        %3736 = vst [vmem:[%s410 + $0xe8] sm:$0xff] %v3632
        %3737 = vst [vmem:[%s410 + $0xf0] sm:$0xff] %v3703
        %3738 = vst [vmem:[%s410 + $0xf8] sm:$0xff] %v3705
        %s3739 = sand.u32 %s274, 1
        %s3740 = scalar_lea.sflag [#allocation5], %s3739
        %s3741 = sand.u32 %s274, 1
        %s3742 = smul.addr %s3741, 256
        %s3743 = scalar_lea.vmem [#allocation4], %s3742
        %s3744 = sand.u32 %s300, 1
        %s3745 = scalar_lea.sflag [#allocation7], %s3744
        %s3746 = sand.u32 %s300, 1
        %s3747 = smul.addr %s3746, 32
        %s3748 = scalar_lea.vmem [#allocation6], %s3747
        // Predicated region
        $region65: #{tpu_custom_call.1} parent=63 // pred_check
          %p3749 = pneg %p284
        $region66: #{tpu_custom_call.1} parent=63 // pred_check_branch
          %3751 = sbr.rel (%p3749) target = $region68
        $region67: #{tpu_custom_call.1} parent=63 // pred_region
          %s3753 = ssub.s32 4096, 4096
          %3754 = vsyncadd %s3740, %s3753
          %s3755 = smul.addr %s30, 32
          %s3756 = smul.addr %s3755, 128
          %s3757 = scalar_lea.hbm %s11, %s3756
          %s3758 = sshll.u32 %s3743, 4
          %s3759 = int_to_ptr.vmem [resolvable:$true] %s3758
          %3764 = dma.vmem_to_hbm [thread:$0]  %s3759, 4096, %s3757, %s3740, 512, 512, 32
        $region68: #{tpu_custom_call.1} parent=63 // pred_fallthru
          _
        // Predicated region
        $region69: #{tpu_custom_call.1} parent=63 // pred_check
          %p3765 = pneg %p310
        $region70: #{tpu_custom_call.1} parent=63 // pred_check_branch
          %3767 = sbr.rel (%p3765) target = $region72
        $region71: #{tpu_custom_call.1} parent=63 // pred_region
          %s3769 = ssub.s32 512, 512
          %3770 = vsyncadd %s3745, %s3769
          %s3771 = smul.addr %s30, 4
          %s3772 = smul.addr %s3771, 128
          %s3773 = scalar_lea.hbm %s12, %s3772
          %s3774 = sshll.u32 %s3748, 4
          %s3775 = int_to_ptr.vmem [resolvable:$true] %s3774
          %3780 = dma.vmem_to_hbm [thread:$0]  %s3775, 512, %s3773, %s3745, 128, 128, 8
        $region72: #{tpu_custom_call.1} parent=63 // pred_fallthru
          _
      $region64: #{tpu_custom_call.1} parent=5 // pred_fallthru
        _
      %p3781 = scmp.le.s32.totalorder 2, %s25
      // Predicated region
      $region73: #{tpu_custom_call.1} parent=5 // pred_check
        %p3782 = pneg %p3781
      $region74: #{tpu_custom_call.1} parent=5 // pred_check_branch
        %3784 = sbr.rel (%p3782) target = $region76
      $region75: #{tpu_custom_call.1} parent=5 // pred_region
        %s3785 = ssub.s32 %s25, 2
        // Predicated region
        $region77: #{tpu_custom_call.1} parent=75 // pred_check
          %p3786 = pneg %p290
        $region78: #{tpu_custom_call.1} parent=75 // pred_check_branch
          %3788 = sbr.rel (%p3786) target = $region80
        $region79: #{tpu_custom_call.1} parent=75 // pred_region
          %s3789 = sand.u32 %s275, 1
          %s3790 = scalar_lea.sflag [#allocation5], %s3789
          %s3791 = sand.u32 %s275, 1
          %s3792 = smul.addr %s3791, 256
          %s3793 = scalar_lea.vmem [#allocation4], %s3792
          %3794 = dma.done %s3790, 4096
        $region80: #{tpu_custom_call.1} parent=75 // pred_fallthru
          _
        // Predicated region
        $region81: #{tpu_custom_call.1} parent=75 // pred_check
          %p3795 = pneg %p316
        $region82: #{tpu_custom_call.1} parent=75 // pred_check_branch
          %3797 = sbr.rel (%p3795) target = $region84
        $region83: #{tpu_custom_call.1} parent=75 // pred_region
          %s3798 = sand.u32 %s301, 1
          %s3799 = scalar_lea.sflag [#allocation7], %s3798
          %s3800 = sand.u32 %s301, 1
          %s3801 = smul.addr %s3800, 32
          %s3802 = scalar_lea.vmem [#allocation6], %s3801
          %3803 = dma.done %s3799, 512
        $region84: #{tpu_custom_call.1} parent=75 // pred_fallthru
          _
      $region76: #{tpu_custom_call.1} parent=5 // pred_fallthru
        _
    $region6: #{tpu_custom_call.1} parent=1 // loop_footer
      %s29 = sadd.s32 1, %s25
    $region7: #{tpu_custom_call.1} parent=1 // loop_footer_branch
      %24 = sbr.rel target = $region3
    $region8: #{tpu_custom_call.1} parent=1 // loop_exit
      _
    %3804 = vsyncpa [#allocation5], 1
    %s3805 = scalar_lea.sflag [#allocation5], 1
    %3806 = vsyncpa %s3805, 1
    %3807 = vsyncpa [#allocation7], 1
    %s3808 = scalar_lea.sflag [#allocation7], 1
    %3809 = vsyncpa %s3808, 1

</llo_original>
